<compile_context>
chip_gen: v7x
topology: tpu7x:2x2x1
jax: 0.10.0
libtpu: 0.0.40
codegen_flags: <defaults>
</compile_context>

<pallas_src>
import functools
import math

import jax
import jax.numpy as jnp
from jax import lax
from jax.experimental import pallas as pl
from jax.experimental.pallas import tpu as pltpu

_VMEM = pl.BlockSpec(memory_space=pltpu.MemorySpace.VMEM)
_SMEM = pl.BlockSpec(memory_space=pltpu.MemorySpace.SMEM)


# ----------------------------- Pallas kernels ------------------------------

def _enc_q_kernel(ty_ref, avg_ref, enc_w_ref, enc_b_ref, h_w_ref, h_b_ref,
                  head_w_ref, head_b_ref, out_ref, *, dz):
    """Fused: tanh encoder over (t,y) rows -> mean over T (as a matmul with a
    group-averaging matrix) -> linear_r_to_h -> [mu_z | 0.1+0.9*sigmoid(sigma_z)]
    written as a single lane-dense (N, 2*dz) slab."""
    r = jnp.tanh(jnp.dot(ty_ref[...], enc_w_ref[...],
                         preferred_element_type=jnp.float32) + enc_b_ref[...])
    rbar = jnp.dot(avg_ref[...], r, preferred_element_type=jnp.float32)      # (N, dim_r)
    h = jnp.dot(rbar, h_w_ref[...],
                preferred_element_type=jnp.float32) + h_b_ref[...]
    heads = jnp.dot(h, head_w_ref[...],
                    preferred_element_type=jnp.float32) + head_b_ref[...]    # (N, 2*dz)
    col = lax.broadcasted_iota(jnp.int32, heads.shape, 1)
    out_ref[...] = jnp.where(col < dz, heads, 0.1 + 0.9 * jax.nn.sigmoid(heads))


def _rk4_odeint_kernel(ts_ref, z_ref, w0_ref, b0_ref, w1_ref, b1_ref,
                       w2_ref, b2_ref, lat_ref, x_ref, *, n_sub, dim_l, dim_zp):
    """Single fused fixed-step RK4 integrator.

    ts_ref : SMEM (K,)      sorted (padded) time grid
    z_ref  : VMEM (N, D)    initial state [latent | z_prime], D = dim_l + dim_zp
    lat_ref: VMEM (K, N, dim_l) output latent trajectory
    x_ref  : VMEM (N, D+1)  scratch: ode_mlp input [latent | z_prime | t]
    """
    D = dim_l + dim_zp
    N = z_ref.shape[0]
    K = lat_ref.shape[0]

    w0 = w0_ref[...]; b0 = b0_ref[...]
    w1 = w1_ref[...]; b1 = b1_ref[...]
    w2 = w2_ref[...]; b2 = b2_ref[...]

    # z_prime columns are constant over the whole integration: write them once.
    x_ref[:, dim_l:D] = z_ref[:, dim_l:D]

    def ode_mlp(l, t):
        x_ref[:, 0:dim_l] = l
        x_ref[:, D:D + 1] = jnp.full((N, 1), t, dtype=jnp.float32)
        x = x_ref[...]
        h = jnp.tanh(jnp.dot(x, w0, preferred_element_type=jnp.float32) + b0)
        h = jnp.tanh(jnp.dot(h, w1, preferred_element_type=jnp.float32) + b1)
        return jnp.dot(h, w2, preferred_element_type=jnp.float32) + b2       # (N, dim_l)

    l0 = z_ref[:, 0:dim_l]
    lat_ref[0] = l0

    def seg_body(k, l):
        t_a = ts_ref[k]
        t_b = ts_ref[k + 1]
        hstep = (t_b - t_a) * (1.0 / n_sub)

        def sub_body(s, l_in):
            t = t_a + s.astype(jnp.float32) * hstep
            k1 = ode_mlp(l_in, t)
            k2 = ode_mlp(l_in + 0.5 * hstep * k1, t + 0.5 * hstep)
            k3 = ode_mlp(l_in + 0.5 * hstep * k2, t + 0.5 * hstep)
            k4 = ode_mlp(l_in + hstep * k3, t + hstep)
            return l_in + (hstep / 6.0) * (k1 + 2.0 * k2 + 2.0 * k3 + k4)

        l_new = lax.fori_loop(0, n_sub, sub_body, l, unroll=True)
        lat_ref[k + 1] = l_new
        return l_new

    lax.fori_loop(0, K - 1, seg_body, l0)


def _decoder_p_kernel(x_ref, w_ref, b_ref, out_ref, *, dim_y):
    """Fused synthetic decoder heads + p() sigma transform; single lane-dense
    (rows, 2*dim_y) output [mu_y | 0.1 + 0.9*softplus(sigma_y)]."""
    y = jnp.dot(x_ref[...], w_ref[...],
                preferred_element_type=jnp.float32) + b_ref[...]
    col = lax.broadcasted_iota(jnp.int32, y.shape, 1)
    out_ref[...] = jnp.where(col < dim_y, y, 0.1 + 0.9 * jax.nn.softplus(y))


# ------------------------------ init helper ---------------------------------

def _init_linear(key, fan_in, fan_out):
    """PyTorch nn.Linear default init (uniform +-1/sqrt(fan_in)); W as (in, out)."""
    kw, kb = jax.random.split(key)
    bound = 1.0 / math.sqrt(fan_in)
    w = jax.random.uniform(kw, (fan_in, fan_out), jnp.float32, -bound, bound)
    b = jax.random.uniform(kb, (1, fan_out), jnp.float32, -bound, bound)
    return w, b


# ------------------------------- model ---------------------------------------

class NeuralODEProcess:
    def __init__(self, key, *, dim_y, dim_r, dim_z_prime, dim_l,
                 hidden_sizes_ode_net, t0, n_sub=4):
        assert len(hidden_sizes_ode_net) == 2  # RK4 kernel is fused for 2 hidden layers
        self.dim_y = dim_y
        self.dim_r = dim_r
        self.dim_z_prime = dim_z_prime
        self.dim_l = dim_l
        self.t0 = float(t0)
        self.n_sub = int(n_sub)

        keys = jax.random.split(key, 9)
        # TODO(synk): encoder() is abstract in the PyTorch Model; synthetic
        # tanh-linear encoder over concat(t, y) used as a stand-in.
        self.enc_w, self.enc_b = _init_linear(keys[0], 1 + dim_y, dim_r)
        # q() parameters (exact semantics of the reference Model.q).
        dz = dim_l + dim_z_prime
        self.h_w, self.h_b = _init_linear(keys[1], dim_r, dim_r)
        mu_w, mu_b = _init_linear(keys[2], dim_r, dz)
        sg_w, sg_b = _init_linear(keys[3], dim_r, dz)
        self.head_w = jnp.concatenate([mu_w, sg_w], axis=1)   # (dim_r, 2*dz)
        self.head_b = jnp.concatenate([mu_b, sg_b], axis=1)   # (1, 2*dz)
        # ode_mlp: (dim_l + dim_z_prime + 1) -> h1 -> h2 -> dim_l, tanh hidden.
        h1, h2 = hidden_sizes_ode_net
        self.o0_w, self.o0_b = _init_linear(keys[4], dz + 1, h1)
        self.o1_w, self.o1_b = _init_linear(keys[5], h1, h2)
        self.o2_w, self.o2_b = _init_linear(keys[6], h2, dim_l)
        # TODO(synk): decoder() is abstract in the PyTorch Model; synthetic
        # linear heads over concat(t, latent, z_prime) used as a stand-in.
        dec_in = 1 + dim_l + dim_z_prime
        dm_w, dm_b = _init_linear(keys[7], dec_in, dim_y)
        ds_w, ds_b = _init_linear(keys[8], dec_in, dim_y)
        self.dec_w = jnp.concatenate([dm_w, ds_w], axis=1)    # (dec_in, 2*dim_y)
        self.dec_b = jnp.concatenate([dm_b, ds_b], axis=1)    # (1, 2*dim_y)

        # Jitted entry points (no per-op eager dispatch, no host syncs).
        self._q = jax.jit(self._q_impl)
        self._predict = jax.jit(self._predict_impl)
        self._forward_train = jax.jit(self._forward_train_impl)

    # ---- q(z | t, y): fused encoder + mean-over-time + heads -----------------
    def _q_impl(self, t, y):
        N, T, _ = t.shape
        dz = self.dim_l + self.dim_z_prime
        x = jnp.concatenate([t, y], axis=-1).reshape(N * T, 1 + self.dim_y)
        # Group-averaging matrix (constant-folded under jit): mean over T per batch.
        avg = jnp.kron(jnp.eye(N, dtype=jnp.float32),
                       jnp.full((1, T), 1.0 / T, jnp.float32))         # (N, N*T)
        out = pl.pallas_call(
            functools.partial(_enc_q_kernel, dz=dz),
            out_shape=jax.ShapeDtypeStruct((N, 2 * dz), jnp.float32),
            in_specs=[_VMEM] * 8,
            out_specs=_VMEM,
        )(x, avg, self.enc_w, self.enc_b, self.h_w, self.h_b,
          self.head_w, self.head_b)
        return out[:, :dz], out[:, dz:]

    # ---- ODE solve + gather + decoder (all inside one jit) -------------------
    # TODO(synk): torchdiffeq's adaptive odeint has no clean Pallas equivalent;
    # a fixed-step RK4 integrator (n_sub substeps per interval), fused into a
    # single Pallas kernel, is used instead.
    def _predict_impl(self, z, t_target):
        N, T, _ = t_target.shape
        dim_l, dim_zp = self.dim_l, self.dim_z_prime
        D = dim_l + dim_zp
        K = N * (T + 1)

        t0 = jnp.full((N, 1, 1), self.t0, dtype=jnp.float32)
        cat = jnp.concatenate([t0, t_target], axis=1)                  # (N, T+1, 1)
        flat = cat.reshape(-1)
        # Static size for jit; pad with the max time so padded segments have h=0.
        t_sorted, inv = jnp.unique(flat, return_inverse=True,
                                   size=K, fill_value=flat.max())
        inv = inv.reshape(N, T + 1, 1)

        lat_all = pl.pallas_call(
            functools.partial(_rk4_odeint_kernel, n_sub=self.n_sub,
                              dim_l=dim_l, dim_zp=dim_zp),
            out_shape=jax.ShapeDtypeStruct((K, N, dim_l), jnp.float32),
            in_specs=[_SMEM] + [_VMEM] * 7,
            out_specs=_VMEM,
            scratch_shapes=[pltpu.VMEM((N, D + 1), jnp.float32)],
        )(t_sorted, z, self.o0_w, self.o0_b, self.o1_w, self.o1_b,
          self.o2_w, self.o2_b)                                        # (K, N, dim_l)

        v = jnp.transpose(lat_all, (1, 0, 2))                          # (N, K, dim_l)
        idx = jnp.broadcast_to(inv, (N, T + 1, dim_l))
        latent = jnp.take_along_axis(v, idx, axis=1)[:, 1:, :]         # (N, T, dim_l)

        z_prime = z[:, dim_l:]
        zp = jnp.broadcast_to(z_prime[:, None, :], (N, T, dim_zp))
        x = jnp.concatenate([t_target, latent, zp], axis=-1).reshape(N * T, 1 + D)

        out = pl.pallas_call(
            functools.partial(_decoder_p_kernel, dim_y=self.dim_y),
            out_shape=jax.ShapeDtypeStruct((N * T, 2 * self.dim_y), jnp.float32),
            in_specs=[_VMEM] * 3,
            out_specs=_VMEM,
        )(x, self.dec_w, self.dec_b)
        mu_y = out[:, :self.dim_y].reshape(N, T, self.dim_y)
        sigma_y = out[:, self.dim_y:].reshape(N, T, self.dim_y)
        return mu_y, sigma_y

    # ---- fully-jitted training-path forward (y_target given, z sampled) ------
    def _forward_train_impl(self, t_context, y_context, t_target, y_target, key):
        q_z_C = self._q_impl(t_context, y_context)
        q_z_T = self._q_impl(t_target, y_target)
        mu, sig = q_z_T
        eps = jax.random.normal(key, mu.shape, dtype=jnp.float32)
        z = mu + sig * eps                                             # rsample
        p_y = self._predict_impl(z, t_target)
        return p_y, q_z_T, q_z_C

    # ---- forward (mirrors Model.forward) -------------------------------------
    def forward(self, t_context, y_context, t_target, y_target=None, z=None,
                key=None):
        if z is None and y_target is not None:
            return self._forward_train(t_context, y_context, t_target,
                                       y_target, key)
        q_z_C = self._q(t_context, y_context)
        q_z_T = None
        if z is None:
            mu, sig = q_z_C
            eps = jax.random.normal(key, mu.shape, dtype=jnp.float32)
            z = mu + sig * eps
        p_y = self._predict(z, t_target)
        return p_y, q_z_T, q_z_C


# --------------------------------- main --------------------------------------

if __name__ == "__main__":
    key = jax.random.PRNGKey(0)
    k_param, k_tc, k_yc, k_tt, k_yt, k_sample = jax.random.split(key, 6)

    N, T_ctx, T_tgt = 2, 8, 8
    dim_y, dim_r, dim_l, dim_z_prime = 3, 16, 8, 4

    model = NeuralODEProcess(
        k_param, dim_y=dim_y, dim_r=dim_r, dim_z_prime=dim_z_prime,
        dim_l=dim_l, hidden_sizes_ode_net=[32, 32], t0=0.0)

    t_context = jnp.sort(jax.random.uniform(k_tc, (N, T_ctx, 1), jnp.float32), axis=1)
    y_context = jax.random.normal(k_yc, (N, T_ctx, dim_y), jnp.float32)
    t_target = jnp.sort(jax.random.uniform(k_tt, (N, T_tgt, 1), jnp.float32,
                                           minval=0.0, maxval=2.0), axis=1)
    y_target = jax.random.normal(k_yt, (N, T_tgt, dim_y), jnp.float32)

    (mu_y, sigma_y), q_z_T, q_z_C = model.forward(
        t_context, y_context, t_target, y_target=y_target, key=k_sample)

    jax.block_until_ready((mu_y, sigma_y, q_z_T, q_z_C))
    assert mu_y.shape == (N, T_tgt, dim_y) and sigma_y.shape == (N, T_tgt, dim_y)
    assert q_z_C[0].shape == (N, dim_l + dim_z_prime)
    assert q_z_T is not None and q_z_T[0].shape == (N, dim_l + dim_z_prime)
    assert bool(jnp.all(jnp.isfinite(mu_y))) and bool(jnp.all(sigma_y > 0.1))
    print("KERNEL_OK")
</pallas_src>

<mosaic_0001>
module attributes {stable_mosaic.version = 11 : i64} {
  func.func @_enc_q_kernel(%arg0: memref<16x4xf32, #tpu.memory_space<vmem>>, %arg1: memref<2x16xf32, #tpu.memory_space<vmem>>, %arg2: memref<4x16xf32, #tpu.memory_space<vmem>>, %arg3: memref<1x16xf32, #tpu.memory_space<vmem>>, %arg4: memref<16x16xf32, #tpu.memory_space<vmem>>, %arg5: memref<1x16xf32, #tpu.memory_space<vmem>>, %arg6: memref<16x24xf32, #tpu.memory_space<vmem>>, %arg7: memref<1x24xf32, #tpu.memory_space<vmem>>, %arg8: memref<2x24xf32, #tpu.memory_space<vmem>>) attributes {dimension_semantics = [], scalar_prefetch = 0 : i64, scratch_operands = 0 : i64, tpu.core_type = #tpu.core_type<tc>} {
    %c0 = arith.constant 0 : index
    %c0_0 = arith.constant 0 : index
    %0 = vector.load %arg0[%c0, %c0_0] : memref<16x4xf32, #tpu.memory_space<vmem>>, vector<16x4xf32>
    %c0_1 = arith.constant 0 : index
    %c0_2 = arith.constant 0 : index
    %1 = vector.load %arg2[%c0_1, %c0_2] : memref<4x16xf32, #tpu.memory_space<vmem>>, vector<4x16xf32>
    %cst = arith.constant dense<0.000000e+00> : vector<16x16xf32>
    %2 = tpu.matmul %0, %1, %cst {dimension_numbers = #tpu.dot_dimension_numbers<[1], [0], [0], [1], [0, 0, 1, 1], [], []>} : vector<16x4xf32>, vector<4x16xf32>, vector<16x16xf32> -> vector<16x16xf32>
    %c0_3 = arith.constant 0 : index
    %c0_4 = arith.constant 0 : index
    %3 = vector.load %arg3[%c0_3, %c0_4] : memref<1x16xf32, #tpu.memory_space<vmem>>, vector<1x16xf32>
    %4 = vector.broadcast %3 : vector<1x16xf32> to vector<16x16xf32>
    %5 = arith.addf %2, %4 : vector<16x16xf32>
    %6 = math.tanh %5 : vector<16x16xf32>
    %c0_5 = arith.constant 0 : index
    %c0_6 = arith.constant 0 : index
    %7 = vector.load %arg1[%c0_5, %c0_6] : memref<2x16xf32, #tpu.memory_space<vmem>>, vector<2x16xf32>
    %cst_7 = arith.constant dense<0.000000e+00> : vector<2x16xf32>
    %8 = tpu.matmul %7, %6, %cst_7 {dimension_numbers = #tpu.dot_dimension_numbers<[1], [0], [0], [1], [0, 0, 1, 1], [], []>} : vector<2x16xf32>, vector<16x16xf32>, vector<2x16xf32> -> vector<2x16xf32>
    %c0_8 = arith.constant 0 : index
    %c0_9 = arith.constant 0 : index
    %9 = vector.load %arg4[%c0_8, %c0_9] : memref<16x16xf32, #tpu.memory_space<vmem>>, vector<16x16xf32>
    %cst_10 = arith.constant dense<0.000000e+00> : vector<2x16xf32>
    %10 = tpu.matmul %8, %9, %cst_10 {dimension_numbers = #tpu.dot_dimension_numbers<[1], [0], [0], [1], [0, 0, 1, 1], [], []>} : vector<2x16xf32>, vector<16x16xf32>, vector<2x16xf32> -> vector<2x16xf32>
    %c0_11 = arith.constant 0 : index
    %c0_12 = arith.constant 0 : index
    %11 = vector.load %arg5[%c0_11, %c0_12] : memref<1x16xf32, #tpu.memory_space<vmem>>, vector<1x16xf32>
    %12 = vector.broadcast %11 : vector<1x16xf32> to vector<2x16xf32>
    %13 = arith.addf %10, %12 : vector<2x16xf32>
    %c0_13 = arith.constant 0 : index
    %c0_14 = arith.constant 0 : index
    %14 = vector.load %arg6[%c0_13, %c0_14] : memref<16x24xf32, #tpu.memory_space<vmem>>, vector<16x24xf32>
    %cst_15 = arith.constant dense<0.000000e+00> : vector<2x24xf32>
    %15 = tpu.matmul %13, %14, %cst_15 {dimension_numbers = #tpu.dot_dimension_numbers<[1], [0], [0], [1], [0, 0, 1, 1], [], []>} : vector<2x16xf32>, vector<16x24xf32>, vector<2x24xf32> -> vector<2x24xf32>
    %c0_16 = arith.constant 0 : index
    %c0_17 = arith.constant 0 : index
    %16 = vector.load %arg7[%c0_16, %c0_17] : memref<1x24xf32, #tpu.memory_space<vmem>>, vector<1x24xf32>
    %17 = vector.broadcast %16 : vector<1x24xf32> to vector<2x24xf32>
    %18 = arith.addf %15, %17 : vector<2x24xf32>
    %19 = tpu.iota {dimensions = array<i32: 1>} : vector<2x24xi32>
    %c12_i32 = arith.constant 12 : i32
    %20 = vector.broadcast %c12_i32 : i32 to vector<2x24xi32>
    %21 = arith.cmpi slt, %19, %20 : vector<2x24xi32>
    %22 = arith.negf %18 : vector<2x24xf32>
    %23 = math.exp %22 : vector<2x24xf32>
    %cst_18 = arith.constant 1.000000e+00 : f32
    %24 = vector.broadcast %cst_18 : f32 to vector<2x24xf32>
    %25 = arith.addf %24, %23 : vector<2x24xf32>
    %26 = arith.divf %24, %25 : vector<2x24xf32>
    %cst_19 = arith.constant 0.899999976 : f32
    %27 = vector.broadcast %cst_19 : f32 to vector<2x24xf32>
    %28 = arith.mulf %27, %26 : vector<2x24xf32>
    %cst_20 = arith.constant 1.000000e-01 : f32
    %29 = vector.broadcast %cst_20 : f32 to vector<2x24xf32>
    %30 = arith.addf %29, %28 : vector<2x24xf32>
    %31 = arith.select %21, %18, %30 : vector<2x24xi1>, vector<2x24xf32>
    %c0_21 = arith.constant 0 : index
    %c0_22 = arith.constant 0 : index
    %32 = vector.load %arg8[%c0_21, %c0_22] : memref<2x24xf32, #tpu.memory_space<vmem>>, vector<2x24xf32>
    tpu.vector_store %arg8[%c0_21, %c0_22], %31 {strides = array<i32>} : memref<2x24xf32, #tpu.memory_space<vmem>>, vector<2x24xf32>,
    return
  }
}

module attributes {stable_mosaic.version = 11 : i64} {
  func.func @_rk4_odeint_kernel(%arg0: memref<18xf32, #tpu.memory_space<smem>>, %arg1: memref<2x12xf32, #tpu.memory_space<vmem>>, %arg2: memref<13x32xf32, #tpu.memory_space<vmem>>, %arg3: memref<1x32xf32, #tpu.memory_space<vmem>>, %arg4: memref<32x32xf32, #tpu.memory_space<vmem>>, %arg5: memref<1x32xf32, #tpu.memory_space<vmem>>, %arg6: memref<32x8xf32, #tpu.memory_space<vmem>>, %arg7: memref<1x8xf32, #tpu.memory_space<vmem>>, %arg8: memref<18x2x8xf32, #tpu.memory_space<vmem>>, %arg9: memref<2x13xf32, #tpu.memory_space<vmem>>) attributes {dimension_semantics = [], scalar_prefetch = 0 : i64, scratch_operands = 1 : i64, tpu.core_type = #tpu.core_type<tc>} {
    %c0 = arith.constant 0 : index
    %c0_0 = arith.constant 0 : index
    %0 = vector.load %arg2[%c0, %c0_0] : memref<13x32xf32, #tpu.memory_space<vmem>>, vector<13x32xf32>
    %c0_1 = arith.constant 0 : index
    %c0_2 = arith.constant 0 : index
    %1 = vector.load %arg3[%c0_1, %c0_2] : memref<1x32xf32, #tpu.memory_space<vmem>>, vector<1x32xf32>
    %c0_3 = arith.constant 0 : index
    %c0_4 = arith.constant 0 : index
    %2 = vector.load %arg4[%c0_3, %c0_4] : memref<32x32xf32, #tpu.memory_space<vmem>>, vector<32x32xf32>
    %c0_5 = arith.constant 0 : index
    %c0_6 = arith.constant 0 : index
    %3 = vector.load %arg5[%c0_5, %c0_6] : memref<1x32xf32, #tpu.memory_space<vmem>>, vector<1x32xf32>
    %c0_7 = arith.constant 0 : index
    %c0_8 = arith.constant 0 : index
    %4 = vector.load %arg6[%c0_7, %c0_8] : memref<32x8xf32, #tpu.memory_space<vmem>>, vector<32x8xf32>
    %c0_9 = arith.constant 0 : index
    %c0_10 = arith.constant 0 : index
    %5 = vector.load %arg7[%c0_9, %c0_10] : memref<1x8xf32, #tpu.memory_space<vmem>>, vector<1x8xf32>
    %c0_11 = arith.constant 0 : index
    %c8 = arith.constant 8 : index
    %6 = vector.load %arg1[%c0_11, %c8] : memref<2x12xf32, #tpu.memory_space<vmem>>, vector<2x4xf32>
    %c0_12 = arith.constant 0 : index
    %c8_13 = arith.constant 8 : index
    %7 = vector.load %arg9[%c0_12, %c8_13] : memref<2x13xf32, #tpu.memory_space<vmem>>, vector<2x4xf32>
    tpu.vector_store %arg9[%c0_12, %c8_13], %6 {strides = array<i32>} : memref<2x13xf32, #tpu.memory_space<vmem>>, vector<2x4xf32>,
    %c0_14 = arith.constant 0 : index
    %c0_15 = arith.constant 0 : index
    %8 = vector.load %arg1[%c0_14, %c0_15] : memref<2x12xf32, #tpu.memory_space<vmem>>, vector<2x8xf32>
    %c0_16 = arith.constant 0 : index
    %c0_17 = arith.constant 0 : index
    %c0_18 = arith.constant 0 : index
    %9 = vector.load %arg8[%c0_16, %c0_17, %c0_18] : memref<18x2x8xf32, #tpu.memory_space<vmem>>, vector<1x2x8xf32>
    %10 = vector.shape_cast %9 : vector<1x2x8xf32> to vector<2x8xf32>
    %11 = vector.shape_cast %8 : vector<2x8xf32> to vector<1x2x8xf32>
    tpu.vector_store %arg8[%c0_16, %c0_17, %c0_18], %11 {strides = array<i32>} : memref<18x2x8xf32, #tpu.memory_space<vmem>>, vector<1x2x8xf32>,
    %c0_i32 = arith.constant 0 : i32
    %c17_i32 = arith.constant 17 : i32
    %12 = arith.addi %c0_i32, %c17_i32 : i32
    %c1_i32 = arith.constant 1 : i32
    %13 = scf.for %arg10 = %c0_i32 to %12 step %c1_i32 iter_args(%arg11 = %8) -> (vector<2x8xf32>)  : i32 {
      %14 = arith.index_cast %arg10 : i32 to index
      %15 = memref.load %arg0[%14] : memref<18xf32, #tpu.memory_space<smem>>
      %c1_i32_20 = arith.constant 1 : i32
      %16 = arith.addi %arg10, %c1_i32_20 : i32
      %17 = arith.index_cast %16 : i32 to index
      %18 = memref.load %arg0[%17] : memref<18xf32, #tpu.memory_space<smem>>
      %19 = arith.subf %18, %15 : f32
      %cst = arith.constant 2.500000e-01 : f32
      %20 = arith.mulf %19, %cst : f32
      %c0_i32_21 = arith.constant 0 : i32
      %21 = arith.sitofp %c0_i32_21 : i32 to f32
      %22 = arith.mulf %21, %20 : f32
      %23 = arith.addf %15, %22 : f32
      %c0_22 = arith.constant 0 : index
      %c0_23 = arith.constant 0 : index
      %24 = vector.load %arg9[%c0_22, %c0_23] : memref<2x13xf32, #tpu.memory_space<vmem>>, vector<2x8xf32>
      tpu.vector_store %arg9[%c0_22, %c0_23], %arg11 {strides = array<i32>} : memref<2x13xf32, #tpu.memory_space<vmem>>, vector<2x8xf32>,
      %25 = vector.broadcast %23 : f32 to vector<2x1xf32>
      %c0_24 = arith.constant 0 : index
      %c12 = arith.constant 12 : index
      %26 = vector.load %arg9[%c0_24, %c12] : memref<2x13xf32, #tpu.memory_space<vmem>>, vector<2x1xf32>
      tpu.vector_store %arg9[%c0_24, %c12], %25 {strides = array<i32>} : memref<2x13xf32, #tpu.memory_space<vmem>>, vector<2x1xf32>,
      %c0_25 = arith.constant 0 : index
      %c0_26 = arith.constant 0 : index
      %27 = vector.load %arg9[%c0_25, %c0_26] : memref<2x13xf32, #tpu.memory_space<vmem>>, vector<2x13xf32>
      %cst_27 = arith.constant dense<0.000000e+00> : vector<2x32xf32>
      %28 = tpu.matmul %27, %0, %cst_27 {dimension_numbers = #tpu.dot_dimension_numbers<[1], [0], [0], [1], [0, 0, 1, 1], [], []>} : vector<2x13xf32>, vector<13x32xf32>, vector<2x32xf32> -> vector<2x32xf32>
      %29 = vector.broadcast %1 : vector<1x32xf32> to vector<2x32xf32>
      %30 = arith.addf %28, %29 : vector<2x32xf32>
      %31 = math.tanh %30 : vector<2x32xf32>
      %cst_28 = arith.constant dense<0.000000e+00> : vector<2x32xf32>
      %32 = tpu.matmul %31, %2, %cst_28 {dimension_numbers = #tpu.dot_dimension_numbers<[1], [0], [0], [1], [0, 0, 1, 1], [], []>} : vector<2x32xf32>, vector<32x32xf32>, vector<2x32xf32> -> vector<2x32xf32>
      %33 = vector.broadcast %3 : vector<1x32xf32> to vector<2x32xf32>
      %34 = arith.addf %32, %33 : vector<2x32xf32>
      %35 = math.tanh %34 : vector<2x32xf32>
      %cst_29 = arith.constant dense<0.000000e+00> : vector<2x8xf32>
      %36 = tpu.matmul %35, %4, %cst_29 {dimension_numbers = #tpu.dot_dimension_numbers<[1], [0], [0], [1], [0, 0, 1, 1], [], []>} : vector<2x32xf32>, vector<32x8xf32>, vector<2x8xf32> -> vector<2x8xf32>
      %37 = vector.broadcast %5 : vector<1x8xf32> to vector<2x8xf32>
      %38 = arith.addf %36, %37 : vector<2x8xf32>
      %cst_30 = arith.constant 5.000000e-01 : f32
      %39 = arith.mulf %cst_30, %20 : f32
      %40 = vector.broadcast %39 : f32 to vector<2x8xf32>
      %41 = arith.mulf %40, %38 : vector<2x8xf32>
      %42 = arith.addf %arg11, %41 : vector<2x8xf32>
      %cst_31 = arith.constant 5.000000e-01 : f32
      %43 = arith.mulf %cst_31, %20 : f32
      %44 = arith.addf %23, %43 : f32
      %c0_32 = arith.constant 0 : index
      %c0_33 = arith.constant 0 : index
      %45 = vector.load %arg9[%c0_32, %c0_33] : memref<2x13xf32, #tpu.memory_space<vmem>>, vector<2x8xf32>
      tpu.vector_store %arg9[%c0_32, %c0_33], %42 {strides = array<i32>} : memref<2x13xf32, #tpu.memory_space<vmem>>, vector<2x8xf32>,
      %46 = vector.broadcast %44 : f32 to vector<2x1xf32>
      %c0_34 = arith.constant 0 : index
      %c12_35 = arith.constant 12 : index
      %47 = vector.load %arg9[%c0_34, %c12_35] : memref<2x13xf32, #tpu.memory_space<vmem>>, vector<2x1xf32>
      tpu.vector_store %arg9[%c0_34, %c12_35], %46 {strides = array<i32>} : memref<2x13xf32, #tpu.memory_space<vmem>>, vector<2x1xf32>,
      %c0_36 = arith.constant 0 : index
      %c0_37 = arith.constant 0 : index
      %48 = vector.load %arg9[%c0_36, %c0_37] : memref<2x13xf32, #tpu.memory_space<vmem>>, vector<2x13xf32>
      %cst_38 = arith.constant dense<0.000000e+00> : vector<2x32xf32>
      %49 = tpu.matmul %48, %0, %cst_38 {dimension_numbers = #tpu.dot_dimension_numbers<[1], [0], [0], [1], [0, 0, 1, 1], [], []>} : vector<2x13xf32>, vector<13x32xf32>, vector<2x32xf32> -> vector<2x32xf32>
      %50 = vector.broadcast %1 : vector<1x32xf32> to vector<2x32xf32>
      %51 = arith.addf %49, %50 : vector<2x32xf32>
      %52 = math.tanh %51 : vector<2x32xf32>
      %cst_39 = arith.constant dense<0.000000e+00> : vector<2x32xf32>
      %53 = tpu.matmul %52, %2, %cst_39 {dimension_numbers = #tpu.dot_dimension_numbers<[1], [0], [0], [1], [0, 0, 1, 1], [], []>} : vector<2x32xf32>, vector<32x32xf32>, vector<2x32xf32> -> vector<2x32xf32>
      %54 = vector.broadcast %3 : vector<1x32xf32> to vector<2x32xf32>
      %55 = arith.addf %53, %54 : vector<2x32xf32>
      %56 = math.tanh %55 : vector<2x32xf32>
      %cst_40 = arith.constant dense<0.000000e+00> : vector<2x8xf32>
      %57 = tpu.matmul %56, %4, %cst_40 {dimension_numbers = #tpu.dot_dimension_numbers<[1], [0], [0], [1], [0, 0, 1, 1], [], []>} : vector<2x32xf32>, vector<32x8xf32>, vector<2x8xf32> -> vector<2x8xf32>
      %58 = vector.broadcast %5 : vector<1x8xf32> to vector<2x8xf32>
      %59 = arith.addf %57, %58 : vector<2x8xf32>
      %cst_41 = arith.constant 5.000000e-01 : f32
      %60 = arith.mulf %cst_41, %20 : f32
      %61 = vector.broadcast %60 : f32 to vector<2x8xf32>
      %62 = arith.mulf %61, %59 : vector<2x8xf32>
      %63 = arith.addf %arg11, %62 : vector<2x8xf32>
      %cst_42 = arith.constant 5.000000e-01 : f32
      %64 = arith.mulf %cst_42, %20 : f32
      %65 = arith.addf %23, %64 : f32
      %c0_43 = arith.constant 0 : index
      %c0_44 = arith.constant 0 : index
      %66 = vector.load %arg9[%c0_43, %c0_44] : memref<2x13xf32, #tpu.memory_space<vmem>>, vector<2x8xf32>
      tpu.vector_store %arg9[%c0_43, %c0_44], %63 {strides = array<i32>} : memref<2x13xf32, #tpu.memory_space<vmem>>, vector<2x8xf32>,
      %67 = vector.broadcast %65 : f32 to vector<2x1xf32>
      %c0_45 = arith.constant 0 : index
      %c12_46 = arith.constant 12 : index
      %68 = vector.load %arg9[%c0_45, %c12_46] : memref<2x13xf32, #tpu.memory_space<vmem>>, vector<2x1xf32>
      tpu.vector_store %arg9[%c0_45, %c12_46], %67 {strides = array<i32>} : memref<2x13xf32, #tpu.memory_space<vmem>>, vector<2x1xf32>,
      %c0_47 = arith.constant 0 : index
      %c0_48 = arith.constant 0 : index
      %69 = vector.load %arg9[%c0_47, %c0_48] : memref<2x13xf32, #tpu.memory_space<vmem>>, vector<2x13xf32>
      %cst_49 = arith.constant dense<0.000000e+00> : vector<2x32xf32>
      %70 = tpu.matmul %69, %0, %cst_49 {dimension_numbers = #tpu.dot_dimension_numbers<[1], [0], [0], [1], [0, 0, 1, 1], [], []>} : vector<2x13xf32>, vector<13x32xf32>, vector<2x32xf32> -> vector<2x32xf32>
      %71 = vector.broadcast %1 : vector<1x32xf32> to vector<2x32xf32>
      %72 = arith.addf %70, %71 : vector<2x32xf32>
      %73 = math.tanh %72 : vector<2x32xf32>
      %cst_50 = arith.constant dense<0.000000e+00> : vector<2x32xf32>
      %74 = tpu.matmul %73, %2, %cst_50 {dimension_numbers = #tpu.dot_dimension_numbers<[1], [0], [0], [1], [0, 0, 1, 1], [], []>} : vector<2x32xf32>, vector<32x32xf32>, vector<2x32xf32> -> vector<2x32xf32>
      %75 = vector.broadcast %3 : vector<1x32xf32> to vector<2x32xf32>
      %76 = arith.addf %74, %75 : vector<2x32xf32>
      %77 = math.tanh %76 : vector<2x32xf32>
      %cst_51 = arith.constant dense<0.000000e+00> : vector<2x8xf32>
      %78 = tpu.matmul %77, %4, %cst_51 {dimension_numbers = #tpu.dot_dimension_numbers<[1], [0], [0], [1], [0, 0, 1, 1], [], []>} : vector<2x32xf32>, vector<32x8xf32>, vector<2x8xf32> -> vector<2x8xf32>
      %79 = vector.broadcast %5 : vector<1x8xf32> to vector<2x8xf32>
      %80 = arith.addf %78, %79 : vector<2x8xf32>
      %81 = vector.broadcast %20 : f32 to vector<2x8xf32>
      %82 = arith.mulf %81, %80 : vector<2x8xf32>
      %83 = arith.addf %arg11, %82 : vector<2x8xf32>
      %84 = arith.addf %23, %20 : f32
      %c0_52 = arith.constant 0 : index
      %c0_53 = arith.constant 0 : index
      %85 = vector.load %arg9[%c0_52, %c0_53] : memref<2x13xf32, #tpu.memory_space<vmem>>, vector<2x8xf32>
      tpu.vector_store %arg9[%c0_52, %c0_53], %83 {strides = array<i32>} : memref<2x13xf32, #tpu.memory_space<vmem>>, vector<2x8xf32>,
      %86 = vector.broadcast %84 : f32 to vector<2x1xf32>
      %c0_54 = arith.constant 0 : index
      %c12_55 = arith.constant 12 : index
      %87 = vector.load %arg9[%c0_54, %c12_55] : memref<2x13xf32, #tpu.memory_space<vmem>>, vector<2x1xf32>
      tpu.vector_store %arg9[%c0_54, %c12_55], %86 {strides = array<i32>} : memref<2x13xf32, #tpu.memory_space<vmem>>, vector<2x1xf32>,
      %c0_56 = arith.constant 0 : index
      %c0_57 = arith.constant 0 : index
      %88 = vector.load %arg9[%c0_56, %c0_57] : memref<2x13xf32, #tpu.memory_space<vmem>>, vector<2x13xf32>
      %cst_58 = arith.constant dense<0.000000e+00> : vector<2x32xf32>
      %89 = tpu.matmul %88, %0, %cst_58 {dimension_numbers = #tpu.dot_dimension_numbers<[1], [0], [0], [1], [0, 0, 1, 1], [], []>} : vector<2x13xf32>, vector<13x32xf32>, vector<2x32xf32> -> vector<2x32xf32>
      %90 = vector.broadcast %1 : vector<1x32xf32> to vector<2x32xf32>
      %91 = arith.addf %89, %90 : vector<2x32xf32>
      %92 = math.tanh %91 : vector<2x32xf32>
      %cst_59 = arith.constant dense<0.000000e+00> : vector<2x32xf32>
      %93 = tpu.matmul %92, %2, %cst_59 {dimension_numbers = #tpu.dot_dimension_numbers<[1], [0], [0], [1], [0, 0, 1, 1], [], []>} : vector<2x32xf32>, vector<32x32xf32>, vector<2x32xf32> -> vector<2x32xf32>
      %94 = vector.broadcast %3 : vector<1x32xf32> to vector<2x32xf32>
      %95 = arith.addf %93, %94 : vector<2x32xf32>
      %96 = math.tanh %95 : vector<2x32xf32>
      %cst_60 = arith.constant dense<0.000000e+00> : vector<2x8xf32>
      %97 = tpu.matmul %96, %4, %cst_60 {dimension_numbers = #tpu.dot_dimension_numbers<[1], [0], [0], [1], [0, 0, 1, 1], [], []>} : vector<2x32xf32>, vector<32x8xf32>, vector<2x8xf32> -> vector<2x8xf32>
      %98 = vector.broadcast %5 : vector<1x8xf32> to vector<2x8xf32>
      %99 = arith.addf %97, %98 : vector<2x8xf32>
      %cst_61 = arith.constant 6.000000e+00 : f32
      %100 = arith.divf %20, %cst_61 : f32
      %cst_62 = arith.constant 2.000000e+00 : f32
      %101 = vector.broadcast %cst_62 : f32 to vector<2x8xf32>
      %102 = arith.mulf %101, %59 : vector<2x8xf32>
      %103 = arith.addf %38, %102 : vector<2x8xf32>
      %cst_63 = arith.constant 2.000000e+00 : f32
      %104 = vector.broadcast %cst_63 : f32 to vector<2x8xf32>
      %105 = arith.mulf %104, %80 : vector<2x8xf32>
      %106 = arith.addf %103, %105 : vector<2x8xf32>
      %107 = arith.addf %106, %99 : vector<2x8xf32>
      %108 = vector.broadcast %100 : f32 to vector<2x8xf32>
      %109 = arith.mulf %108, %107 : vector<2x8xf32>
      %110 = arith.addf %arg11, %109 : vector<2x8xf32>
      %c1_i32_64 = arith.constant 1 : i32
      %111 = arith.sitofp %c1_i32_64 : i32 to f32
      %112 = arith.mulf %111, %20 : f32
      %113 = arith.addf %15, %112 : f32
      %c0_65 = arith.constant 0 : index
      %c0_66 = arith.constant 0 : index
      %114 = vector.load %arg9[%c0_65, %c0_66] : memref<2x13xf32, #tpu.memory_space<vmem>>, vector<2x8xf32>
      tpu.vector_store %arg9[%c0_65, %c0_66], %110 {strides = array<i32>} : memref<2x13xf32, #tpu.memory_space<vmem>>, vector<2x8xf32>,
      %115 = vector.broadcast %113 : f32 to vector<2x1xf32>
      %c0_67 = arith.constant 0 : index
      %c12_68 = arith.constant 12 : index
      %116 = vector.load %arg9[%c0_67, %c12_68] : memref<2x13xf32, #tpu.memory_space<vmem>>, vector<2x1xf32>
      tpu.vector_store %arg9[%c0_67, %c12_68], %115 {strides = array<i32>} : memref<2x13xf32, #tpu.memory_space<vmem>>, vector<2x1xf32>,
      %c0_69 = arith.constant 0 : index
      %c0_70 = arith.constant 0 : index
      %117 = vector.load %arg9[%c0_69, %c0_70] : memref<2x13xf32, #tpu.memory_space<vmem>>, vector<2x13xf32>
      %cst_71 = arith.constant dense<0.000000e+00> : vector<2x32xf32>
      %118 = tpu.matmul %117, %0, %cst_71 {dimension_numbers = #tpu.dot_dimension_numbers<[1], [0], [0], [1], [0, 0, 1, 1], [], []>} : vector<2x13xf32>, vector<13x32xf32>, vector<2x32xf32> -> vector<2x32xf32>
      %119 = vector.broadcast %1 : vector<1x32xf32> to vector<2x32xf32>
      %120 = arith.addf %118, %119 : vector<2x32xf32>
      %121 = math.tanh %120 : vector<2x32xf32>
      %cst_72 = arith.constant dense<0.000000e+00> : vector<2x32xf32>
      %122 = tpu.matmul %121, %2, %cst_72 {dimension_numbers = #tpu.dot_dimension_numbers<[1], [0], [0], [1], [0, 0, 1, 1], [], []>} : vector<2x32xf32>, vector<32x32xf32>, vector<2x32xf32> -> vector<2x32xf32>
      %123 = vector.broadcast %3 : vector<1x32xf32> to vector<2x32xf32>
      %124 = arith.addf %122, %123 : vector<2x32xf32>
      %125 = math.tanh %124 : vector<2x32xf32>
      %cst_73 = arith.constant dense<0.000000e+00> : vector<2x8xf32>
      %126 = tpu.matmul %125, %4, %cst_73 {dimension_numbers = #tpu.dot_dimension_numbers<[1], [0], [0], [1], [0, 0, 1, 1], [], []>} : vector<2x32xf32>, vector<32x8xf32>, vector<2x8xf32> -> vector<2x8xf32>
      %127 = vector.broadcast %5 : vector<1x8xf32> to vector<2x8xf32>
      %128 = arith.addf %126, %127 : vector<2x8xf32>
      %cst_74 = arith.constant 5.000000e-01 : f32
      %129 = arith.mulf %cst_74, %20 : f32
      %130 = vector.broadcast %129 : f32 to vector<2x8xf32>
      %131 = arith.mulf %130, %128 : vector<2x8xf32>
      %132 = arith.addf %110, %131 : vector<2x8xf32>
      %cst_75 = arith.constant 5.000000e-01 : f32
      %133 = arith.mulf %cst_75, %20 : f32
      %134 = arith.addf %113, %133 : f32
      %c0_76 = arith.constant 0 : index
      %c0_77 = arith.constant 0 : index
      %135 = vector.load %arg9[%c0_76, %c0_77] : memref<2x13xf32, #tpu.memory_space<vmem>>, vector<2x8xf32>
      tpu.vector_store %arg9[%c0_76, %c0_77], %132 {strides = array<i32>} : memref<2x13xf32, #tpu.memory_space<vmem>>, vector<2x8xf32>,
      %136 = vector.broadcast %134 : f32 to vector<2x1xf32>
      %c0_78 = arith.constant 0 : index
      %c12_79 = arith.constant 12 : index
      %137 = vector.load %arg9[%c0_78, %c12_79] : memref<2x13xf32, #tpu.memory_space<vmem>>, vector<2x1xf32>
      tpu.vector_store %arg9[%c0_78, %c12_79], %136 {strides = array<i32>} : memref<2x13xf32, #tpu.memory_space<vmem>>, vector<2x1xf32>,
      %c0_80 = arith.constant 0 : index
      %c0_81 = arith.constant 0 : index
      %138 = vector.load %arg9[%c0_80, %c0_81] : memref<2x13xf32, #tpu.memory_space<vmem>>, vector<2x13xf32>
      %cst_82 = arith.constant dense<0.000000e+00> : vector<2x32xf32>
      %139 = tpu.matmul %138, %0, %cst_82 {dimension_numbers = #tpu.dot_dimension_numbers<[1], [0], [0], [1], [0, 0, 1, 1], [], []>} : vector<2x13xf32>, vector<13x32xf32>, vector<2x32xf32> -> vector<2x32xf32>
      %140 = vector.broadcast %1 : vector<1x32xf32> to vector<2x32xf32>
      %141 = arith.addf %139, %140 : vector<2x32xf32>
      %142 = math.tanh %141 : vector<2x32xf32>
      %cst_83 = arith.constant dense<0.000000e+00> : vector<2x32xf32>
      %143 = tpu.matmul %142, %2, %cst_83 {dimension_numbers = #tpu.dot_dimension_numbers<[1], [0], [0], [1], [0, 0, 1, 1], [], []>} : vector<2x32xf32>, vector<32x32xf32>, vector<2x32xf32> -> vector<2x32xf32>
      %144 = vector.broadcast %3 : vector<1x32xf32> to vector<2x32xf32>
      %145 = arith.addf %143, %144 : vector<2x32xf32>
      %146 = math.tanh %145 : vector<2x32xf32>
      %cst_84 = arith.constant dense<0.000000e+00> : vector<2x8xf32>
      %147 = tpu.matmul %146, %4, %cst_84 {dimension_numbers = #tpu.dot_dimension_numbers<[1], [0], [0], [1], [0, 0, 1, 1], [], []>} : vector<2x32xf32>, vector<32x8xf32>, vector<2x8xf32> -> vector<2x8xf32>
      %148 = vector.broadcast %5 : vector<1x8xf32> to vector<2x8xf32>
      %149 = arith.addf %147, %148 : vector<2x8xf32>
      %cst_85 = arith.constant 5.000000e-01 : f32
      %150 = arith.mulf %cst_85, %20 : f32
      %151 = vector.broadcast %150 : f32 to vector<2x8xf32>
      %152 = arith.mulf %151, %149 : vector<2x8xf32>
      %153 = arith.addf %110, %152 : vector<2x8xf32>
      %cst_86 = arith.constant 5.000000e-01 : f32
      %154 = arith.mulf %cst_86, %20 : f32
      %155 = arith.addf %113, %154 : f32
      %c0_87 = arith.constant 0 : index
      %c0_88 = arith.constant 0 : index
      %156 = vector.load %arg9[%c0_87, %c0_88] : memref<2x13xf32, #tpu.memory_space<vmem>>, vector<2x8xf32>
      tpu.vector_store %arg9[%c0_87, %c0_88], %153 {strides = array<i32>} : memref<2x13xf32, #tpu.memory_space<vmem>>, vector<2x8xf32>,
      %157 = vector.broadcast %155 : f32 to vector<2x1xf32>
      %c0_89 = arith.constant 0 : index
      %c12_90 = arith.constant 12 : index
      %158 = vector.load %arg9[%c0_89, %c12_90] : memref<2x13xf32, #tpu.memory_space<vmem>>, vector<2x1xf32>
      tpu.vector_store %arg9[%c0_89, %c12_90], %157 {strides = array<i32>} : memref<2x13xf32, #tpu.memory_space<vmem>>, vector<2x1xf32>,
      %c0_91 = arith.constant 0 : index
      %c0_92 = arith.constant 0 : index
      %159 = vector.load %arg9[%c0_91, %c0_92] : memref<2x13xf32, #tpu.memory_space<vmem>>, vector<2x13xf32>
      %cst_93 = arith.constant dense<0.000000e+00> : vector<2x32xf32>
      %160 = tpu.matmul %159, %0, %cst_93 {dimension_numbers = #tpu.dot_dimension_numbers<[1], [0], [0], [1], [0, 0, 1, 1], [], []>} : vector<2x13xf32>, vector<13x32xf32>, vector<2x32xf32> -> vector<2x32xf32>
      %161 = vector.broadcast %1 : vector<1x32xf32> to vector<2x32xf32>
      %162 = arith.addf %160, %161 : vector<2x32xf32>
      %163 = math.tanh %162 : vector<2x32xf32>
      %cst_94 = arith.constant dense<0.000000e+00> : vector<2x32xf32>
      %164 = tpu.matmul %163, %2, %cst_94 {dimension_numbers = #tpu.dot_dimension_numbers<[1], [0], [0], [1], [0, 0, 1, 1], [], []>} : vector<2x32xf32>, vector<32x32xf32>, vector<2x32xf32> -> vector<2x32xf32>
      %165 = vector.broadcast %3 : vector<1x32xf32> to vector<2x32xf32>
      %166 = arith.addf %164, %165 : vector<2x32xf32>
      %167 = math.tanh %166 : vector<2x32xf32>
      %cst_95 = arith.constant dense<0.000000e+00> : vector<2x8xf32>
      %168 = tpu.matmul %167, %4, %cst_95 {dimension_numbers = #tpu.dot_dimension_numbers<[1], [0], [0], [1], [0, 0, 1, 1], [], []>} : vector<2x32xf32>, vector<32x8xf32>, vector<2x8xf32> -> vector<2x8xf32>
      %169 = vector.broadcast %5 : vector<1x8xf32> to vector<2x8xf32>
      %170 = arith.addf %168, %169 : vector<2x8xf32>
      %171 = vector.broadcast %20 : f32 to vector<2x8xf32>
      %172 = arith.mulf %171, %170 : vector<2x8xf32>
      %173 = arith.addf %110, %172 : vector<2x8xf32>
      %174 = arith.addf %113, %20 : f32
      %c0_96 = arith.constant 0 : index
      %c0_97 = arith.constant 0 : index
      %175 = vector.load %arg9[%c0_96, %c0_97] : memref<2x13xf32, #tpu.memory_space<vmem>>, vector<2x8xf32>
      tpu.vector_store %arg9[%c0_96, %c0_97], %173 {strides = array<i32>} : memref<2x13xf32, #tpu.memory_space<vmem>>, vector<2x8xf32>,
      %176 = vector.broadcast %174 : f32 to vector<2x1xf32>
      %c0_98 = arith.constant 0 : index
      %c12_99 = arith.constant 12 : index
      %177 = vector.load %arg9[%c0_98, %c12_99] : memref<2x13xf32, #tpu.memory_space<vmem>>, vector<2x1xf32>
      tpu.vector_store %arg9[%c0_98, %c12_99], %176 {strides = array<i32>} : memref<2x13xf32, #tpu.memory_space<vmem>>, vector<2x1xf32>,
      %c0_100 = arith.constant 0 : index
      %c0_101 = arith.constant 0 : index
      %178 = vector.load %arg9[%c0_100, %c0_101] : memref<2x13xf32, #tpu.memory_space<vmem>>, vector<2x13xf32>
      %cst_102 = arith.constant dense<0.000000e+00> : vector<2x32xf32>
      %179 = tpu.matmul %178, %0, %cst_102 {dimension_numbers = #tpu.dot_dimension_numbers<[1], [0], [0], [1], [0, 0, 1, 1], [], []>} : vector<2x13xf32>, vector<13x32xf32>, vector<2x32xf32> -> vector<2x32xf32>
      %180 = vector.broadcast %1 : vector<1x32xf32> to vector<2x32xf32>
      %181 = arith.addf %179, %180 : vector<2x32xf32>
      %182 = math.tanh %181 : vector<2x32xf32>
      %cst_103 = arith.constant dense<0.000000e+00> : vector<2x32xf32>
      %183 = tpu.matmul %182, %2, %cst_103 {dimension_numbers = #tpu.dot_dimension_numbers<[1], [0], [0], [1], [0, 0, 1, 1], [], []>} : vector<2x32xf32>, vector<32x32xf32>, vector<2x32xf32> -> vector<2x32xf32>
      %184 = vector.broadcast %3 : vector<1x32xf32> to vector<2x32xf32>
      %185 = arith.addf %183, %184 : vector<2x32xf32>
      %186 = math.tanh %185 : vector<2x32xf32>
      %cst_104 = arith.constant dense<0.000000e+00> : vector<2x8xf32>
      %187 = tpu.matmul %186, %4, %cst_104 {dimension_numbers = #tpu.dot_dimension_numbers<[1], [0], [0], [1], [0, 0, 1, 1], [], []>} : vector<2x32xf32>, vector<32x8xf32>, vector<2x8xf32> -> vector<2x8xf32>
      %188 = vector.broadcast %5 : vector<1x8xf32> to vector<2x8xf32>
      %189 = arith.addf %187, %188 : vector<2x8xf32>
      %cst_105 = arith.constant 6.000000e+00 : f32
      %190 = arith.divf %20, %cst_105 : f32
      %cst_106 = arith.constant 2.000000e+00 : f32
      %191 = vector.broadcast %cst_106 : f32 to vector<2x8xf32>
      %192 = arith.mulf %191, %149 : vector<2x8xf32>
      %193 = arith.addf %128, %192 : vector<2x8xf32>
      %cst_107 = arith.constant 2.000000e+00 : f32
      %194 = vector.broadcast %cst_107 : f32 to vector<2x8xf32>
      %195 = arith.mulf %194, %170 : vector<2x8xf32>
      %196 = arith.addf %193, %195 : vector<2x8xf32>
      %197 = arith.addf %196, %189 : vector<2x8xf32>
      %198 = vector.broadcast %190 : f32 to vector<2x8xf32>
      %199 = arith.mulf %198, %197 : vector<2x8xf32>
      %200 = arith.addf %110, %199 : vector<2x8xf32>
      %c2_i32 = arith.constant 2 : i32
      %201 = arith.sitofp %c2_i32 : i32 to f32
      %202 = arith.mulf %201, %20 : f32
      %203 = arith.addf %15, %202 : f32
      %c0_108 = arith.constant 0 : index
      %c0_109 = arith.constant 0 : index
      %204 = vector.load %arg9[%c0_108, %c0_109] : memref<2x13xf32, #tpu.memory_space<vmem>>, vector<2x8xf32>
      tpu.vector_store %arg9[%c0_108, %c0_109], %200 {strides = array<i32>} : memref<2x13xf32, #tpu.memory_space<vmem>>, vector<2x8xf32>,
      %205 = vector.broadcast %203 : f32 to vector<2x1xf32>
      %c0_110 = arith.constant 0 : index
      %c12_111 = arith.constant 12 : index
      %206 = vector.load %arg9[%c0_110, %c12_111] : memref<2x13xf32, #tpu.memory_space<vmem>>, vector<2x1xf32>
      tpu.vector_store %arg9[%c0_110, %c12_111], %205 {strides = array<i32>} : memref<2x13xf32, #tpu.memory_space<vmem>>, vector<2x1xf32>,
      %c0_112 = arith.constant 0 : index
      %c0_113 = arith.constant 0 : index
      %207 = vector.load %arg9[%c0_112, %c0_113] : memref<2x13xf32, #tpu.memory_space<vmem>>, vector<2x13xf32>
      %cst_114 = arith.constant dense<0.000000e+00> : vector<2x32xf32>
      %208 = tpu.matmul %207, %0, %cst_114 {dimension_numbers = #tpu.dot_dimension_numbers<[1], [0], [0], [1], [0, 0, 1, 1], [], []>} : vector<2x13xf32>, vector<13x32xf32>, vector<2x32xf32> -> vector<2x32xf32>
      %209 = vector.broadcast %1 : vector<1x32xf32> to vector<2x32xf32>
      %210 = arith.addf %208, %209 : vector<2x32xf32>
      %211 = math.tanh %210 : vector<2x32xf32>
      %cst_115 = arith.constant dense<0.000000e+00> : vector<2x32xf32>
      %212 = tpu.matmul %211, %2, %cst_115 {dimension_numbers = #tpu.dot_dimension_numbers<[1], [0], [0], [1], [0, 0, 1, 1], [], []>} : vector<2x32xf32>, vector<32x32xf32>, vector<2x32xf32> -> vector<2x32xf32>
      %213 = vector.broadcast %3 : vector<1x32xf32> to vector<2x32xf32>
      %214 = arith.addf %212, %213 : vector<2x32xf32>
      %215 = math.tanh %214 : vector<2x32xf32>
      %cst_116 = arith.constant dense<0.000000e+00> : vector<2x8xf32>
      %216 = tpu.matmul %215, %4, %cst_116 {dimension_numbers = #tpu.dot_dimension_numbers<[1], [0], [0], [1], [0, 0, 1, 1], [], []>} : vector<2x32xf32>, vector<32x8xf32>, vector<2x8xf32> -> vector<2x8xf32>
      %217 = vector.broadcast %5 : vector<1x8xf32> to vector<2x8xf32>
      %218 = arith.addf %216, %217 : vector<2x8xf32>
      %cst_117 = arith.constant 5.000000e-01 : f32
      %219 = arith.mulf %cst_117, %20 : f32
      %220 = vector.broadcast %219 : f32 to vector<2x8xf32>
      %221 = arith.mulf %220, %218 : vector<2x8xf32>
      %222 = arith.addf %200, %221 : vector<2x8xf32>
      %cst_118 = arith.constant 5.000000e-01 : f32
      %223 = arith.mulf %cst_118, %20 : f32
      %224 = arith.addf %203, %223 : f32
      %c0_119 = arith.constant 0 : index
      %c0_120 = arith.constant 0 : index
      %225 = vector.load %arg9[%c0_119, %c0_120] : memref<2x13xf32, #tpu.memory_space<vmem>>, vector<2x8xf32>
      tpu.vector_store %arg9[%c0_119, %c0_120], %222 {strides = array<i32>} : memref<2x13xf32, #tpu.memory_space<vmem>>, vector<2x8xf32>,
      %226 = vector.broadcast %224 : f32 to vector<2x1xf32>
      %c0_121 = arith.constant 0 : index
      %c12_122 = arith.constant 12 : index
      %227 = vector.load %arg9[%c0_121, %c12_122] : memref<2x13xf32, #tpu.memory_space<vmem>>, vector<2x1xf32>
      tpu.vector_store %arg9[%c0_121, %c12_122], %226 {strides = array<i32>} : memref<2x13xf32, #tpu.memory_space<vmem>>, vector<2x1xf32>,
      %c0_123 = arith.constant 0 : index
      %c0_124 = arith.constant 0 : index
      %228 = vector.load %arg9[%c0_123, %c0_124] : memref<2x13xf32, #tpu.memory_space<vmem>>, vector<2x13xf32>
      %cst_125 = arith.constant dense<0.000000e+00> : vector<2x32xf32>
      %229 = tpu.matmul %228, %0, %cst_125 {dimension_numbers = #tpu.dot_dimension_numbers<[1], [0], [0], [1], [0, 0, 1, 1], [], []>} : vector<2x13xf32>, vector<13x32xf32>, vector<2x32xf32> -> vector<2x32xf32>
      %230 = vector.broadcast %1 : vector<1x32xf32> to vector<2x32xf32>
      %231 = arith.addf %229, %230 : vector<2x32xf32>
      %232 = math.tanh %231 : vector<2x32xf32>
      %cst_126 = arith.constant dense<0.000000e+00> : vector<2x32xf32>
      %233 = tpu.matmul %232, %2, %cst_126 {dimension_numbers = #tpu.dot_dimension_numbers<[1], [0], [0], [1], [0, 0, 1, 1], [], []>} : vector<2x32xf32>, vector<32x32xf32>, vector<2x32xf32> -> vector<2x32xf32>
      %234 = vector.broadcast %3 : vector<1x32xf32> to vector<2x32xf32>
      %235 = arith.addf %233, %234 : vector<2x32xf32>
      %236 = math.tanh %235 : vector<2x32xf32>
      %cst_127 = arith.constant dense<0.000000e+00> : vector<2x8xf32>
      %237 = tpu.matmul %236, %4, %cst_127 {dimension_numbers = #tpu.dot_dimension_numbers<[1], [0], [0], [1], [0, 0, 1, 1], [], []>} : vector<2x32xf32>, vector<32x8xf32>, vector<2x8xf32> -> vector<2x8xf32>
      %238 = vector.broadcast %5 : vector<1x8xf32> to vector<2x8xf32>
      %239 = arith.addf %237, %238 : vector<2x8xf32>
      %cst_128 = arith.constant 5.000000e-01 : f32
      %240 = arith.mulf %cst_128, %20 : f32
      %241 = vector.broadcast %240 : f32 to vector<2x8xf32>
      %242 = arith.mulf %241, %239 : vector<2x8xf32>
      %243 = arith.addf %200, %242 : vector<2x8xf32>
      %cst_129 = arith.constant 5.000000e-01 : f32
      %244 = arith.mulf %cst_129, %20 : f32
      %245 = arith.addf %203, %244 : f32
      %c0_130 = arith.constant 0 : index
      %c0_131 = arith.constant 0 : index
      %246 = vector.load %arg9[%c0_130, %c0_131] : memref<2x13xf32, #tpu.memory_space<vmem>>, vector<2x8xf32>
      tpu.vector_store %arg9[%c0_130, %c0_131], %243 {strides = array<i32>} : memref<2x13xf32, #tpu.memory_space<vmem>>, vector<2x8xf32>,
      %247 = vector.broadcast %245 : f32 to vector<2x1xf32>
      %c0_132 = arith.constant 0 : index
      %c12_133 = arith.constant 12 : index
      %248 = vector.load %arg9[%c0_132, %c12_133] : memref<2x13xf32, #tpu.memory_space<vmem>>, vector<2x1xf32>
      tpu.vector_store %arg9[%c0_132, %c12_133], %247 {strides = array<i32>} : memref<2x13xf32, #tpu.memory_space<vmem>>, vector<2x1xf32>,
      %c0_134 = arith.constant 0 : index
      %c0_135 = arith.constant 0 : index
      %249 = vector.load %arg9[%c0_134, %c0_135] : memref<2x13xf32, #tpu.memory_space<vmem>>, vector<2x13xf32>
      %cst_136 = arith.constant dense<0.000000e+00> : vector<2x32xf32>
      %250 = tpu.matmul %249, %0, %cst_136 {dimension_numbers = #tpu.dot_dimension_numbers<[1], [0], [0], [1], [0, 0, 1, 1], [], []>} : vector<2x13xf32>, vector<13x32xf32>, vector<2x32xf32> -> vector<2x32xf32>
      %251 = vector.broadcast %1 : vector<1x32xf32> to vector<2x32xf32>
      %252 = arith.addf %250, %251 : vector<2x32xf32>
      %253 = math.tanh %252 : vector<2x32xf32>
      %cst_137 = arith.constant dense<0.000000e+00> : vector<2x32xf32>
      %254 = tpu.matmul %253, %2, %cst_137 {dimension_numbers = #tpu.dot_dimension_numbers<[1], [0], [0], [1], [0, 0, 1, 1], [], []>} : vector<2x32xf32>, vector<32x32xf32>, vector<2x32xf32> -> vector<2x32xf32>
      %255 = vector.broadcast %3 : vector<1x32xf32> to vector<2x32xf32>
      %256 = arith.addf %254, %255 : vector<2x32xf32>
      %257 = math.tanh %256 : vector<2x32xf32>
      %cst_138 = arith.constant dense<0.000000e+00> : vector<2x8xf32>
      %258 = tpu.matmul %257, %4, %cst_138 {dimension_numbers = #tpu.dot_dimension_numbers<[1], [0], [0], [1], [0, 0, 1, 1], [], []>} : vector<2x32xf32>, vector<32x8xf32>, vector<2x8xf32> -> vector<2x8xf32>
      %259 = vector.broadcast %5 : vector<1x8xf32> to vector<2x8xf32>
      %260 = arith.addf %258, %259 : vector<2x8xf32>
      %261 = vector.broadcast %20 : f32 to vector<2x8xf32>
      %262 = arith.mulf %261, %260 : vector<2x8xf32>
      %263 = arith.addf %200, %262 : vector<2x8xf32>
      %264 = arith.addf %203, %20 : f32
      %c0_139 = arith.constant 0 : index
      %c0_140 = arith.constant 0 : index
      %265 = vector.load %arg9[%c0_139, %c0_140] : memref<2x13xf32, #tpu.memory_space<vmem>>, vector<2x8xf32>
      tpu.vector_store %arg9[%c0_139, %c0_140], %263 {strides = array<i32>} : memref<2x13xf32, #tpu.memory_space<vmem>>, vector<2x8xf32>,
      %266 = vector.broadcast %264 : f32 to vector<2x1xf32>
      %c0_141 = arith.constant 0 : index
      %c12_142 = arith.constant 12 : index
      %267 = vector.load %arg9[%c0_141, %c12_142] : memref<2x13xf32, #tpu.memory_space<vmem>>, vector<2x1xf32>
      tpu.vector_store %arg9[%c0_141, %c12_142], %266 {strides = array<i32>} : memref<2x13xf32, #tpu.memory_space<vmem>>, vector<2x1xf32>,
      %c0_143 = arith.constant 0 : index
      %c0_144 = arith.constant 0 : index
      %268 = vector.load %arg9[%c0_143, %c0_144] : memref<2x13xf32, #tpu.memory_space<vmem>>, vector<2x13xf32>
      %cst_145 = arith.constant dense<0.000000e+00> : vector<2x32xf32>
      %269 = tpu.matmul %268, %0, %cst_145 {dimension_numbers = #tpu.dot_dimension_numbers<[1], [0], [0], [1], [0, 0, 1, 1], [], []>} : vector<2x13xf32>, vector<13x32xf32>, vector<2x32xf32> -> vector<2x32xf32>
      %270 = vector.broadcast %1 : vector<1x32xf32> to vector<2x32xf32>
      %271 = arith.addf %269, %270 : vector<2x32xf32>
      %272 = math.tanh %271 : vector<2x32xf32>
      %cst_146 = arith.constant dense<0.000000e+00> : vector<2x32xf32>
      %273 = tpu.matmul %272, %2, %cst_146 {dimension_numbers = #tpu.dot_dimension_numbers<[1], [0], [0], [1], [0, 0, 1, 1], [], []>} : vector<2x32xf32>, vector<32x32xf32>, vector<2x32xf32> -> vector<2x32xf32>
      %274 = vector.broadcast %3 : vector<1x32xf32> to vector<2x32xf32>
      %275 = arith.addf %273, %274 : vector<2x32xf32>
      %276 = math.tanh %275 : vector<2x32xf32>
      %cst_147 = arith.constant dense<0.000000e+00> : vector<2x8xf32>
      %277 = tpu.matmul %276, %4, %cst_147 {dimension_numbers = #tpu.dot_dimension_numbers<[1], [0], [0], [1], [0, 0, 1, 1], [], []>} : vector<2x32xf32>, vector<32x8xf32>, vector<2x8xf32> -> vector<2x8xf32>
      %278 = vector.broadcast %5 : vector<1x8xf32> to vector<2x8xf32>
      %279 = arith.addf %277, %278 : vector<2x8xf32>
      %cst_148 = arith.constant 6.000000e+00 : f32
      %280 = arith.divf %20, %cst_148 : f32
      %cst_149 = arith.constant 2.000000e+00 : f32
      %281 = vector.broadcast %cst_149 : f32 to vector<2x8xf32>
      %282 = arith.mulf %281, %239 : vector<2x8xf32>
      %283 = arith.addf %218, %282 : vector<2x8xf32>
      %cst_150 = arith.constant 2.000000e+00 : f32
      %284 = vector.broadcast %cst_150 : f32 to vector<2x8xf32>
      %285 = arith.mulf %284, %260 : vector<2x8xf32>
      %286 = arith.addf %283, %285 : vector<2x8xf32>
      %287 = arith.addf %286, %279 : vector<2x8xf32>
      %288 = vector.broadcast %280 : f32 to vector<2x8xf32>
      %289 = arith.mulf %288, %287 : vector<2x8xf32>
      %290 = arith.addf %200, %289 : vector<2x8xf32>
      %c3_i32 = arith.constant 3 : i32
      %291 = arith.sitofp %c3_i32 : i32 to f32
      %292 = arith.mulf %291, %20 : f32
      %293 = arith.addf %15, %292 : f32
      %c0_151 = arith.constant 0 : index
      %c0_152 = arith.constant 0 : index
      %294 = vector.load %arg9[%c0_151, %c0_152] : memref<2x13xf32, #tpu.memory_space<vmem>>, vector<2x8xf32>
      tpu.vector_store %arg9[%c0_151, %c0_152], %290 {strides = array<i32>} : memref<2x13xf32, #tpu.memory_space<vmem>>, vector<2x8xf32>,
      %295 = vector.broadcast %293 : f32 to vector<2x1xf32>
      %c0_153 = arith.constant 0 : index
      %c12_154 = arith.constant 12 : index
      %296 = vector.load %arg9[%c0_153, %c12_154] : memref<2x13xf32, #tpu.memory_space<vmem>>, vector<2x1xf32>
      tpu.vector_store %arg9[%c0_153, %c12_154], %295 {strides = array<i32>} : memref<2x13xf32, #tpu.memory_space<vmem>>, vector<2x1xf32>,
      %c0_155 = arith.constant 0 : index
      %c0_156 = arith.constant 0 : index
      %297 = vector.load %arg9[%c0_155, %c0_156] : memref<2x13xf32, #tpu.memory_space<vmem>>, vector<2x13xf32>
      %cst_157 = arith.constant dense<0.000000e+00> : vector<2x32xf32>
      %298 = tpu.matmul %297, %0, %cst_157 {dimension_numbers = #tpu.dot_dimension_numbers<[1], [0], [0], [1], [0, 0, 1, 1], [], []>} : vector<2x13xf32>, vector<13x32xf32>, vector<2x32xf32> -> vector<2x32xf32>
      %299 = vector.broadcast %1 : vector<1x32xf32> to vector<2x32xf32>
      %300 = arith.addf %298, %299 : vector<2x32xf32>
      %301 = math.tanh %300 : vector<2x32xf32>
      %cst_158 = arith.constant dense<0.000000e+00> : vector<2x32xf32>
      %302 = tpu.matmul %301, %2, %cst_158 {dimension_numbers = #tpu.dot_dimension_numbers<[1], [0], [0], [1], [0, 0, 1, 1], [], []>} : vector<2x32xf32>, vector<32x32xf32>, vector<2x32xf32> -> vector<2x32xf32>
      %303 = vector.broadcast %3 : vector<1x32xf32> to vector<2x32xf32>
      %304 = arith.addf %302, %303 : vector<2x32xf32>
      %305 = math.tanh %304 : vector<2x32xf32>
      %cst_159 = arith.constant dense<0.000000e+00> : vector<2x8xf32>
      %306 = tpu.matmul %305, %4, %cst_159 {dimension_numbers = #tpu.dot_dimension_numbers<[1], [0], [0], [1], [0, 0, 1, 1], [], []>} : vector<2x32xf32>, vector<32x8xf32>, vector<2x8xf32> -> vector<2x8xf32>
      %307 = vector.broadcast %5 : vector<1x8xf32> to vector<2x8xf32>
      %308 = arith.addf %306, %307 : vector<2x8xf32>
      %cst_160 = arith.constant 5.000000e-01 : f32
      %309 = arith.mulf %cst_160, %20 : f32
      %310 = vector.broadcast %309 : f32 to vector<2x8xf32>
      %311 = arith.mulf %310, %308 : vector<2x8xf32>
      %312 = arith.addf %290, %311 : vector<2x8xf32>
      %cst_161 = arith.constant 5.000000e-01 : f32
      %313 = arith.mulf %cst_161, %20 : f32
      %314 = arith.addf %293, %313 : f32
      %c0_162 = arith.constant 0 : index
      %c0_163 = arith.constant 0 : index
      %315 = vector.load %arg9[%c0_162, %c0_163] : memref<2x13xf32, #tpu.memory_space<vmem>>, vector<2x8xf32>
      tpu.vector_store %arg9[%c0_162, %c0_163], %312 {strides = array<i32>} : memref<2x13xf32, #tpu.memory_space<vmem>>, vector<2x8xf32>,
      %316 = vector.broadcast %314 : f32 to vector<2x1xf32>
      %c0_164 = arith.constant 0 : index
      %c12_165 = arith.constant 12 : index
      %317 = vector.load %arg9[%c0_164, %c12_165] : memref<2x13xf32, #tpu.memory_space<vmem>>, vector<2x1xf32>
      tpu.vector_store %arg9[%c0_164, %c12_165], %316 {strides = array<i32>} : memref<2x13xf32, #tpu.memory_space<vmem>>, vector<2x1xf32>,
      %c0_166 = arith.constant 0 : index
      %c0_167 = arith.constant 0 : index
      %318 = vector.load %arg9[%c0_166, %c0_167] : memref<2x13xf32, #tpu.memory_space<vmem>>, vector<2x13xf32>
      %cst_168 = arith.constant dense<0.000000e+00> : vector<2x32xf32>
      %319 = tpu.matmul %318, %0, %cst_168 {dimension_numbers = #tpu.dot_dimension_numbers<[1], [0], [0], [1], [0, 0, 1, 1], [], []>} : vector<2x13xf32>, vector<13x32xf32>, vector<2x32xf32> -> vector<2x32xf32>
      %320 = vector.broadcast %1 : vector<1x32xf32> to vector<2x32xf32>
      %321 = arith.addf %319, %320 : vector<2x32xf32>
      %322 = math.tanh %321 : vector<2x32xf32>
      %cst_169 = arith.constant dense<0.000000e+00> : vector<2x32xf32>
      %323 = tpu.matmul %322, %2, %cst_169 {dimension_numbers = #tpu.dot_dimension_numbers<[1], [0], [0], [1], [0, 0, 1, 1], [], []>} : vector<2x32xf32>, vector<32x32xf32>, vector<2x32xf32> -> vector<2x32xf32>
      %324 = vector.broadcast %3 : vector<1x32xf32> to vector<2x32xf32>
      %325 = arith.addf %323, %324 : vector<2x32xf32>
      %326 = math.tanh %325 : vector<2x32xf32>
      %cst_170 = arith.constant dense<0.000000e+00> : vector<2x8xf32>
      %327 = tpu.matmul %326, %4, %cst_170 {dimension_numbers = #tpu.dot_dimension_numbers<[1], [0], [0], [1], [0, 0, 1, 1], [], []>} : vector<2x32xf32>, vector<32x8xf32>, vector<2x8xf32> -> vector<2x8xf32>
      %328 = vector.broadcast %5 : vector<1x8xf32> to vector<2x8xf32>
      %329 = arith.addf %327, %328 : vector<2x8xf32>
      %cst_171 = arith.constant 5.000000e-01 : f32
      %330 = arith.mulf %cst_171, %20 : f32
      %331 = vector.broadcast %330 : f32 to vector<2x8xf32>
      %332 = arith.mulf %331, %329 : vector<2x8xf32>
      %333 = arith.addf %290, %332 : vector<2x8xf32>
      %cst_172 = arith.constant 5.000000e-01 : f32
      %334 = arith.mulf %cst_172, %20 : f32
      %335 = arith.addf %293, %334 : f32
      %c0_173 = arith.constant 0 : index
      %c0_174 = arith.constant 0 : index
      %336 = vector.load %arg9[%c0_173, %c0_174] : memref<2x13xf32, #tpu.memory_space<vmem>>, vector<2x8xf32>
      tpu.vector_store %arg9[%c0_173, %c0_174], %333 {strides = array<i32>} : memref<2x13xf32, #tpu.memory_space<vmem>>, vector<2x8xf32>,
      %337 = vector.broadcast %335 : f32 to vector<2x1xf32>
      %c0_175 = arith.constant 0 : index
      %c12_176 = arith.constant 12 : index
      %338 = vector.load %arg9[%c0_175, %c12_176] : memref<2x13xf32, #tpu.memory_space<vmem>>, vector<2x1xf32>
      tpu.vector_store %arg9[%c0_175, %c12_176], %337 {strides = array<i32>} : memref<2x13xf32, #tpu.memory_space<vmem>>, vector<2x1xf32>,
      %c0_177 = arith.constant 0 : index
      %c0_178 = arith.constant 0 : index
      %339 = vector.load %arg9[%c0_177, %c0_178] : memref<2x13xf32, #tpu.memory_space<vmem>>, vector<2x13xf32>
      %cst_179 = arith.constant dense<0.000000e+00> : vector<2x32xf32>
      %340 = tpu.matmul %339, %0, %cst_179 {dimension_numbers = #tpu.dot_dimension_numbers<[1], [0], [0], [1], [0, 0, 1, 1], [], []>} : vector<2x13xf32>, vector<13x32xf32>, vector<2x32xf32> -> vector<2x32xf32>
      %341 = vector.broadcast %1 : vector<1x32xf32> to vector<2x32xf32>
      %342 = arith.addf %340, %341 : vector<2x32xf32>
      %343 = math.tanh %342 : vector<2x32xf32>
      %cst_180 = arith.constant dense<0.000000e+00> : vector<2x32xf32>
      %344 = tpu.matmul %343, %2, %cst_180 {dimension_numbers = #tpu.dot_dimension_numbers<[1], [0], [0], [1], [0, 0, 1, 1], [], []>} : vector<2x32xf32>, vector<32x32xf32>, vector<2x32xf32> -> vector<2x32xf32>
      %345 = vector.broadcast %3 : vector<1x32xf32> to vector<2x32xf32>
      %346 = arith.addf %344, %345 : vector<2x32xf32>
      %347 = math.tanh %346 : vector<2x32xf32>
      %cst_181 = arith.constant dense<0.000000e+00> : vector<2x8xf32>
      %348 = tpu.matmul %347, %4, %cst_181 {dimension_numbers = #tpu.dot_dimension_numbers<[1], [0], [0], [1], [0, 0, 1, 1], [], []>} : vector<2x32xf32>, vector<32x8xf32>, vector<2x8xf32> -> vector<2x8xf32>
      %349 = vector.broadcast %5 : vector<1x8xf32> to vector<2x8xf32>
      %350 = arith.addf %348, %349 : vector<2x8xf32>
      %351 = vector.broadcast %20 : f32 to vector<2x8xf32>
      %352 = arith.mulf %351, %350 : vector<2x8xf32>
      %353 = arith.addf %290, %352 : vector<2x8xf32>
      %354 = arith.addf %293, %20 : f32
      %c0_182 = arith.constant 0 : index
      %c0_183 = arith.constant 0 : index
      %355 = vector.load %arg9[%c0_182, %c0_183] : memref<2x13xf32, #tpu.memory_space<vmem>>, vector<2x8xf32>
      tpu.vector_store %arg9[%c0_182, %c0_183], %353 {strides = array<i32>} : memref<2x13xf32, #tpu.memory_space<vmem>>, vector<2x8xf32>,
      %356 = vector.broadcast %354 : f32 to vector<2x1xf32>
      %c0_184 = arith.constant 0 : index
      %c12_185 = arith.constant 12 : index
      %357 = vector.load %arg9[%c0_184, %c12_185] : memref<2x13xf32, #tpu.memory_space<vmem>>, vector<2x1xf32>
      tpu.vector_store %arg9[%c0_184, %c12_185], %356 {strides = array<i32>} : memref<2x13xf32, #tpu.memory_space<vmem>>, vector<2x1xf32>,
      %c0_186 = arith.constant 0 : index
      %c0_187 = arith.constant 0 : index
      %358 = vector.load %arg9[%c0_186, %c0_187] : memref<2x13xf32, #tpu.memory_space<vmem>>, vector<2x13xf32>
      %cst_188 = arith.constant dense<0.000000e+00> : vector<2x32xf32>
      %359 = tpu.matmul %358, %0, %cst_188 {dimension_numbers = #tpu.dot_dimension_numbers<[1], [0], [0], [1], [0, 0, 1, 1], [], []>} : vector<2x13xf32>, vector<13x32xf32>, vector<2x32xf32> -> vector<2x32xf32>
      %360 = vector.broadcast %1 : vector<1x32xf32> to vector<2x32xf32>
      %361 = arith.addf %359, %360 : vector<2x32xf32>
      %362 = math.tanh %361 : vector<2x32xf32>
      %cst_189 = arith.constant dense<0.000000e+00> : vector<2x32xf32>
      %363 = tpu.matmul %362, %2, %cst_189 {dimension_numbers = #tpu.dot_dimension_numbers<[1], [0], [0], [1], [0, 0, 1, 1], [], []>} : vector<2x32xf32>, vector<32x32xf32>, vector<2x32xf32> -> vector<2x32xf32>
      %364 = vector.broadcast %3 : vector<1x32xf32> to vector<2x32xf32>
      %365 = arith.addf %363, %364 : vector<2x32xf32>
      %366 = math.tanh %365 : vector<2x32xf32>
      %cst_190 = arith.constant dense<0.000000e+00> : vector<2x8xf32>
      %367 = tpu.matmul %366, %4, %cst_190 {dimension_numbers = #tpu.dot_dimension_numbers<[1], [0], [0], [1], [0, 0, 1, 1], [], []>} : vector<2x32xf32>, vector<32x8xf32>, vector<2x8xf32> -> vector<2x8xf32>
      %368 = vector.broadcast %5 : vector<1x8xf32> to vector<2x8xf32>
      %369 = arith.addf %367, %368 : vector<2x8xf32>
      %cst_191 = arith.constant 6.000000e+00 : f32
      %370 = arith.divf %20, %cst_191 : f32
      %cst_192 = arith.constant 2.000000e+00 : f32
      %371 = vector.broadcast %cst_192 : f32 to vector<2x8xf32>
      %372 = arith.mulf %371, %329 : vector<2x8xf32>
      %373 = arith.addf %308, %372 : vector<2x8xf32>
      %cst_193 = arith.constant 2.000000e+00 : f32
      %374 = vector.broadcast %cst_193 : f32 to vector<2x8xf32>
      %375 = arith.mulf %374, %350 : vector<2x8xf32>
      %376 = arith.addf %373, %375 : vector<2x8xf32>
      %377 = arith.addf %376, %369 : vector<2x8xf32>
      %378 = vector.broadcast %370 : f32 to vector<2x8xf32>
      %379 = arith.mulf %378, %377 : vector<2x8xf32>
      %380 = arith.addf %290, %379 : vector<2x8xf32>
      %c4_i32 = arith.constant 4 : i32
      %c1_i32_194 = arith.constant 1 : i32
      %381 = arith.addi %arg10, %c1_i32_194 : i32
      %382 = arith.index_cast %381 : i32 to index
      %c0_195 = arith.constant 0 : index
      %c0_196 = arith.constant 0 : index
      %383 = vector.load %arg8[%382, %c0_195, %c0_196] : memref<18x2x8xf32, #tpu.memory_space<vmem>>, vector<1x2x8xf32>
      %384 = vector.shape_cast %383 : vector<1x2x8xf32> to vector<2x8xf32>
      %385 = vector.shape_cast %380 : vector<2x8xf32> to vector<1x2x8xf32>
      tpu.vector_store %arg8[%382, %c0_195, %c0_196], %385 {strides = array<i32>} : memref<18x2x8xf32, #tpu.memory_space<vmem>>, vector<1x2x8xf32>,
      scf.yield %380 : vector<2x8xf32>
    }
    %c17_i32_19 = arith.constant 17 : i32
    return
  }
}

module attributes {stable_mosaic.version = 11 : i64} {
  func.func @_decoder_p_kernel(%arg0: memref<16x13xf32, #tpu.memory_space<vmem>>, %arg1: memref<13x6xf32, #tpu.memory_space<vmem>>, %arg2: memref<1x6xf32, #tpu.memory_space<vmem>>, %arg3: memref<16x6xf32, #tpu.memory_space<vmem>>) attributes {dimension_semantics = [], scalar_prefetch = 0 : i64, scratch_operands = 0 : i64, tpu.core_type = #tpu.core_type<tc>} {
    %c0 = arith.constant 0 : index
    %c0_0 = arith.constant 0 : index
    %0 = vector.load %arg0[%c0, %c0_0] : memref<16x13xf32, #tpu.memory_space<vmem>>, vector<16x13xf32>
    %c0_1 = arith.constant 0 : index
    %c0_2 = arith.constant 0 : index
    %1 = vector.load %arg1[%c0_1, %c0_2] : memref<13x6xf32, #tpu.memory_space<vmem>>, vector<13x6xf32>
    %cst = arith.constant dense<0.000000e+00> : vector<16x6xf32>
    %2 = tpu.matmul %0, %1, %cst {dimension_numbers = #tpu.dot_dimension_numbers<[1], [0], [0], [1], [0, 0, 1, 1], [], []>} : vector<16x13xf32>, vector<13x6xf32>, vector<16x6xf32> -> vector<16x6xf32>
    %c0_3 = arith.constant 0 : index
    %c0_4 = arith.constant 0 : index
    %3 = vector.load %arg2[%c0_3, %c0_4] : memref<1x6xf32, #tpu.memory_space<vmem>>, vector<1x6xf32>
    %4 = vector.broadcast %3 : vector<1x6xf32> to vector<16x6xf32>
    %5 = arith.addf %2, %4 : vector<16x6xf32>
    %6 = tpu.iota {dimensions = array<i32: 1>} : vector<16x6xi32>
    %c3_i32 = arith.constant 3 : i32
    %7 = vector.broadcast %c3_i32 : i32 to vector<16x6xi32>
    %8 = arith.cmpi slt, %6, %7 : vector<16x6xi32>
    %cst_5 = arith.constant 0.000000e+00 : f32
    %9 = vector.broadcast %cst_5 : f32 to vector<16x6xf32>
    %10 = arith.maximumf %5, %9 : vector<16x6xf32>
    %11 = vector.broadcast %cst_5 : f32 to vector<16x6xf32>
    %12 = arith.subf %5, %11 : vector<16x6xf32>
    %13 = arith.cmpf one, %12, %12 : vector<16x6xf32>
    %14 = vector.broadcast %cst_5 : f32 to vector<16x6xf32>
    %15 = arith.addf %5, %14 : vector<16x6xf32>
    %16 = math.absf %12 : vector<16x6xf32>
    %cst_6 = arith.constant 0.000000e+00 : f32
    %17 = vector.broadcast %cst_6 : f32 to vector<16x6xf32>
    %18 = arith.subf %17, %16 : vector<16x6xf32>
    %19 = math.exp %18 : vector<16x6xf32>
    %20 = math.log1p %19 : vector<16x6xf32>
    %21 = arith.addf %10, %20 : vector<16x6xf32>
    %22 = arith.select %13, %15, %21 : vector<16x6xi1>, vector<16x6xf32>
    %cst_7 = arith.constant 0.899999976 : f32
    %23 = vector.broadcast %cst_7 : f32 to vector<16x6xf32>
    %24 = arith.mulf %23, %22 : vector<16x6xf32>
    %cst_8 = arith.constant 1.000000e-01 : f32
    %25 = vector.broadcast %cst_8 : f32 to vector<16x6xf32>
    %26 = arith.addf %25, %24 : vector<16x6xf32>
    %27 = arith.select %8, %5, %26 : vector<16x6xi1>, vector<16x6xf32>
    %c0_9 = arith.constant 0 : index
    %c0_10 = arith.constant 0 : index
    %28 = vector.load %arg3[%c0_9, %c0_10] : memref<16x6xf32, #tpu.memory_space<vmem>>, vector<16x6xf32>
    tpu.vector_store %arg3[%c0_9, %c0_10], %27 {strides = array<i32>} : memref<16x6xf32, #tpu.memory_space<vmem>>, vector<16x6xf32>,
    return
  }
}

</mosaic_0001>

<llo_original>
// kernel: _forward_train_impl.6
$region0: #{_forward_train_impl.6}
  #allocation0 [shape = 'u32[]', space=smem, size = 0x4, offset = 0x4, fixed_abs, tag = 'smem constant byte address 0x4 - core index']
  #allocation1 [shape = 'u32[144,128]{1,0:T(1,128)}', space=vmem, size = 0x12000, scoped, tag = 'internal scratch']
  %s0 = inlined_call_operand.vmem [shape: f32[16,13], index: 0, kind: input, shape index: {}]
  %s1 = inlined_call_operand.vmem [shape: f32[13,6], index: 1, kind: input, shape index: {}]
  %s2 = inlined_call_operand.vmem [shape: f32[1,6], index: 2, kind: input, shape index: {}]
  %s3 = inlined_call_operand.vmem [shape: f32[16,6], index: 3, kind: output, shape index: {}]
  %s4 = sld [smem:[#allocation0]]
  $region22: #{_forward_train_impl.6} parent=0
    _
  %s6 = ssub.s32 1, %s4
  %s7 = scalar_select 0, %s6, %s4
  // Predicated region
  $region2: #{_forward_train_impl.6} parent=0 // pred_check
    _
  $region3: #{_forward_train_impl.6} parent=0 // pred_check_branch
    %9 = sbr.rel (0) target = $region5
  $region4: #{_forward_train_impl.6} parent=0 // pred_region
    _
  $region5: #{_forward_train_impl.6} parent=0 // pred_fallthru
    _
  // Predicated region
  $region6: #{_forward_train_impl.6} parent=0 // pred_check
    _
  $region7: #{_forward_train_impl.6} parent=0 // pred_check_branch
    %11 = sbr.rel (0) target = $region9
  $region8: #{_forward_train_impl.6} parent=0 // pred_region
    _
  $region9: #{_forward_train_impl.6} parent=0 // pred_fallthru
    _
  // Predicated region
  $region10: #{_forward_train_impl.6} parent=0 // pred_check
    _
  $region11: #{_forward_train_impl.6} parent=0 // pred_check_branch
    %13 = sbr.rel (0) target = $region13
  $region12: #{_forward_train_impl.6} parent=0 // pred_region
    _
  $region13: #{_forward_train_impl.6} parent=0 // pred_fallthru
    _
  %v14 = vld [vmem:[%s0] sm:$0xff]
  %v15 = vld [vmem:[%s0 + $0x8] sm:$0xff]
  %v16 = vld [vmem:[%s1] sm:$0xff]
  %v17 = vld [vmem:[%s1 + $0x8] sm:$0x1f]
  %v18 = vld [vmem:[%s2] sm:$0x1]
  %v20 = vlaneseq
  %v21 = vshrl.u32 %v20, 7
  %v22 = vsub.s32 0, %v21
  %v23 = vrot.slane %v18, %v22
  %vm25 = vcmask 105472
  %v27 = vsel %vm25, %v14, 0
  %v30 = vsel %vm25, %v15, 0
  %vm32 = vcmask 1044480
  %v34 = vsel %vm32, %v17, 0
  %36 = vmatprep.subr.mxu0 0.0
  %37 = vmatpush1.msra.mxu0 %v16
  %38 = vmatprep.subr.mxu0 0.0
  %39 = vmatpush1.msra.mxu0 %v34
  %40 = vmatprep.subr.mxu0 0.0
  %41 = vmatpush1.msra.mxu0 0.0
  %42 = vmatprep.subr.mxu0 0.0
  %43 = vmatpush1.msra.mxu0 0.0
  %44 = vmatprep.subr.mxu0 0.0
  %45 = vmatpush1.msra.mxu0 0.0
  %46 = vmatprep.subr.mxu0 0.0
  %47 = vmatpush1.msra.mxu0 0.0
  %48 = vmatprep.subr.mxu0 0.0
  %49 = vmatpush1.msra.mxu0 0.0
  %50 = vmatprep.subr.mxu0 0.0
  %51 = vmatpush1.msra.mxu0 0.0
  %52 = vmatprep.subr.mxu0 0.0
  %53 = vmatpush1.msra.mxu0 0.0
  %54 = vmatprep.subr.mxu0 0.0
  %55 = vmatpush1.msra.mxu0 0.0
  %56 = vmatprep.subr.mxu0 0.0
  %57 = vmatpush1.msra.mxu0 0.0
  %58 = vmatprep.subr.mxu0 0.0
  %59 = vmatpush1.msra.mxu0 0.0
  %60 = vmatprep.subr.mxu0 0.0
  %61 = vmatpush1.msra.mxu0 0.0
  %62 = vmatprep.subr.mxu0 0.0
  %63 = vmatpush1.msra.mxu0 0.0
  %64 = vmatprep.subr.mxu0 0.0
  %65 = vmatpush1.msra.mxu0 0.0
  %66 = vmatprep.subr.mxu0 0.0
  %67 = vmatpush1.msra.mxu0 0.0
  %68 = vmatprep.subr.mxu0 0.0
  %69 = vmatpush1.msra.mxu0 0.0
  %70 = vmatprep.subr.mxu0 0.0
  %71 = vmatpush1.msra.mxu0 0.0
  %72 = vmatprep.subr.mxu0 0.0
  %73 = vmatpush1.msra.mxu0 0.0
  %74 = vmatprep.subr.mxu0 0.0
  %75 = vmatpush1.msra.mxu0 0.0
  %76 = vmatprep.subr.mxu0 0.0
  %77 = vmatpush1.msra.mxu0 0.0
  %78 = vmatprep.subr.mxu0 0.0
  %79 = vmatpush1.msra.mxu0 0.0
  %80 = vmatprep.subr.mxu0 0.0
  %81 = vmatpush1.msra.mxu0 0.0
  %82 = vmatprep.subr.mxu0 0.0
  %83 = vmatpush1.msra.mxu0 0.0
  %84 = vmatprep.subr.mxu0 0.0
  %85 = vmatpush1.msra.mxu0 0.0
  %86 = vmatprep.subr.mxu0 0.0
  %87 = vmatpush1.msra.mxu0 0.0
  %88 = vmatprep.subr.mxu0 0.0
  %89 = vmatpush1.msra.mxu0 0.0
  %90 = vmatprep.subr.mxu0 0.0
  %91 = vmatpush1.msra.mxu0 0.0
  %92 = vmatprep.subr.mxu0 0.0
  %93 = vmatpush1.msra.mxu0 0.0
  %94 = vmatprep.subr.mxu0 0.0
  %95 = vmatpush1.msra.mxu0 0.0
  %96 = vmatprep.subr.mxu0 0.0
  %97 = vmatpush1.msra.mxu0 0.0
  %98 = vmatprep.subr.mxu0 0.0
  %99 = vmatpush1.msra.mxu0 0.0
  %100 = vmatprep.mubr.f32.mxu0 0.0
  %101 = vmatmul.mubr.f32.gmra.mrb[0].mxu0 %v27
  %v102 = vpop.f32.mrb[0].mxu0
  %v103 = vadd.f32 %v23, %v102
  %v104 = vpop.f32.mrb[0].mxu0
  %105 = vmatprep.mubr.f32.mxu0 0.0
  %106 = vmatmul.mubr.f32.gmra.mrb[0].mxu0 %v30
  %v107 = vpop.f32.mrb[0].mxu0
  %v108 = vadd.f32 %v23, %v107
  %v109 = vpop.f32.mrb[0].mxu0
  %110 = vdwg.mxu0
  %v111 = vlaneseq
  %v112 = vand.u32 %v111, 127
  %vm113 = vcmp.lt.s32.totalorder %v112, 3
  %v114 = vmax.f32 %v103, 0.0
  %v115 = vmax.f32 %v108, 0.0
  %vm116 = vcmp.ne.f32.partialorder %v103, %v103
  %vm117 = vcmp.ne.f32.partialorder %v108, %v108
  %v118 = vadd.f32 %v103, 0.0
  %v119 = vadd.f32 %v108, 0.0
  %v120 = vand.u32 2147483647, %v103
  %v121 = vand.u32 2147483647, %v108
  %v122 = vsub.f32 0.0, %v120
  %v123 = vsub.f32 0.0, %v121
  %v124 = vmul.f32 %v122, 1.442695
  %v125 = vpow.pop %v124
  %v126 = vmul.f32 %v123, 1.442695
  %v127 = vpow.pop %v126
  %v128 = vadd.f32 %v125, 1.0
  %v129 = vlog2.pop %v128
  %v130 = vmul.f32 %v129, 0.6931472
  %v131 = vmul.f32 -0.5, %v125
  %v132 = vadd.f32 %v131, 1.0
  %v133 = vmul.f32 %v132, %v125
  %v134 = vand.u32 2147483647, %v125
  %vm135 = vcmp.lt.f32.partialorder %v134, 0.0004427343
  %v136 = vsel %vm135, %v133, %v130
  %v137 = vadd.f32 %v127, 1.0
  %v138 = vlog2.pop %v137
  %v139 = vmul.f32 %v138, 0.6931472
  %v140 = vmul.f32 -0.5, %v127
  %v141 = vadd.f32 %v140, 1.0
  %v142 = vmul.f32 %v141, %v127
  %v143 = vand.u32 2147483647, %v127
  %vm144 = vcmp.lt.f32.partialorder %v143, 0.0004427343
  %v145 = vsel %vm144, %v142, %v139
  %v146 = vadd.f32 %v114, %v136
  %v147 = vadd.f32 %v115, %v145
  %v148 = vsel %vm116, %v118, %v146
  %v149 = vsel %vm117, %v119, %v147
  %v150 = vmul.f32 %v148, 0.9
  %v151 = vmul.f32 %v149, 0.9
  %v152 = vadd.f32 %v150, 0.1
  %v153 = vadd.f32 %v151, 0.1
  %v154 = vsel %vm113, %v103, %v152
  %v155 = vsel %vm113, %v108, %v153
  %vm156 = vcmask 48128
  %157 = vst.msk [vmem:[%s3] sm:$0xff] %vm156, %v154
  %158 = vst.msk [vmem:[%s3 + $0x8] sm:$0xff] %vm156, %v155
  // Predicated region
  $region14: #{_forward_train_impl.6} parent=0 // pred_check
    _
  $region15: #{_forward_train_impl.6} parent=0 // pred_check_branch
    %160 = sbr.rel (0) target = $region17
  $region16: #{_forward_train_impl.6} parent=0 // pred_region
    _
  $region17: #{_forward_train_impl.6} parent=0 // pred_fallthru
    _
  // Predicated region
  $region18: #{_forward_train_impl.6} parent=0 // pred_check
    _
  $region19: #{_forward_train_impl.6} parent=0 // pred_check_branch
    %162 = sbr.rel (0) target = $region21
  $region20: #{_forward_train_impl.6} parent=0 // pred_region
    _
  $region21: #{_forward_train_impl.6} parent=0 // pred_fallthru
    _

// kernel: _forward_train_impl.4
$region0: #{_forward_train_impl.4}
  #allocation0 [shape = 'u32[]', space=smem, size = 0x4, offset = 0x4, fixed_abs, tag = 'smem constant byte address 0x4 - core index']
  #allocation1 [shape = 'u32[144,128]{1,0:T(1,128)}', space=vmem, size = 0x12000, scoped, tag = 'internal scratch']
  %s0 = inlined_call_operand.vmem [shape: f32[16,4], index: 0, kind: input, shape index: {}]
  %s1 = inlined_call_operand.vmem [shape: f32[2,16], index: 1, kind: input, shape index: {}]
  %s2 = inlined_call_operand.vmem [shape: f32[4,16], index: 2, kind: input, shape index: {}]
  %s3 = inlined_call_operand.vmem [shape: f32[1,16], index: 3, kind: input, shape index: {}]
  %s4 = inlined_call_operand.vmem [shape: f32[16,16], index: 4, kind: input, shape index: {}]
  %s5 = inlined_call_operand.vmem [shape: f32[1,16], index: 5, kind: input, shape index: {}]
  %s6 = inlined_call_operand.vmem [shape: f32[16,24], index: 6, kind: input, shape index: {}]
  %s7 = inlined_call_operand.vmem [shape: f32[1,24], index: 7, kind: input, shape index: {}]
  %s8 = inlined_call_operand.vmem [shape: f32[2,24], index: 8, kind: output, shape index: {}]
  %s9 = sld [smem:[#allocation0]]
  $region42: #{_forward_train_impl.4} parent=0
    _
  %s11 = ssub.s32 1, %s9
  %s12 = scalar_select 0, %s11, %s9
  // Predicated region
  $region2: #{_forward_train_impl.4} parent=0 // pred_check
    _
  $region3: #{_forward_train_impl.4} parent=0 // pred_check_branch
    %14 = sbr.rel (0) target = $region5
  $region4: #{_forward_train_impl.4} parent=0 // pred_region
    _
  $region5: #{_forward_train_impl.4} parent=0 // pred_fallthru
    _
  // Predicated region
  $region6: #{_forward_train_impl.4} parent=0 // pred_check
    _
  $region7: #{_forward_train_impl.4} parent=0 // pred_check_branch
    %16 = sbr.rel (0) target = $region9
  $region8: #{_forward_train_impl.4} parent=0 // pred_region
    _
  $region9: #{_forward_train_impl.4} parent=0 // pred_fallthru
    _
  // Predicated region
  $region10: #{_forward_train_impl.4} parent=0 // pred_check
    _
  $region11: #{_forward_train_impl.4} parent=0 // pred_check_branch
    %18 = sbr.rel (0) target = $region13
  $region12: #{_forward_train_impl.4} parent=0 // pred_region
    _
  $region13: #{_forward_train_impl.4} parent=0 // pred_fallthru
    _
  // Predicated region
  $region14: #{_forward_train_impl.4} parent=0 // pred_check
    _
  $region15: #{_forward_train_impl.4} parent=0 // pred_check_branch
    %20 = sbr.rel (0) target = $region17
  $region16: #{_forward_train_impl.4} parent=0 // pred_region
    _
  $region17: #{_forward_train_impl.4} parent=0 // pred_fallthru
    _
  // Predicated region
  $region18: #{_forward_train_impl.4} parent=0 // pred_check
    _
  $region19: #{_forward_train_impl.4} parent=0 // pred_check_branch
    %22 = sbr.rel (0) target = $region21
  $region20: #{_forward_train_impl.4} parent=0 // pred_region
    _
  $region21: #{_forward_train_impl.4} parent=0 // pred_fallthru
    _
  // Predicated region
  $region22: #{_forward_train_impl.4} parent=0 // pred_check
    _
  $region23: #{_forward_train_impl.4} parent=0 // pred_check_branch
    %24 = sbr.rel (0) target = $region25
  $region24: #{_forward_train_impl.4} parent=0 // pred_region
    _
  $region25: #{_forward_train_impl.4} parent=0 // pred_fallthru
    _
  // Predicated region
  $region26: #{_forward_train_impl.4} parent=0 // pred_check
    _
  $region27: #{_forward_train_impl.4} parent=0 // pred_check_branch
    %26 = sbr.rel (0) target = $region29
  $region28: #{_forward_train_impl.4} parent=0 // pred_region
    _
  $region29: #{_forward_train_impl.4} parent=0 // pred_fallthru
    _
  // Predicated region
  $region30: #{_forward_train_impl.4} parent=0 // pred_check
    _
  $region31: #{_forward_train_impl.4} parent=0 // pred_check_branch
    %28 = sbr.rel (0) target = $region33
  $region32: #{_forward_train_impl.4} parent=0 // pred_region
    _
  $region33: #{_forward_train_impl.4} parent=0 // pred_fallthru
    _
  %v29 = vld [vmem:[%s0] sm:$0xff]
  %v30 = vld [vmem:[%s0 + $0x8] sm:$0xff]
  %v31 = vld [vmem:[%s2] sm:$0xf]
  %v32 = vld [vmem:[%s3] sm:$0x1]
  %v34 = vlaneseq
  %v35 = vshrl.u32 %v34, 7
  %v36 = vsub.s32 0, %v35
  %v37 = vrot.slane %v32, %v36
  %vm39 = vcmask 31744
  %v41 = vsel %vm39, %v29, 0
  %v44 = vsel %vm39, %v30, 0
  %vm46 = vcmask 1043456
  %v48 = vsel %vm46, %v31, 0
  %50 = vmatprep.subr.mxu0 0.0
  %51 = vmatpush1.msra.mxu0 %v48
  %52 = vmatprep.subr.mxu0 0.0
  %53 = vmatpush1.msra.mxu0 0.0
  %54 = vmatprep.subr.mxu0 0.0
  %55 = vmatpush1.msra.mxu0 0.0
  %56 = vmatprep.subr.mxu0 0.0
  %57 = vmatpush1.msra.mxu0 0.0
  %58 = vmatprep.subr.mxu0 0.0
  %59 = vmatpush1.msra.mxu0 0.0
  %60 = vmatprep.subr.mxu0 0.0
  %61 = vmatpush1.msra.mxu0 0.0
  %62 = vmatprep.subr.mxu0 0.0
  %63 = vmatpush1.msra.mxu0 0.0
  %64 = vmatprep.subr.mxu0 0.0
  %65 = vmatpush1.msra.mxu0 0.0
  %66 = vmatprep.subr.mxu0 0.0
  %67 = vmatpush1.msra.mxu0 0.0
  %68 = vmatprep.subr.mxu0 0.0
  %69 = vmatpush1.msra.mxu0 0.0
  %70 = vmatprep.subr.mxu0 0.0
  %71 = vmatpush1.msra.mxu0 0.0
  %72 = vmatprep.subr.mxu0 0.0
  %73 = vmatpush1.msra.mxu0 0.0
  %74 = vmatprep.subr.mxu0 0.0
  %75 = vmatpush1.msra.mxu0 0.0
  %76 = vmatprep.subr.mxu0 0.0
  %77 = vmatpush1.msra.mxu0 0.0
  %78 = vmatprep.subr.mxu0 0.0
  %79 = vmatpush1.msra.mxu0 0.0
  %80 = vmatprep.subr.mxu0 0.0
  %81 = vmatpush1.msra.mxu0 0.0
  %82 = vmatprep.subr.mxu0 0.0
  %83 = vmatpush1.msra.mxu0 0.0
  %84 = vmatprep.subr.mxu0 0.0
  %85 = vmatpush1.msra.mxu0 0.0
  %86 = vmatprep.subr.mxu0 0.0
  %87 = vmatpush1.msra.mxu0 0.0
  %88 = vmatprep.subr.mxu0 0.0
  %89 = vmatpush1.msra.mxu0 0.0
  %90 = vmatprep.subr.mxu0 0.0
  %91 = vmatpush1.msra.mxu0 0.0
  %92 = vmatprep.subr.mxu0 0.0
  %93 = vmatpush1.msra.mxu0 0.0
  %94 = vmatprep.subr.mxu0 0.0
  %95 = vmatpush1.msra.mxu0 0.0
  %96 = vmatprep.subr.mxu0 0.0
  %97 = vmatpush1.msra.mxu0 0.0
  %98 = vmatprep.subr.mxu0 0.0
  %99 = vmatpush1.msra.mxu0 0.0
  %100 = vmatprep.subr.mxu0 0.0
  %101 = vmatpush1.msra.mxu0 0.0
  %102 = vmatprep.subr.mxu0 0.0
  %103 = vmatpush1.msra.mxu0 0.0
  %104 = vmatprep.subr.mxu0 0.0
  %105 = vmatpush1.msra.mxu0 0.0
  %106 = vmatprep.subr.mxu0 0.0
  %107 = vmatpush1.msra.mxu0 0.0
  %108 = vmatprep.subr.mxu0 0.0
  %109 = vmatpush1.msra.mxu0 0.0
  %110 = vmatprep.subr.mxu0 0.0
  %111 = vmatpush1.msra.mxu0 0.0
  %112 = vmatprep.subr.mxu0 0.0
  %113 = vmatpush1.msra.mxu0 0.0
  %114 = vmatprep.mubr.f32.mxu0 0.0
  %115 = vmatmul.mubr.f32.gmra.mrb[0].mxu0 %v41
  %v116 = vpop.f32.mrb[0].mxu0
  %v117 = vadd.f32 %v37, %v116
  %v118 = vpop.f32.mrb[0].mxu0
  %119 = vmatprep.mubr.f32.mxu0 0.0
  %120 = vmatmul.mubr.f32.gmra.mrb[0].mxu0 %v44
  %v121 = vpop.f32.mrb[0].mxu0
  %v122 = vadd.f32 %v37, %v121
  %v123 = vpop.f32.mrb[0].mxu0
  %124 = vdwg.mxu0
  %v125 = vtanh.pop %v117
  %v126 = vtanh.pop %v122
  %v127 = vld [vmem:[%s1] sm:$0x3]
  %vm128 = vcmask 130048
  %v130 = vsel %vm128, %v127, 0
  %132 = vmatprep.subr.mxu0 0.0
  %133 = vmatpush1.msra.mxu0 %v125
  %134 = vmatprep.subr.mxu0 0.0
  %135 = vmatpush1.msra.mxu0 %v126
  %136 = vmatprep.subr.mxu0 0.0
  %137 = vmatpush1.msra.mxu0 0.0
  %138 = vmatprep.subr.mxu0 0.0
  %139 = vmatpush1.msra.mxu0 0.0
  %140 = vmatprep.subr.mxu0 0.0
  %141 = vmatpush1.msra.mxu0 0.0
  %142 = vmatprep.subr.mxu0 0.0
  %143 = vmatpush1.msra.mxu0 0.0
  %144 = vmatprep.subr.mxu0 0.0
  %145 = vmatpush1.msra.mxu0 0.0
  %146 = vmatprep.subr.mxu0 0.0
  %147 = vmatpush1.msra.mxu0 0.0
  %148 = vmatprep.subr.mxu0 0.0
  %149 = vmatpush1.msra.mxu0 0.0
  %150 = vmatprep.subr.mxu0 0.0
  %151 = vmatpush1.msra.mxu0 0.0
  %152 = vmatprep.subr.mxu0 0.0
  %153 = vmatpush1.msra.mxu0 0.0
  %154 = vmatprep.subr.mxu0 0.0
  %155 = vmatpush1.msra.mxu0 0.0
  %156 = vmatprep.subr.mxu0 0.0
  %157 = vmatpush1.msra.mxu0 0.0
  %158 = vmatprep.subr.mxu0 0.0
  %159 = vmatpush1.msra.mxu0 0.0
  %160 = vmatprep.subr.mxu0 0.0
  %161 = vmatpush1.msra.mxu0 0.0
  %162 = vmatprep.subr.mxu0 0.0
  %163 = vmatpush1.msra.mxu0 0.0
  %164 = vmatprep.subr.mxu0 0.0
  %165 = vmatpush1.msra.mxu0 0.0
  %166 = vmatprep.subr.mxu0 0.0
  %167 = vmatpush1.msra.mxu0 0.0
  %168 = vmatprep.subr.mxu0 0.0
  %169 = vmatpush1.msra.mxu0 0.0
  %170 = vmatprep.subr.mxu0 0.0
  %171 = vmatpush1.msra.mxu0 0.0
  %172 = vmatprep.subr.mxu0 0.0
  %173 = vmatpush1.msra.mxu0 0.0
  %174 = vmatprep.subr.mxu0 0.0
  %175 = vmatpush1.msra.mxu0 0.0
  %176 = vmatprep.subr.mxu0 0.0
  %177 = vmatpush1.msra.mxu0 0.0
  %178 = vmatprep.subr.mxu0 0.0
  %179 = vmatpush1.msra.mxu0 0.0
  %180 = vmatprep.subr.mxu0 0.0
  %181 = vmatpush1.msra.mxu0 0.0
  %182 = vmatprep.subr.mxu0 0.0
  %183 = vmatpush1.msra.mxu0 0.0
  %184 = vmatprep.subr.mxu0 0.0
  %185 = vmatpush1.msra.mxu0 0.0
  %186 = vmatprep.subr.mxu0 0.0
  %187 = vmatpush1.msra.mxu0 0.0
  %188 = vmatprep.subr.mxu0 0.0
  %189 = vmatpush1.msra.mxu0 0.0
  %190 = vmatprep.subr.mxu0 0.0
  %191 = vmatpush1.msra.mxu0 0.0
  %192 = vmatprep.subr.mxu0 0.0
  %193 = vmatpush1.msra.mxu0 0.0
  %194 = vmatprep.subr.mxu0 0.0
  %195 = vmatpush1.msra.mxu0 0.0
  %196 = vmatprep.mubr.f32.mxu0 0.0
  %197 = vmatmul.mubr.f32.gmra.mrb[0].mxu0 %v130
  %v198 = vpop.f32.mrb[0].mxu0
  %v199 = vadd.f32 0.0, %v198
  %v200 = vpop.f32.mrb[0].mxu0
  %201 = vdwg.mxu0
  %v202 = vld [vmem:[%s4] sm:$0xff]
  %v203 = vld [vmem:[%s4 + $0x8] sm:$0xff]
  %v204 = vld [vmem:[%s5] sm:$0x1]
  %v206 = vlaneseq
  %v207 = vshrl.u32 %v206, 7
  %v208 = vsub.s32 0, %v207
  %v209 = vrot.slane %v204, %v208
  %v212 = vsel %vm128, %v199, 0
  %214 = vmatprep.subr.mxu0 0.0
  %215 = vmatpush1.msra.mxu0 %v202
  %216 = vmatprep.subr.mxu0 0.0
  %217 = vmatpush1.msra.mxu0 %v203
  %218 = vmatprep.subr.mxu0 0.0
  %219 = vmatpush1.msra.mxu0 0.0
  %220 = vmatprep.subr.mxu0 0.0
  %221 = vmatpush1.msra.mxu0 0.0
  %222 = vmatprep.subr.mxu0 0.0
  %223 = vmatpush1.msra.mxu0 0.0
  %224 = vmatprep.subr.mxu0 0.0
  %225 = vmatpush1.msra.mxu0 0.0
  %226 = vmatprep.subr.mxu0 0.0
  %227 = vmatpush1.msra.mxu0 0.0
  %228 = vmatprep.subr.mxu0 0.0
  %229 = vmatpush1.msra.mxu0 0.0
  %230 = vmatprep.subr.mxu0 0.0
  %231 = vmatpush1.msra.mxu0 0.0
  %232 = vmatprep.subr.mxu0 0.0
  %233 = vmatpush1.msra.mxu0 0.0
  %234 = vmatprep.subr.mxu0 0.0
  %235 = vmatpush1.msra.mxu0 0.0
  %236 = vmatprep.subr.mxu0 0.0
  %237 = vmatpush1.msra.mxu0 0.0
  %238 = vmatprep.subr.mxu0 0.0
  %239 = vmatpush1.msra.mxu0 0.0
  %240 = vmatprep.subr.mxu0 0.0
  %241 = vmatpush1.msra.mxu0 0.0
  %242 = vmatprep.subr.mxu0 0.0
  %243 = vmatpush1.msra.mxu0 0.0
  %244 = vmatprep.subr.mxu0 0.0
  %245 = vmatpush1.msra.mxu0 0.0
  %246 = vmatprep.subr.mxu0 0.0
  %247 = vmatpush1.msra.mxu0 0.0
  %248 = vmatprep.subr.mxu0 0.0
  %249 = vmatpush1.msra.mxu0 0.0
  %250 = vmatprep.subr.mxu0 0.0
  %251 = vmatpush1.msra.mxu0 0.0
  %252 = vmatprep.subr.mxu0 0.0
  %253 = vmatpush1.msra.mxu0 0.0
  %254 = vmatprep.subr.mxu0 0.0
  %255 = vmatpush1.msra.mxu0 0.0
  %256 = vmatprep.subr.mxu0 0.0
  %257 = vmatpush1.msra.mxu0 0.0
  %258 = vmatprep.subr.mxu0 0.0
  %259 = vmatpush1.msra.mxu0 0.0
  %260 = vmatprep.subr.mxu0 0.0
  %261 = vmatpush1.msra.mxu0 0.0
  %262 = vmatprep.subr.mxu0 0.0
  %263 = vmatpush1.msra.mxu0 0.0
  %264 = vmatprep.subr.mxu0 0.0
  %265 = vmatpush1.msra.mxu0 0.0
  %266 = vmatprep.subr.mxu0 0.0
  %267 = vmatpush1.msra.mxu0 0.0
  %268 = vmatprep.subr.mxu0 0.0
  %269 = vmatpush1.msra.mxu0 0.0
  %270 = vmatprep.subr.mxu0 0.0
  %271 = vmatpush1.msra.mxu0 0.0
  %272 = vmatprep.subr.mxu0 0.0
  %273 = vmatpush1.msra.mxu0 0.0
  %274 = vmatprep.subr.mxu0 0.0
  %275 = vmatpush1.msra.mxu0 0.0
  %276 = vmatprep.subr.mxu0 0.0
  %277 = vmatpush1.msra.mxu0 0.0
  %278 = vmatprep.mubr.f32.mxu0 0.0
  %279 = vmatmul.mubr.f32.gmra.mrb[0].mxu0 %v212
  %v280 = vpop.f32.mrb[0].mxu0
  %v281 = vadd.f32 %v209, %v280
  %v282 = vpop.f32.mrb[0].mxu0
  %283 = vdwg.mxu0
  %v284 = vld [vmem:[%s6] sm:$0xff]
  %v285 = vld [vmem:[%s6 + $0x8] sm:$0xff]
  %v286 = vld [vmem:[%s7] sm:$0x1]
  %v288 = vlaneseq
  %v289 = vshrl.u32 %v288, 7
  %v290 = vsub.s32 0, %v289
  %v291 = vrot.slane %v286, %v290
  %v294 = vsel %vm128, %v281, 0
  %296 = vmatprep.subr.mxu0 0.0
  %297 = vmatpush1.msra.mxu0 %v284
  %298 = vmatprep.subr.mxu0 0.0
  %299 = vmatpush1.msra.mxu0 %v285
  %300 = vmatprep.subr.mxu0 0.0
  %301 = vmatpush1.msra.mxu0 0.0
  %302 = vmatprep.subr.mxu0 0.0
  %303 = vmatpush1.msra.mxu0 0.0
  %304 = vmatprep.subr.mxu0 0.0
  %305 = vmatpush1.msra.mxu0 0.0
  %306 = vmatprep.subr.mxu0 0.0
  %307 = vmatpush1.msra.mxu0 0.0
  %308 = vmatprep.subr.mxu0 0.0
  %309 = vmatpush1.msra.mxu0 0.0
  %310 = vmatprep.subr.mxu0 0.0
  %311 = vmatpush1.msra.mxu0 0.0
  %312 = vmatprep.subr.mxu0 0.0
  %313 = vmatpush1.msra.mxu0 0.0
  %314 = vmatprep.subr.mxu0 0.0
  %315 = vmatpush1.msra.mxu0 0.0
  %316 = vmatprep.subr.mxu0 0.0
  %317 = vmatpush1.msra.mxu0 0.0
  %318 = vmatprep.subr.mxu0 0.0
  %319 = vmatpush1.msra.mxu0 0.0
  %320 = vmatprep.subr.mxu0 0.0
  %321 = vmatpush1.msra.mxu0 0.0
  %322 = vmatprep.subr.mxu0 0.0
  %323 = vmatpush1.msra.mxu0 0.0
  %324 = vmatprep.subr.mxu0 0.0
  %325 = vmatpush1.msra.mxu0 0.0
  %326 = vmatprep.subr.mxu0 0.0
  %327 = vmatpush1.msra.mxu0 0.0
  %328 = vmatprep.subr.mxu0 0.0
  %329 = vmatpush1.msra.mxu0 0.0
  %330 = vmatprep.subr.mxu0 0.0
  %331 = vmatpush1.msra.mxu0 0.0
  %332 = vmatprep.subr.mxu0 0.0
  %333 = vmatpush1.msra.mxu0 0.0
  %334 = vmatprep.subr.mxu0 0.0
  %335 = vmatpush1.msra.mxu0 0.0
  %336 = vmatprep.subr.mxu0 0.0
  %337 = vmatpush1.msra.mxu0 0.0
  %338 = vmatprep.subr.mxu0 0.0
  %339 = vmatpush1.msra.mxu0 0.0
  %340 = vmatprep.subr.mxu0 0.0
  %341 = vmatpush1.msra.mxu0 0.0
  %342 = vmatprep.subr.mxu0 0.0
  %343 = vmatpush1.msra.mxu0 0.0
  %344 = vmatprep.subr.mxu0 0.0
  %345 = vmatpush1.msra.mxu0 0.0
  %346 = vmatprep.subr.mxu0 0.0
  %347 = vmatpush1.msra.mxu0 0.0
  %348 = vmatprep.subr.mxu0 0.0
  %349 = vmatpush1.msra.mxu0 0.0
  %350 = vmatprep.subr.mxu0 0.0
  %351 = vmatpush1.msra.mxu0 0.0
  %352 = vmatprep.subr.mxu0 0.0
  %353 = vmatpush1.msra.mxu0 0.0
  %354 = vmatprep.subr.mxu0 0.0
  %355 = vmatpush1.msra.mxu0 0.0
  %356 = vmatprep.subr.mxu0 0.0
  %357 = vmatpush1.msra.mxu0 0.0
  %358 = vmatprep.subr.mxu0 0.0
  %359 = vmatpush1.msra.mxu0 0.0
  %360 = vmatprep.mubr.f32.mxu0 0.0
  %361 = vmatmul.mubr.f32.gmra.mrb[0].mxu0 %v294
  %v362 = vpop.f32.mrb[0].mxu0
  %v363 = vadd.f32 %v291, %v362
  %v364 = vpop.f32.mrb[0].mxu0
  %365 = vdwg.mxu0
  %v366 = vlaneseq
  %v367 = vand.u32 %v366, 127
  %vm368 = vcmp.lt.s32.totalorder %v367, 12
  %v369 = vxor.u32 %v363, 2147483648
  %v370 = vmul.f32 %v369, 1.442695
  %v371 = vpow.pop %v370
  %v372 = vadd.f32 %v371, 1.0
  %v373 = vrcp.pop %v372
  %v374 = vmul.f32 1.0, %v373
  %v375 = vmul.f32 %v374, 0.9
  %v376 = vadd.f32 %v375, 0.1
  %v377 = vsel %vm368, %v363, %v376
  %vm378 = vcmask 189440
  %379 = vst.msk [vmem:[%s8] sm:$0x3] %vm378, %v377
  // Predicated region
  $region34: #{_forward_train_impl.4} parent=0 // pred_check
    _
  $region35: #{_forward_train_impl.4} parent=0 // pred_check_branch
    %381 = sbr.rel (0) target = $region37
  $region36: #{_forward_train_impl.4} parent=0 // pred_region
    _
  $region37: #{_forward_train_impl.4} parent=0 // pred_fallthru
    _
  // Predicated region
  $region38: #{_forward_train_impl.4} parent=0 // pred_check
    _
  $region39: #{_forward_train_impl.4} parent=0 // pred_check_branch
    %383 = sbr.rel (0) target = $region41
  $region40: #{_forward_train_impl.4} parent=0 // pred_region
    _
  $region41: #{_forward_train_impl.4} parent=0 // pred_fallthru
    _

// kernel: _forward_train_impl.5
$region0: #{_forward_train_impl.5}
  #allocation0 [shape = 'u32[]', space=smem, size = 0x4, offset = 0x4, fixed_abs, tag = 'smem constant byte address 0x4 - core index']
  #allocation1 [shape = 'u32[144,128]{1,0:T(1,128)}', space=vmem, size = 0x12000, scoped, tag = 'internal scratch']
  #allocation2 [shape = 'f32[2,13]{1,0:T(2,128)}', space=vmem, size = 0x400, scoped, tag = 'scratch operand']
  %s0 = inlined_call_operand.vmem [shape: f32[18], index: 0, kind: input, shape index: {}]
  %s1 = inlined_call_operand.vmem [shape: f32[2,12], index: 1, kind: input, shape index: {}]
  %s2 = inlined_call_operand.vmem [shape: f32[13,32], index: 2, kind: input, shape index: {}]
  %s3 = inlined_call_operand.vmem [shape: f32[1,32], index: 3, kind: input, shape index: {}]
  %s4 = inlined_call_operand.vmem [shape: f32[32,32], index: 4, kind: input, shape index: {}]
  %s5 = inlined_call_operand.vmem [shape: f32[1,32], index: 5, kind: input, shape index: {}]
  %s6 = inlined_call_operand.vmem [shape: f32[32,8], index: 6, kind: input, shape index: {}]
  %s7 = inlined_call_operand.vmem [shape: f32[1,8], index: 7, kind: input, shape index: {}]
  %s8 = inlined_call_operand.vmem [shape: f32[18,2,8], index: 8, kind: output, shape index: {}]
  %s9 = sld [smem:[#allocation0]]
  $region53: #{_forward_train_impl.5} parent=0
    _
  %s11 = ssub.s32 1, %s9
  %s12 = scalar_select 0, %s11, %s9
  $region1: #{_forward_train_impl.5} parent=0
    #allocation3 [shape = 'u8[512]{0}', space=smem, size = 0x200, scoped, tag = 'input window, operand 0, single buffered']
    #allocation4 [shape = 's32[1]{0}', space=sflag, size = 0x4, scoped, tag = 'scoped memory for _forward_train_impl.5']
    %13 = vsyncpa [#allocation4], 0
    // Predicated region
    $region2: #{_forward_train_impl.5} parent=1 // pred_check
      _
    $region3: #{_forward_train_impl.5} parent=1 // pred_check_branch
      %15 = sbr.rel (0) target = $region5
    $region4: #{_forward_train_impl.5} parent=1 // pred_region
      %s17 = ssub.s32 16, 16
      %18 = vsyncadd [#allocation4], %s17
      %s20 = sshll.u32 %s0, 4
      %s21 = int_to_ptr.vmem [resolvable:$true] %s20
      %23 = dma.vmem_to_smem %s21, 16, [#allocation3], [#allocation4]
    $region5: #{_forward_train_impl.5} parent=1 // pred_fallthru
      _
    // Predicated region
    $region6: #{_forward_train_impl.5} parent=1 // pred_check
      _
    $region7: #{_forward_train_impl.5} parent=1 // pred_check_branch
      %25 = sbr.rel (0) target = $region9
    $region8: #{_forward_train_impl.5} parent=1 // pred_region
      _
    $region9: #{_forward_train_impl.5} parent=1 // pred_fallthru
      _
    // Predicated region
    $region10: #{_forward_train_impl.5} parent=1 // pred_check
      _
    $region11: #{_forward_train_impl.5} parent=1 // pred_check_branch
      %27 = sbr.rel (0) target = $region13
    $region12: #{_forward_train_impl.5} parent=1 // pred_region
      _
    $region13: #{_forward_train_impl.5} parent=1 // pred_fallthru
      _
    // Predicated region
    $region14: #{_forward_train_impl.5} parent=1 // pred_check
      _
    $region15: #{_forward_train_impl.5} parent=1 // pred_check_branch
      %29 = sbr.rel (0) target = $region17
    $region16: #{_forward_train_impl.5} parent=1 // pred_region
      _
    $region17: #{_forward_train_impl.5} parent=1 // pred_fallthru
      _
    // Predicated region
    $region18: #{_forward_train_impl.5} parent=1 // pred_check
      _
    $region19: #{_forward_train_impl.5} parent=1 // pred_check_branch
      %31 = sbr.rel (0) target = $region21
    $region20: #{_forward_train_impl.5} parent=1 // pred_region
      _
    $region21: #{_forward_train_impl.5} parent=1 // pred_fallthru
      _
    // Predicated region
    $region22: #{_forward_train_impl.5} parent=1 // pred_check
      _
    $region23: #{_forward_train_impl.5} parent=1 // pred_check_branch
      %33 = sbr.rel (0) target = $region25
    $region24: #{_forward_train_impl.5} parent=1 // pred_region
      _
    $region25: #{_forward_train_impl.5} parent=1 // pred_fallthru
      _
    // Predicated region
    $region26: #{_forward_train_impl.5} parent=1 // pred_check
      _
    $region27: #{_forward_train_impl.5} parent=1 // pred_check_branch
      %35 = sbr.rel (0) target = $region29
    $region28: #{_forward_train_impl.5} parent=1 // pred_region
      _
    $region29: #{_forward_train_impl.5} parent=1 // pred_fallthru
      _
    // Predicated region
    $region30: #{_forward_train_impl.5} parent=1 // pred_check
      _
    $region31: #{_forward_train_impl.5} parent=1 // pred_check_branch
      %37 = sbr.rel (0) target = $region33
    $region32: #{_forward_train_impl.5} parent=1 // pred_region
      _
    $region33: #{_forward_train_impl.5} parent=1 // pred_fallthru
      _
    // Predicated region
    $region34: #{_forward_train_impl.5} parent=1 // pred_check
      _
    $region35: #{_forward_train_impl.5} parent=1 // pred_check_branch
      %39 = sbr.rel (0) target = $region37
    $region36: #{_forward_train_impl.5} parent=1 // pred_region
      %40 = dma.done [#allocation4], 16
    $region37: #{_forward_train_impl.5} parent=1 // pred_fallthru
      _
    %41 = sfence
    %v42 = vld [vmem:[%s2] sm:$0xff]
    %v43 = vld [vmem:[%s2 + $0x8] sm:$0x1f]
    %v44 = vld [vmem:[%s3] sm:$0x1]
    %v45 = vld [vmem:[%s4] sm:$0xff]
    %v46 = vld [vmem:[%s4 + $0x8] sm:$0xff]
    %v47 = vld [vmem:[%s4 + $0x10] sm:$0xff]
    %v48 = vld [vmem:[%s4 + $0x18] sm:$0xff]
    %v49 = vld [vmem:[%s5] sm:$0x1]
    %v50 = vld [vmem:[%s6] sm:$0xff]
    %v51 = vld [vmem:[%s6 + $0x8] sm:$0xff]
    %v52 = vld [vmem:[%s6 + $0x10] sm:$0xff]
    %v53 = vld [vmem:[%s6 + $0x18] sm:$0xff]
    %v54 = vld [vmem:[%s7] sm:$0x1]
    %v55 = vld [vmem:[%s1] sm:$0x3]
    %vm56 = vcmask 91200
    %57 = vst.msk [vmem:[#allocation2] sm:$0x3] %vm56, %v55
    %v58 = vld [vmem:[%s1] sm:$0x3]
    %vm59 = vcmask 58368
    %60 = vst.msk [vmem:[%s8] sm:$0x3] %vm59, %v58
    loop: start=0, step=1, limit=17
    $region38: #{_forward_train_impl.5} parent=1 // loop_pre_header
      _
    $region39: #{_forward_train_impl.5} parent=1 // loop_header
      %s62 = sphi 0, %s66
      %p63 = scmp.ge.s32.totalorder %s62, 17
      %v67 = vphi %v58, %v3767
    $region40: #{_forward_train_impl.5} parent=1 // loop_header_branch
      %65 = sbr.rel (%p63) target = $region44
    $region41: #{_forward_train_impl.5} parent=1 // loop_body
      %s68 = sld [smem:[#allocation3 + %s62]]
      %s69 = sadd.s32 %s62, 1
      %s70 = sld [smem:[#allocation3 + %s69]]
      %s71 = ssub.f32 %s70, %s68
      %s72 = smul.f32 %s71, 0.25
      %s73 = smul.f32 %s72, 0.0
      %s74 = sadd.f32 %s68, %s73
      %75 = vst.msk [vmem:[#allocation2] sm:$0x3] %vm59, %v67
      %v76 = vstv %s74
      %vm77 = vcmask 99424
      %78 = vst.msk [vmem:[#allocation2] sm:$0x3] %vm77, %v76
      %v79 = vld [vmem:[#allocation2] sm:$0x3]
      %v81 = vlaneseq
      %v82 = vshrl.u32 %v81, 7
      %v83 = vsub.s32 0, %v82
      %v84 = vrot.slane %v44, %v83
      %vm86 = vcmask 105472
      %v88 = vsel %vm86, %v79, 0
      %vm90 = vcmask 1044480
      %v92 = vsel %vm90, %v43, 0
      %94 = vmatprep.subr.mxu0 0.0
      %95 = vmatpush1.msra.mxu0 %v42
      %96 = vmatprep.subr.mxu0 0.0
      %97 = vmatpush1.msra.mxu0 %v92
      %98 = vmatprep.subr.mxu0 0.0
      %99 = vmatpush1.msra.mxu0 0.0
      %100 = vmatprep.subr.mxu0 0.0
      %101 = vmatpush1.msra.mxu0 0.0
      %102 = vmatprep.subr.mxu0 0.0
      %103 = vmatpush1.msra.mxu0 0.0
      %104 = vmatprep.subr.mxu0 0.0
      %105 = vmatpush1.msra.mxu0 0.0
      %106 = vmatprep.subr.mxu0 0.0
      %107 = vmatpush1.msra.mxu0 0.0
      %108 = vmatprep.subr.mxu0 0.0
      %109 = vmatpush1.msra.mxu0 0.0
      %110 = vmatprep.subr.mxu0 0.0
      %111 = vmatpush1.msra.mxu0 0.0
      %112 = vmatprep.subr.mxu0 0.0
      %113 = vmatpush1.msra.mxu0 0.0
      %114 = vmatprep.subr.mxu0 0.0
      %115 = vmatpush1.msra.mxu0 0.0
      %116 = vmatprep.subr.mxu0 0.0
      %117 = vmatpush1.msra.mxu0 0.0
      %118 = vmatprep.subr.mxu0 0.0
      %119 = vmatpush1.msra.mxu0 0.0
      %120 = vmatprep.subr.mxu0 0.0
      %121 = vmatpush1.msra.mxu0 0.0
      %122 = vmatprep.subr.mxu0 0.0
      %123 = vmatpush1.msra.mxu0 0.0
      %124 = vmatprep.subr.mxu0 0.0
      %125 = vmatpush1.msra.mxu0 0.0
      %126 = vmatprep.subr.mxu0 0.0
      %127 = vmatpush1.msra.mxu0 0.0
      %128 = vmatprep.subr.mxu0 0.0
      %129 = vmatpush1.msra.mxu0 0.0
      %130 = vmatprep.subr.mxu0 0.0
      %131 = vmatpush1.msra.mxu0 0.0
      %132 = vmatprep.subr.mxu0 0.0
      %133 = vmatpush1.msra.mxu0 0.0
      %134 = vmatprep.subr.mxu0 0.0
      %135 = vmatpush1.msra.mxu0 0.0
      %136 = vmatprep.subr.mxu0 0.0
      %137 = vmatpush1.msra.mxu0 0.0
      %138 = vmatprep.subr.mxu0 0.0
      %139 = vmatpush1.msra.mxu0 0.0
      %140 = vmatprep.subr.mxu0 0.0
      %141 = vmatpush1.msra.mxu0 0.0
      %142 = vmatprep.subr.mxu0 0.0
      %143 = vmatpush1.msra.mxu0 0.0
      %144 = vmatprep.subr.mxu0 0.0
      %145 = vmatpush1.msra.mxu0 0.0
      %146 = vmatprep.subr.mxu0 0.0
      %147 = vmatpush1.msra.mxu0 0.0
      %148 = vmatprep.subr.mxu0 0.0
      %149 = vmatpush1.msra.mxu0 0.0
      %150 = vmatprep.subr.mxu0 0.0
      %151 = vmatpush1.msra.mxu0 0.0
      %152 = vmatprep.subr.mxu0 0.0
      %153 = vmatpush1.msra.mxu0 0.0
      %154 = vmatprep.subr.mxu0 0.0
      %155 = vmatpush1.msra.mxu0 0.0
      %156 = vmatprep.subr.mxu0 0.0
      %157 = vmatpush1.msra.mxu0 0.0
      %158 = vmatprep.mubr.f32.mxu0 0.0
      %159 = vmatmul.mubr.f32.gmra.mrb[0].mxu0 %v88
      %v160 = vpop.f32.mrb[0].mxu0
      %v161 = vadd.f32 %v84, %v160
      %v162 = vpop.f32.mrb[0].mxu0
      %163 = vdwg.mxu0
      %v164 = vtanh.pop %v161
      %v166 = vlaneseq
      %v167 = vshrl.u32 %v166, 7
      %v168 = vsub.s32 0, %v167
      %v169 = vrot.slane %v49, %v168
      %vm171 = vcmask 261120
      %v173 = vsel %vm171, %v164, 0
      %175 = vmatprep.subr.mxu0 0.0
      %176 = vmatpush1.msra.mxu0 %v45
      %177 = vmatprep.subr.mxu0 0.0
      %178 = vmatpush1.msra.mxu0 %v46
      %179 = vmatprep.subr.mxu0 0.0
      %180 = vmatpush1.msra.mxu0 %v47
      %181 = vmatprep.subr.mxu0 0.0
      %182 = vmatpush1.msra.mxu0 %v48
      %183 = vmatprep.subr.mxu0 0.0
      %184 = vmatpush1.msra.mxu0 0.0
      %185 = vmatprep.subr.mxu0 0.0
      %186 = vmatpush1.msra.mxu0 0.0
      %187 = vmatprep.subr.mxu0 0.0
      %188 = vmatpush1.msra.mxu0 0.0
      %189 = vmatprep.subr.mxu0 0.0
      %190 = vmatpush1.msra.mxu0 0.0
      %191 = vmatprep.subr.mxu0 0.0
      %192 = vmatpush1.msra.mxu0 0.0
      %193 = vmatprep.subr.mxu0 0.0
      %194 = vmatpush1.msra.mxu0 0.0
      %195 = vmatprep.subr.mxu0 0.0
      %196 = vmatpush1.msra.mxu0 0.0
      %197 = vmatprep.subr.mxu0 0.0
      %198 = vmatpush1.msra.mxu0 0.0
      %199 = vmatprep.subr.mxu0 0.0
      %200 = vmatpush1.msra.mxu0 0.0
      %201 = vmatprep.subr.mxu0 0.0
      %202 = vmatpush1.msra.mxu0 0.0
      %203 = vmatprep.subr.mxu0 0.0
      %204 = vmatpush1.msra.mxu0 0.0
      %205 = vmatprep.subr.mxu0 0.0
      %206 = vmatpush1.msra.mxu0 0.0
      %207 = vmatprep.subr.mxu0 0.0
      %208 = vmatpush1.msra.mxu0 0.0
      %209 = vmatprep.subr.mxu0 0.0
      %210 = vmatpush1.msra.mxu0 0.0
      %211 = vmatprep.subr.mxu0 0.0
      %212 = vmatpush1.msra.mxu0 0.0
      %213 = vmatprep.subr.mxu0 0.0
      %214 = vmatpush1.msra.mxu0 0.0
      %215 = vmatprep.subr.mxu0 0.0
      %216 = vmatpush1.msra.mxu0 0.0
      %217 = vmatprep.subr.mxu0 0.0
      %218 = vmatpush1.msra.mxu0 0.0
      %219 = vmatprep.subr.mxu0 0.0
      %220 = vmatpush1.msra.mxu0 0.0
      %221 = vmatprep.subr.mxu0 0.0
      %222 = vmatpush1.msra.mxu0 0.0
      %223 = vmatprep.subr.mxu0 0.0
      %224 = vmatpush1.msra.mxu0 0.0
      %225 = vmatprep.subr.mxu0 0.0
      %226 = vmatpush1.msra.mxu0 0.0
      %227 = vmatprep.subr.mxu0 0.0
      %228 = vmatpush1.msra.mxu0 0.0
      %229 = vmatprep.subr.mxu0 0.0
      %230 = vmatpush1.msra.mxu0 0.0
      %231 = vmatprep.subr.mxu0 0.0
      %232 = vmatpush1.msra.mxu0 0.0
      %233 = vmatprep.subr.mxu0 0.0
      %234 = vmatpush1.msra.mxu0 0.0
      %235 = vmatprep.subr.mxu0 0.0
      %236 = vmatpush1.msra.mxu0 0.0
      %237 = vmatprep.subr.mxu0 0.0
      %238 = vmatpush1.msra.mxu0 0.0
      %239 = vmatprep.mubr.f32.mxu0 0.0
      %240 = vmatmul.mubr.f32.gmra.mrb[0].mxu0 %v173
      %v241 = vpop.f32.mrb[0].mxu0
      %v242 = vadd.f32 %v169, %v241
      %v243 = vpop.f32.mrb[0].mxu0
      %244 = vdwg.mxu0
      %v245 = vtanh.pop %v242
      %v247 = vlaneseq
      %v248 = vshrl.u32 %v247, 7
      %v249 = vsub.s32 0, %v248
      %v250 = vrot.slane %v54, %v249
      %v253 = vsel %vm171, %v245, 0
      %255 = vmatprep.subr.mxu0 0.0
      %256 = vmatpush1.msra.mxu0 %v50
      %257 = vmatprep.subr.mxu0 0.0
      %258 = vmatpush1.msra.mxu0 %v51
      %259 = vmatprep.subr.mxu0 0.0
      %260 = vmatpush1.msra.mxu0 %v52
      %261 = vmatprep.subr.mxu0 0.0
      %262 = vmatpush1.msra.mxu0 %v53
      %263 = vmatprep.subr.mxu0 0.0
      %264 = vmatpush1.msra.mxu0 0.0
      %265 = vmatprep.subr.mxu0 0.0
      %266 = vmatpush1.msra.mxu0 0.0
      %267 = vmatprep.subr.mxu0 0.0
      %268 = vmatpush1.msra.mxu0 0.0
      %269 = vmatprep.subr.mxu0 0.0
      %270 = vmatpush1.msra.mxu0 0.0
      %271 = vmatprep.subr.mxu0 0.0
      %272 = vmatpush1.msra.mxu0 0.0
      %273 = vmatprep.subr.mxu0 0.0
      %274 = vmatpush1.msra.mxu0 0.0
      %275 = vmatprep.subr.mxu0 0.0
      %276 = vmatpush1.msra.mxu0 0.0
      %277 = vmatprep.subr.mxu0 0.0
      %278 = vmatpush1.msra.mxu0 0.0
      %279 = vmatprep.subr.mxu0 0.0
      %280 = vmatpush1.msra.mxu0 0.0
      %281 = vmatprep.subr.mxu0 0.0
      %282 = vmatpush1.msra.mxu0 0.0
      %283 = vmatprep.subr.mxu0 0.0
      %284 = vmatpush1.msra.mxu0 0.0
      %285 = vmatprep.subr.mxu0 0.0
      %286 = vmatpush1.msra.mxu0 0.0
      %287 = vmatprep.subr.mxu0 0.0
      %288 = vmatpush1.msra.mxu0 0.0
      %289 = vmatprep.subr.mxu0 0.0
      %290 = vmatpush1.msra.mxu0 0.0
      %291 = vmatprep.subr.mxu0 0.0
      %292 = vmatpush1.msra.mxu0 0.0
      %293 = vmatprep.subr.mxu0 0.0
      %294 = vmatpush1.msra.mxu0 0.0
      %295 = vmatprep.subr.mxu0 0.0
      %296 = vmatpush1.msra.mxu0 0.0
      %297 = vmatprep.subr.mxu0 0.0
      %298 = vmatpush1.msra.mxu0 0.0
      %299 = vmatprep.subr.mxu0 0.0
      %300 = vmatpush1.msra.mxu0 0.0
      %301 = vmatprep.subr.mxu0 0.0
      %302 = vmatpush1.msra.mxu0 0.0
      %303 = vmatprep.subr.mxu0 0.0
      %304 = vmatpush1.msra.mxu0 0.0
      %305 = vmatprep.subr.mxu0 0.0
      %306 = vmatpush1.msra.mxu0 0.0
      %307 = vmatprep.subr.mxu0 0.0
      %308 = vmatpush1.msra.mxu0 0.0
      %309 = vmatprep.subr.mxu0 0.0
      %310 = vmatpush1.msra.mxu0 0.0
      %311 = vmatprep.subr.mxu0 0.0
      %312 = vmatpush1.msra.mxu0 0.0
      %313 = vmatprep.subr.mxu0 0.0
      %314 = vmatpush1.msra.mxu0 0.0
      %315 = vmatprep.subr.mxu0 0.0
      %316 = vmatpush1.msra.mxu0 0.0
      %317 = vmatprep.subr.mxu0 0.0
      %318 = vmatpush1.msra.mxu0 0.0
      %319 = vmatprep.mubr.f32.mxu0 0.0
      %320 = vmatmul.mubr.f32.gmra.mrb[0].mxu0 %v253
      %v321 = vpop.f32.mrb[0].mxu0
      %v322 = vadd.f32 %v250, %v321
      %v323 = vpop.f32.mrb[0].mxu0
      %324 = vdwg.mxu0
      %s325 = smul.f32 %s72, 0.5
      %v326 = vstv %s325
      %v327 = vmul.f32 %v326, %v322
      %v328 = vadd.f32 %v67, %v327
      %s329 = sadd.f32 %s74, %s325
      %330 = vst.msk [vmem:[#allocation2] sm:$0x3] %vm59, %v328
      %v331 = vstv %s329
      %332 = vst.msk [vmem:[#allocation2] sm:$0x3] %vm77, %v331
      %v333 = vld [vmem:[#allocation2] sm:$0x3]
      %v335 = vsel %vm86, %v333, 0
      %337 = vmatprep.subr.mxu0 0.0
      %338 = vmatpush1.msra.mxu0 %v42
      %339 = vmatprep.subr.mxu0 0.0
      %340 = vmatpush1.msra.mxu0 %v92
      %341 = vmatprep.subr.mxu0 0.0
      %342 = vmatpush1.msra.mxu0 0.0
      %343 = vmatprep.subr.mxu0 0.0
      %344 = vmatpush1.msra.mxu0 0.0
      %345 = vmatprep.subr.mxu0 0.0
      %346 = vmatpush1.msra.mxu0 0.0
      %347 = vmatprep.subr.mxu0 0.0
      %348 = vmatpush1.msra.mxu0 0.0
      %349 = vmatprep.subr.mxu0 0.0
      %350 = vmatpush1.msra.mxu0 0.0
      %351 = vmatprep.subr.mxu0 0.0
      %352 = vmatpush1.msra.mxu0 0.0
      %353 = vmatprep.subr.mxu0 0.0
      %354 = vmatpush1.msra.mxu0 0.0
      %355 = vmatprep.subr.mxu0 0.0
      %356 = vmatpush1.msra.mxu0 0.0
      %357 = vmatprep.subr.mxu0 0.0
      %358 = vmatpush1.msra.mxu0 0.0
      %359 = vmatprep.subr.mxu0 0.0
      %360 = vmatpush1.msra.mxu0 0.0
      %361 = vmatprep.subr.mxu0 0.0
      %362 = vmatpush1.msra.mxu0 0.0
      %363 = vmatprep.subr.mxu0 0.0
      %364 = vmatpush1.msra.mxu0 0.0
      %365 = vmatprep.subr.mxu0 0.0
      %366 = vmatpush1.msra.mxu0 0.0
      %367 = vmatprep.subr.mxu0 0.0
      %368 = vmatpush1.msra.mxu0 0.0
      %369 = vmatprep.subr.mxu0 0.0
      %370 = vmatpush1.msra.mxu0 0.0
      %371 = vmatprep.subr.mxu0 0.0
      %372 = vmatpush1.msra.mxu0 0.0
      %373 = vmatprep.subr.mxu0 0.0
      %374 = vmatpush1.msra.mxu0 0.0
      %375 = vmatprep.subr.mxu0 0.0
      %376 = vmatpush1.msra.mxu0 0.0
      %377 = vmatprep.subr.mxu0 0.0
      %378 = vmatpush1.msra.mxu0 0.0
      %379 = vmatprep.subr.mxu0 0.0
      %380 = vmatpush1.msra.mxu0 0.0
      %381 = vmatprep.subr.mxu0 0.0
      %382 = vmatpush1.msra.mxu0 0.0
      %383 = vmatprep.subr.mxu0 0.0
      %384 = vmatpush1.msra.mxu0 0.0
      %385 = vmatprep.subr.mxu0 0.0
      %386 = vmatpush1.msra.mxu0 0.0
      %387 = vmatprep.subr.mxu0 0.0
      %388 = vmatpush1.msra.mxu0 0.0
      %389 = vmatprep.subr.mxu0 0.0
      %390 = vmatpush1.msra.mxu0 0.0
      %391 = vmatprep.subr.mxu0 0.0
      %392 = vmatpush1.msra.mxu0 0.0
      %393 = vmatprep.subr.mxu0 0.0
      %394 = vmatpush1.msra.mxu0 0.0
      %395 = vmatprep.subr.mxu0 0.0
      %396 = vmatpush1.msra.mxu0 0.0
      %397 = vmatprep.subr.mxu0 0.0
      %398 = vmatpush1.msra.mxu0 0.0
      %399 = vmatprep.subr.mxu0 0.0
      %400 = vmatpush1.msra.mxu0 0.0
      %401 = vmatprep.mubr.f32.mxu0 0.0
      %402 = vmatmul.mubr.f32.gmra.mrb[0].mxu0 %v335
      %v403 = vpop.f32.mrb[0].mxu0
      %v404 = vadd.f32 %v84, %v403
      %v405 = vpop.f32.mrb[0].mxu0
      %406 = vdwg.mxu0
      %v407 = vtanh.pop %v404
      %v409 = vsel %vm171, %v407, 0
      %411 = vmatprep.subr.mxu0 0.0
      %412 = vmatpush1.msra.mxu0 %v45
      %413 = vmatprep.subr.mxu0 0.0
      %414 = vmatpush1.msra.mxu0 %v46
      %415 = vmatprep.subr.mxu0 0.0
      %416 = vmatpush1.msra.mxu0 %v47
      %417 = vmatprep.subr.mxu0 0.0
      %418 = vmatpush1.msra.mxu0 %v48
      %419 = vmatprep.subr.mxu0 0.0
      %420 = vmatpush1.msra.mxu0 0.0
      %421 = vmatprep.subr.mxu0 0.0
      %422 = vmatpush1.msra.mxu0 0.0
      %423 = vmatprep.subr.mxu0 0.0
      %424 = vmatpush1.msra.mxu0 0.0
      %425 = vmatprep.subr.mxu0 0.0
      %426 = vmatpush1.msra.mxu0 0.0
      %427 = vmatprep.subr.mxu0 0.0
      %428 = vmatpush1.msra.mxu0 0.0
      %429 = vmatprep.subr.mxu0 0.0
      %430 = vmatpush1.msra.mxu0 0.0
      %431 = vmatprep.subr.mxu0 0.0
      %432 = vmatpush1.msra.mxu0 0.0
      %433 = vmatprep.subr.mxu0 0.0
      %434 = vmatpush1.msra.mxu0 0.0
      %435 = vmatprep.subr.mxu0 0.0
      %436 = vmatpush1.msra.mxu0 0.0
      %437 = vmatprep.subr.mxu0 0.0
      %438 = vmatpush1.msra.mxu0 0.0
      %439 = vmatprep.subr.mxu0 0.0
      %440 = vmatpush1.msra.mxu0 0.0
      %441 = vmatprep.subr.mxu0 0.0
      %442 = vmatpush1.msra.mxu0 0.0
      %443 = vmatprep.subr.mxu0 0.0
      %444 = vmatpush1.msra.mxu0 0.0
      %445 = vmatprep.subr.mxu0 0.0
      %446 = vmatpush1.msra.mxu0 0.0
      %447 = vmatprep.subr.mxu0 0.0
      %448 = vmatpush1.msra.mxu0 0.0
      %449 = vmatprep.subr.mxu0 0.0
      %450 = vmatpush1.msra.mxu0 0.0
      %451 = vmatprep.subr.mxu0 0.0
      %452 = vmatpush1.msra.mxu0 0.0
      %453 = vmatprep.subr.mxu0 0.0
      %454 = vmatpush1.msra.mxu0 0.0
      %455 = vmatprep.subr.mxu0 0.0
      %456 = vmatpush1.msra.mxu0 0.0
      %457 = vmatprep.subr.mxu0 0.0
      %458 = vmatpush1.msra.mxu0 0.0
      %459 = vmatprep.subr.mxu0 0.0
      %460 = vmatpush1.msra.mxu0 0.0
      %461 = vmatprep.subr.mxu0 0.0
      %462 = vmatpush1.msra.mxu0 0.0
      %463 = vmatprep.subr.mxu0 0.0
      %464 = vmatpush1.msra.mxu0 0.0
      %465 = vmatprep.subr.mxu0 0.0
      %466 = vmatpush1.msra.mxu0 0.0
      %467 = vmatprep.subr.mxu0 0.0
      %468 = vmatpush1.msra.mxu0 0.0
      %469 = vmatprep.subr.mxu0 0.0
      %470 = vmatpush1.msra.mxu0 0.0
      %471 = vmatprep.subr.mxu0 0.0
      %472 = vmatpush1.msra.mxu0 0.0
      %473 = vmatprep.subr.mxu0 0.0
      %474 = vmatpush1.msra.mxu0 0.0
      %475 = vmatprep.mubr.f32.mxu0 0.0
      %476 = vmatmul.mubr.f32.gmra.mrb[0].mxu0 %v409
      %v477 = vpop.f32.mrb[0].mxu0
      %v478 = vadd.f32 %v169, %v477
      %v479 = vpop.f32.mrb[0].mxu0
      %480 = vdwg.mxu0
      %v481 = vtanh.pop %v478
      %v483 = vsel %vm171, %v481, 0
      %485 = vmatprep.subr.mxu0 0.0
      %486 = vmatpush1.msra.mxu0 %v50
      %487 = vmatprep.subr.mxu0 0.0
      %488 = vmatpush1.msra.mxu0 %v51
      %489 = vmatprep.subr.mxu0 0.0
      %490 = vmatpush1.msra.mxu0 %v52
      %491 = vmatprep.subr.mxu0 0.0
      %492 = vmatpush1.msra.mxu0 %v53
      %493 = vmatprep.subr.mxu0 0.0
      %494 = vmatpush1.msra.mxu0 0.0
      %495 = vmatprep.subr.mxu0 0.0
      %496 = vmatpush1.msra.mxu0 0.0
      %497 = vmatprep.subr.mxu0 0.0
      %498 = vmatpush1.msra.mxu0 0.0
      %499 = vmatprep.subr.mxu0 0.0
      %500 = vmatpush1.msra.mxu0 0.0
      %501 = vmatprep.subr.mxu0 0.0
      %502 = vmatpush1.msra.mxu0 0.0
      %503 = vmatprep.subr.mxu0 0.0
      %504 = vmatpush1.msra.mxu0 0.0
      %505 = vmatprep.subr.mxu0 0.0
      %506 = vmatpush1.msra.mxu0 0.0
      %507 = vmatprep.subr.mxu0 0.0
      %508 = vmatpush1.msra.mxu0 0.0
      %509 = vmatprep.subr.mxu0 0.0
      %510 = vmatpush1.msra.mxu0 0.0
      %511 = vmatprep.subr.mxu0 0.0
      %512 = vmatpush1.msra.mxu0 0.0
      %513 = vmatprep.subr.mxu0 0.0
      %514 = vmatpush1.msra.mxu0 0.0
      %515 = vmatprep.subr.mxu0 0.0
      %516 = vmatpush1.msra.mxu0 0.0
      %517 = vmatprep.subr.mxu0 0.0
      %518 = vmatpush1.msra.mxu0 0.0
      %519 = vmatprep.subr.mxu0 0.0
      %520 = vmatpush1.msra.mxu0 0.0
      %521 = vmatprep.subr.mxu0 0.0
      %522 = vmatpush1.msra.mxu0 0.0
      %523 = vmatprep.subr.mxu0 0.0
      %524 = vmatpush1.msra.mxu0 0.0
      %525 = vmatprep.subr.mxu0 0.0
      %526 = vmatpush1.msra.mxu0 0.0
      %527 = vmatprep.subr.mxu0 0.0
      %528 = vmatpush1.msra.mxu0 0.0
      %529 = vmatprep.subr.mxu0 0.0
      %530 = vmatpush1.msra.mxu0 0.0
      %531 = vmatprep.subr.mxu0 0.0
      %532 = vmatpush1.msra.mxu0 0.0
      %533 = vmatprep.subr.mxu0 0.0
      %534 = vmatpush1.msra.mxu0 0.0
      %535 = vmatprep.subr.mxu0 0.0
      %536 = vmatpush1.msra.mxu0 0.0
      %537 = vmatprep.subr.mxu0 0.0
      %538 = vmatpush1.msra.mxu0 0.0
      %539 = vmatprep.subr.mxu0 0.0
      %540 = vmatpush1.msra.mxu0 0.0
      %541 = vmatprep.subr.mxu0 0.0
      %542 = vmatpush1.msra.mxu0 0.0
      %543 = vmatprep.subr.mxu0 0.0
      %544 = vmatpush1.msra.mxu0 0.0
      %545 = vmatprep.subr.mxu0 0.0
      %546 = vmatpush1.msra.mxu0 0.0
      %547 = vmatprep.subr.mxu0 0.0
      %548 = vmatpush1.msra.mxu0 0.0
      %549 = vmatprep.mubr.f32.mxu0 0.0
      %550 = vmatmul.mubr.f32.gmra.mrb[0].mxu0 %v483
      %v551 = vpop.f32.mrb[0].mxu0
      %v552 = vadd.f32 %v250, %v551
      %v553 = vpop.f32.mrb[0].mxu0
      %554 = vdwg.mxu0
      %v555 = vmul.f32 %v326, %v552
      %v556 = vadd.f32 %v67, %v555
      %557 = vst.msk [vmem:[#allocation2] sm:$0x3] %vm59, %v556
      %558 = vst.msk [vmem:[#allocation2] sm:$0x3] %vm77, %v331
      %v559 = vld [vmem:[#allocation2] sm:$0x3]
      %v561 = vsel %vm86, %v559, 0
      %563 = vmatprep.subr.mxu0 0.0
      %564 = vmatpush1.msra.mxu0 %v42
      %565 = vmatprep.subr.mxu0 0.0
      %566 = vmatpush1.msra.mxu0 %v92
      %567 = vmatprep.subr.mxu0 0.0
      %568 = vmatpush1.msra.mxu0 0.0
      %569 = vmatprep.subr.mxu0 0.0
      %570 = vmatpush1.msra.mxu0 0.0
      %571 = vmatprep.subr.mxu0 0.0
      %572 = vmatpush1.msra.mxu0 0.0
      %573 = vmatprep.subr.mxu0 0.0
      %574 = vmatpush1.msra.mxu0 0.0
      %575 = vmatprep.subr.mxu0 0.0
      %576 = vmatpush1.msra.mxu0 0.0
      %577 = vmatprep.subr.mxu0 0.0
      %578 = vmatpush1.msra.mxu0 0.0
      %579 = vmatprep.subr.mxu0 0.0
      %580 = vmatpush1.msra.mxu0 0.0
      %581 = vmatprep.subr.mxu0 0.0
      %582 = vmatpush1.msra.mxu0 0.0
      %583 = vmatprep.subr.mxu0 0.0
      %584 = vmatpush1.msra.mxu0 0.0
      %585 = vmatprep.subr.mxu0 0.0
      %586 = vmatpush1.msra.mxu0 0.0
      %587 = vmatprep.subr.mxu0 0.0
      %588 = vmatpush1.msra.mxu0 0.0
      %589 = vmatprep.subr.mxu0 0.0
      %590 = vmatpush1.msra.mxu0 0.0
      %591 = vmatprep.subr.mxu0 0.0
      %592 = vmatpush1.msra.mxu0 0.0
      %593 = vmatprep.subr.mxu0 0.0
      %594 = vmatpush1.msra.mxu0 0.0
      %595 = vmatprep.subr.mxu0 0.0
      %596 = vmatpush1.msra.mxu0 0.0
      %597 = vmatprep.subr.mxu0 0.0
      %598 = vmatpush1.msra.mxu0 0.0
      %599 = vmatprep.subr.mxu0 0.0
      %600 = vmatpush1.msra.mxu0 0.0
      %601 = vmatprep.subr.mxu0 0.0
      %602 = vmatpush1.msra.mxu0 0.0
      %603 = vmatprep.subr.mxu0 0.0
      %604 = vmatpush1.msra.mxu0 0.0
      %605 = vmatprep.subr.mxu0 0.0
      %606 = vmatpush1.msra.mxu0 0.0
      %607 = vmatprep.subr.mxu0 0.0
      %608 = vmatpush1.msra.mxu0 0.0
      %609 = vmatprep.subr.mxu0 0.0
      %610 = vmatpush1.msra.mxu0 0.0
      %611 = vmatprep.subr.mxu0 0.0
      %612 = vmatpush1.msra.mxu0 0.0
      %613 = vmatprep.subr.mxu0 0.0
      %614 = vmatpush1.msra.mxu0 0.0
      %615 = vmatprep.subr.mxu0 0.0
      %616 = vmatpush1.msra.mxu0 0.0
      %617 = vmatprep.subr.mxu0 0.0
      %618 = vmatpush1.msra.mxu0 0.0
      %619 = vmatprep.subr.mxu0 0.0
      %620 = vmatpush1.msra.mxu0 0.0
      %621 = vmatprep.subr.mxu0 0.0
      %622 = vmatpush1.msra.mxu0 0.0
      %623 = vmatprep.subr.mxu0 0.0
      %624 = vmatpush1.msra.mxu0 0.0
      %625 = vmatprep.subr.mxu0 0.0
      %626 = vmatpush1.msra.mxu0 0.0
      %627 = vmatprep.mubr.f32.mxu0 0.0
      %628 = vmatmul.mubr.f32.gmra.mrb[0].mxu0 %v561
      %v629 = vpop.f32.mrb[0].mxu0
      %v630 = vadd.f32 %v84, %v629
      %v631 = vpop.f32.mrb[0].mxu0
      %632 = vdwg.mxu0
      %v633 = vtanh.pop %v630
      %v635 = vsel %vm171, %v633, 0
      %637 = vmatprep.subr.mxu0 0.0
      %638 = vmatpush1.msra.mxu0 %v45
      %639 = vmatprep.subr.mxu0 0.0
      %640 = vmatpush1.msra.mxu0 %v46
      %641 = vmatprep.subr.mxu0 0.0
      %642 = vmatpush1.msra.mxu0 %v47
      %643 = vmatprep.subr.mxu0 0.0
      %644 = vmatpush1.msra.mxu0 %v48
      %645 = vmatprep.subr.mxu0 0.0
      %646 = vmatpush1.msra.mxu0 0.0
      %647 = vmatprep.subr.mxu0 0.0
      %648 = vmatpush1.msra.mxu0 0.0
      %649 = vmatprep.subr.mxu0 0.0
      %650 = vmatpush1.msra.mxu0 0.0
      %651 = vmatprep.subr.mxu0 0.0
      %652 = vmatpush1.msra.mxu0 0.0
      %653 = vmatprep.subr.mxu0 0.0
      %654 = vmatpush1.msra.mxu0 0.0
      %655 = vmatprep.subr.mxu0 0.0
      %656 = vmatpush1.msra.mxu0 0.0
      %657 = vmatprep.subr.mxu0 0.0
      %658 = vmatpush1.msra.mxu0 0.0
      %659 = vmatprep.subr.mxu0 0.0
      %660 = vmatpush1.msra.mxu0 0.0
      %661 = vmatprep.subr.mxu0 0.0
      %662 = vmatpush1.msra.mxu0 0.0
      %663 = vmatprep.subr.mxu0 0.0
      %664 = vmatpush1.msra.mxu0 0.0
      %665 = vmatprep.subr.mxu0 0.0
      %666 = vmatpush1.msra.mxu0 0.0
      %667 = vmatprep.subr.mxu0 0.0
      %668 = vmatpush1.msra.mxu0 0.0
      %669 = vmatprep.subr.mxu0 0.0
      %670 = vmatpush1.msra.mxu0 0.0
      %671 = vmatprep.subr.mxu0 0.0
      %672 = vmatpush1.msra.mxu0 0.0
      %673 = vmatprep.subr.mxu0 0.0
      %674 = vmatpush1.msra.mxu0 0.0
      %675 = vmatprep.subr.mxu0 0.0
      %676 = vmatpush1.msra.mxu0 0.0
      %677 = vmatprep.subr.mxu0 0.0
      %678 = vmatpush1.msra.mxu0 0.0
      %679 = vmatprep.subr.mxu0 0.0
      %680 = vmatpush1.msra.mxu0 0.0
      %681 = vmatprep.subr.mxu0 0.0
      %682 = vmatpush1.msra.mxu0 0.0
      %683 = vmatprep.subr.mxu0 0.0
      %684 = vmatpush1.msra.mxu0 0.0
      %685 = vmatprep.subr.mxu0 0.0
      %686 = vmatpush1.msra.mxu0 0.0
      %687 = vmatprep.subr.mxu0 0.0
      %688 = vmatpush1.msra.mxu0 0.0
      %689 = vmatprep.subr.mxu0 0.0
      %690 = vmatpush1.msra.mxu0 0.0
      %691 = vmatprep.subr.mxu0 0.0
      %692 = vmatpush1.msra.mxu0 0.0
      %693 = vmatprep.subr.mxu0 0.0
      %694 = vmatpush1.msra.mxu0 0.0
      %695 = vmatprep.subr.mxu0 0.0
      %696 = vmatpush1.msra.mxu0 0.0
      %697 = vmatprep.subr.mxu0 0.0
      %698 = vmatpush1.msra.mxu0 0.0
      %699 = vmatprep.subr.mxu0 0.0
      %700 = vmatpush1.msra.mxu0 0.0
      %701 = vmatprep.mubr.f32.mxu0 0.0
      %702 = vmatmul.mubr.f32.gmra.mrb[0].mxu0 %v635
      %v703 = vpop.f32.mrb[0].mxu0
      %v704 = vadd.f32 %v169, %v703
      %v705 = vpop.f32.mrb[0].mxu0
      %706 = vdwg.mxu0
      %v707 = vtanh.pop %v704
      %v709 = vsel %vm171, %v707, 0
      %711 = vmatprep.subr.mxu0 0.0
      %712 = vmatpush1.msra.mxu0 %v50
      %713 = vmatprep.subr.mxu0 0.0
      %714 = vmatpush1.msra.mxu0 %v51
      %715 = vmatprep.subr.mxu0 0.0
      %716 = vmatpush1.msra.mxu0 %v52
      %717 = vmatprep.subr.mxu0 0.0
      %718 = vmatpush1.msra.mxu0 %v53
      %719 = vmatprep.subr.mxu0 0.0
      %720 = vmatpush1.msra.mxu0 0.0
      %721 = vmatprep.subr.mxu0 0.0
      %722 = vmatpush1.msra.mxu0 0.0
      %723 = vmatprep.subr.mxu0 0.0
      %724 = vmatpush1.msra.mxu0 0.0
      %725 = vmatprep.subr.mxu0 0.0
      %726 = vmatpush1.msra.mxu0 0.0
      %727 = vmatprep.subr.mxu0 0.0
      %728 = vmatpush1.msra.mxu0 0.0
      %729 = vmatprep.subr.mxu0 0.0
      %730 = vmatpush1.msra.mxu0 0.0
      %731 = vmatprep.subr.mxu0 0.0
      %732 = vmatpush1.msra.mxu0 0.0
      %733 = vmatprep.subr.mxu0 0.0
      %734 = vmatpush1.msra.mxu0 0.0
      %735 = vmatprep.subr.mxu0 0.0
      %736 = vmatpush1.msra.mxu0 0.0
      %737 = vmatprep.subr.mxu0 0.0
      %738 = vmatpush1.msra.mxu0 0.0
      %739 = vmatprep.subr.mxu0 0.0
      %740 = vmatpush1.msra.mxu0 0.0
      %741 = vmatprep.subr.mxu0 0.0
      %742 = vmatpush1.msra.mxu0 0.0
      %743 = vmatprep.subr.mxu0 0.0
      %744 = vmatpush1.msra.mxu0 0.0
      %745 = vmatprep.subr.mxu0 0.0
      %746 = vmatpush1.msra.mxu0 0.0
      %747 = vmatprep.subr.mxu0 0.0
      %748 = vmatpush1.msra.mxu0 0.0
      %749 = vmatprep.subr.mxu0 0.0
      %750 = vmatpush1.msra.mxu0 0.0
      %751 = vmatprep.subr.mxu0 0.0
      %752 = vmatpush1.msra.mxu0 0.0
      %753 = vmatprep.subr.mxu0 0.0
      %754 = vmatpush1.msra.mxu0 0.0
      %755 = vmatprep.subr.mxu0 0.0
      %756 = vmatpush1.msra.mxu0 0.0
      %757 = vmatprep.subr.mxu0 0.0
      %758 = vmatpush1.msra.mxu0 0.0
      %759 = vmatprep.subr.mxu0 0.0
      %760 = vmatpush1.msra.mxu0 0.0
      %761 = vmatprep.subr.mxu0 0.0
      %762 = vmatpush1.msra.mxu0 0.0
      %763 = vmatprep.subr.mxu0 0.0
      %764 = vmatpush1.msra.mxu0 0.0
      %765 = vmatprep.subr.mxu0 0.0
      %766 = vmatpush1.msra.mxu0 0.0
      %767 = vmatprep.subr.mxu0 0.0
      %768 = vmatpush1.msra.mxu0 0.0
      %769 = vmatprep.subr.mxu0 0.0
      %770 = vmatpush1.msra.mxu0 0.0
      %771 = vmatprep.subr.mxu0 0.0
      %772 = vmatpush1.msra.mxu0 0.0
      %773 = vmatprep.subr.mxu0 0.0
      %774 = vmatpush1.msra.mxu0 0.0
      %775 = vmatprep.mubr.f32.mxu0 0.0
      %776 = vmatmul.mubr.f32.gmra.mrb[0].mxu0 %v709
      %v777 = vpop.f32.mrb[0].mxu0
      %v778 = vadd.f32 %v250, %v777
      %v779 = vpop.f32.mrb[0].mxu0
      %780 = vdwg.mxu0
      %v781 = vstv %s72
      %v782 = vmul.f32 %v781, %v778
      %v783 = vadd.f32 %v67, %v782
      %s784 = sadd.f32 %s74, %s72
      %785 = vst.msk [vmem:[#allocation2] sm:$0x3] %vm59, %v783
      %v786 = vstv %s784
      %787 = vst.msk [vmem:[#allocation2] sm:$0x3] %vm77, %v786
      %v788 = vld [vmem:[#allocation2] sm:$0x3]
      %v790 = vsel %vm86, %v788, 0
      %792 = vmatprep.subr.mxu0 0.0
      %793 = vmatpush1.msra.mxu0 %v42
      %794 = vmatprep.subr.mxu0 0.0
      %795 = vmatpush1.msra.mxu0 %v92
      %796 = vmatprep.subr.mxu0 0.0
      %797 = vmatpush1.msra.mxu0 0.0
      %798 = vmatprep.subr.mxu0 0.0
      %799 = vmatpush1.msra.mxu0 0.0
      %800 = vmatprep.subr.mxu0 0.0
      %801 = vmatpush1.msra.mxu0 0.0
      %802 = vmatprep.subr.mxu0 0.0
      %803 = vmatpush1.msra.mxu0 0.0
      %804 = vmatprep.subr.mxu0 0.0
      %805 = vmatpush1.msra.mxu0 0.0
      %806 = vmatprep.subr.mxu0 0.0
      %807 = vmatpush1.msra.mxu0 0.0
      %808 = vmatprep.subr.mxu0 0.0
      %809 = vmatpush1.msra.mxu0 0.0
      %810 = vmatprep.subr.mxu0 0.0
      %811 = vmatpush1.msra.mxu0 0.0
      %812 = vmatprep.subr.mxu0 0.0
      %813 = vmatpush1.msra.mxu0 0.0
      %814 = vmatprep.subr.mxu0 0.0
      %815 = vmatpush1.msra.mxu0 0.0
      %816 = vmatprep.subr.mxu0 0.0
      %817 = vmatpush1.msra.mxu0 0.0
      %818 = vmatprep.subr.mxu0 0.0
      %819 = vmatpush1.msra.mxu0 0.0
      %820 = vmatprep.subr.mxu0 0.0
      %821 = vmatpush1.msra.mxu0 0.0
      %822 = vmatprep.subr.mxu0 0.0
      %823 = vmatpush1.msra.mxu0 0.0
      %824 = vmatprep.subr.mxu0 0.0
      %825 = vmatpush1.msra.mxu0 0.0
      %826 = vmatprep.subr.mxu0 0.0
      %827 = vmatpush1.msra.mxu0 0.0
      %828 = vmatprep.subr.mxu0 0.0
      %829 = vmatpush1.msra.mxu0 0.0
      %830 = vmatprep.subr.mxu0 0.0
      %831 = vmatpush1.msra.mxu0 0.0
      %832 = vmatprep.subr.mxu0 0.0
      %833 = vmatpush1.msra.mxu0 0.0
      %834 = vmatprep.subr.mxu0 0.0
      %835 = vmatpush1.msra.mxu0 0.0
      %836 = vmatprep.subr.mxu0 0.0
      %837 = vmatpush1.msra.mxu0 0.0
      %838 = vmatprep.subr.mxu0 0.0
      %839 = vmatpush1.msra.mxu0 0.0
      %840 = vmatprep.subr.mxu0 0.0
      %841 = vmatpush1.msra.mxu0 0.0
      %842 = vmatprep.subr.mxu0 0.0
      %843 = vmatpush1.msra.mxu0 0.0
      %844 = vmatprep.subr.mxu0 0.0
      %845 = vmatpush1.msra.mxu0 0.0
      %846 = vmatprep.subr.mxu0 0.0
      %847 = vmatpush1.msra.mxu0 0.0
      %848 = vmatprep.subr.mxu0 0.0
      %849 = vmatpush1.msra.mxu0 0.0
      %850 = vmatprep.subr.mxu0 0.0
      %851 = vmatpush1.msra.mxu0 0.0
      %852 = vmatprep.subr.mxu0 0.0
      %853 = vmatpush1.msra.mxu0 0.0
      %854 = vmatprep.subr.mxu0 0.0
      %855 = vmatpush1.msra.mxu0 0.0
      %856 = vmatprep.mubr.f32.mxu0 0.0
      %857 = vmatmul.mubr.f32.gmra.mrb[0].mxu0 %v790
      %v858 = vpop.f32.mrb[0].mxu0
      %v859 = vadd.f32 %v84, %v858
      %v860 = vpop.f32.mrb[0].mxu0
      %861 = vdwg.mxu0
      %v862 = vtanh.pop %v859
      %v864 = vsel %vm171, %v862, 0
      %866 = vmatprep.subr.mxu0 0.0
      %867 = vmatpush1.msra.mxu0 %v45
      %868 = vmatprep.subr.mxu0 0.0
      %869 = vmatpush1.msra.mxu0 %v46
      %870 = vmatprep.subr.mxu0 0.0
      %871 = vmatpush1.msra.mxu0 %v47
      %872 = vmatprep.subr.mxu0 0.0
      %873 = vmatpush1.msra.mxu0 %v48
      %874 = vmatprep.subr.mxu0 0.0
      %875 = vmatpush1.msra.mxu0 0.0
      %876 = vmatprep.subr.mxu0 0.0
      %877 = vmatpush1.msra.mxu0 0.0
      %878 = vmatprep.subr.mxu0 0.0
      %879 = vmatpush1.msra.mxu0 0.0
      %880 = vmatprep.subr.mxu0 0.0
      %881 = vmatpush1.msra.mxu0 0.0
      %882 = vmatprep.subr.mxu0 0.0
      %883 = vmatpush1.msra.mxu0 0.0
      %884 = vmatprep.subr.mxu0 0.0
      %885 = vmatpush1.msra.mxu0 0.0
      %886 = vmatprep.subr.mxu0 0.0
      %887 = vmatpush1.msra.mxu0 0.0
      %888 = vmatprep.subr.mxu0 0.0
      %889 = vmatpush1.msra.mxu0 0.0
      %890 = vmatprep.subr.mxu0 0.0
      %891 = vmatpush1.msra.mxu0 0.0
      %892 = vmatprep.subr.mxu0 0.0
      %893 = vmatpush1.msra.mxu0 0.0
      %894 = vmatprep.subr.mxu0 0.0
      %895 = vmatpush1.msra.mxu0 0.0
      %896 = vmatprep.subr.mxu0 0.0
      %897 = vmatpush1.msra.mxu0 0.0
      %898 = vmatprep.subr.mxu0 0.0
      %899 = vmatpush1.msra.mxu0 0.0
      %900 = vmatprep.subr.mxu0 0.0
      %901 = vmatpush1.msra.mxu0 0.0
      %902 = vmatprep.subr.mxu0 0.0
      %903 = vmatpush1.msra.mxu0 0.0
      %904 = vmatprep.subr.mxu0 0.0
      %905 = vmatpush1.msra.mxu0 0.0
      %906 = vmatprep.subr.mxu0 0.0
      %907 = vmatpush1.msra.mxu0 0.0
      %908 = vmatprep.subr.mxu0 0.0
      %909 = vmatpush1.msra.mxu0 0.0
      %910 = vmatprep.subr.mxu0 0.0
      %911 = vmatpush1.msra.mxu0 0.0
      %912 = vmatprep.subr.mxu0 0.0
      %913 = vmatpush1.msra.mxu0 0.0
      %914 = vmatprep.subr.mxu0 0.0
      %915 = vmatpush1.msra.mxu0 0.0
      %916 = vmatprep.subr.mxu0 0.0
      %917 = vmatpush1.msra.mxu0 0.0
      %918 = vmatprep.subr.mxu0 0.0
      %919 = vmatpush1.msra.mxu0 0.0
      %920 = vmatprep.subr.mxu0 0.0
      %921 = vmatpush1.msra.mxu0 0.0
      %922 = vmatprep.subr.mxu0 0.0
      %923 = vmatpush1.msra.mxu0 0.0
      %924 = vmatprep.subr.mxu0 0.0
      %925 = vmatpush1.msra.mxu0 0.0
      %926 = vmatprep.subr.mxu0 0.0
      %927 = vmatpush1.msra.mxu0 0.0
      %928 = vmatprep.subr.mxu0 0.0
      %929 = vmatpush1.msra.mxu0 0.0
      %930 = vmatprep.mubr.f32.mxu0 0.0
      %931 = vmatmul.mubr.f32.gmra.mrb[0].mxu0 %v864
      %v932 = vpop.f32.mrb[0].mxu0
      %v933 = vadd.f32 %v169, %v932
      %v934 = vpop.f32.mrb[0].mxu0
      %935 = vdwg.mxu0
      %v936 = vtanh.pop %v933
      %v938 = vsel %vm171, %v936, 0
      %940 = vmatprep.subr.mxu0 0.0
      %941 = vmatpush1.msra.mxu0 %v50
      %942 = vmatprep.subr.mxu0 0.0
      %943 = vmatpush1.msra.mxu0 %v51
      %944 = vmatprep.subr.mxu0 0.0
      %945 = vmatpush1.msra.mxu0 %v52
      %946 = vmatprep.subr.mxu0 0.0
      %947 = vmatpush1.msra.mxu0 %v53
      %948 = vmatprep.subr.mxu0 0.0
      %949 = vmatpush1.msra.mxu0 0.0
      %950 = vmatprep.subr.mxu0 0.0
      %951 = vmatpush1.msra.mxu0 0.0
      %952 = vmatprep.subr.mxu0 0.0
      %953 = vmatpush1.msra.mxu0 0.0
      %954 = vmatprep.subr.mxu0 0.0
      %955 = vmatpush1.msra.mxu0 0.0
      %956 = vmatprep.subr.mxu0 0.0
      %957 = vmatpush1.msra.mxu0 0.0
      %958 = vmatprep.subr.mxu0 0.0
      %959 = vmatpush1.msra.mxu0 0.0
      %960 = vmatprep.subr.mxu0 0.0
      %961 = vmatpush1.msra.mxu0 0.0
      %962 = vmatprep.subr.mxu0 0.0
      %963 = vmatpush1.msra.mxu0 0.0
      %964 = vmatprep.subr.mxu0 0.0
      %965 = vmatpush1.msra.mxu0 0.0
      %966 = vmatprep.subr.mxu0 0.0
      %967 = vmatpush1.msra.mxu0 0.0
      %968 = vmatprep.subr.mxu0 0.0
      %969 = vmatpush1.msra.mxu0 0.0
      %970 = vmatprep.subr.mxu0 0.0
      %971 = vmatpush1.msra.mxu0 0.0
      %972 = vmatprep.subr.mxu0 0.0
      %973 = vmatpush1.msra.mxu0 0.0
      %974 = vmatprep.subr.mxu0 0.0
      %975 = vmatpush1.msra.mxu0 0.0
      %976 = vmatprep.subr.mxu0 0.0
      %977 = vmatpush1.msra.mxu0 0.0
      %978 = vmatprep.subr.mxu0 0.0
      %979 = vmatpush1.msra.mxu0 0.0
      %980 = vmatprep.subr.mxu0 0.0
      %981 = vmatpush1.msra.mxu0 0.0
      %982 = vmatprep.subr.mxu0 0.0
      %983 = vmatpush1.msra.mxu0 0.0
      %984 = vmatprep.subr.mxu0 0.0
      %985 = vmatpush1.msra.mxu0 0.0
      %986 = vmatprep.subr.mxu0 0.0
      %987 = vmatpush1.msra.mxu0 0.0
      %988 = vmatprep.subr.mxu0 0.0
      %989 = vmatpush1.msra.mxu0 0.0
      %990 = vmatprep.subr.mxu0 0.0
      %991 = vmatpush1.msra.mxu0 0.0
      %992 = vmatprep.subr.mxu0 0.0
      %993 = vmatpush1.msra.mxu0 0.0
      %994 = vmatprep.subr.mxu0 0.0
      %995 = vmatpush1.msra.mxu0 0.0
      %996 = vmatprep.subr.mxu0 0.0
      %997 = vmatpush1.msra.mxu0 0.0
      %998 = vmatprep.subr.mxu0 0.0
      %999 = vmatpush1.msra.mxu0 0.0
      %1000 = vmatprep.subr.mxu0 0.0
      %1001 = vmatpush1.msra.mxu0 0.0
      %1002 = vmatprep.subr.mxu0 0.0
      %1003 = vmatpush1.msra.mxu0 0.0
      %1004 = vmatprep.mubr.f32.mxu0 0.0
      %1005 = vmatmul.mubr.f32.gmra.mrb[0].mxu0 %v938
      %v1006 = vpop.f32.mrb[0].mxu0
      %v1007 = vadd.f32 %v250, %v1006
      %v1008 = vpop.f32.mrb[0].mxu0
      %1009 = vdwg.mxu0
      %v1010 = vrcp.pop 6.0
      %s1011 = vtos %v1010
      %s1012 = smul.f32 %s72, %s1011
      %v1013 = vmul.f32 %v552, 2.0
      %v1014 = vadd.f32 %v322, %v1013
      %v1015 = vmul.f32 %v778, 2.0
      %v1016 = vadd.f32 %v1014, %v1015
      %v1017 = vadd.f32 %v1016, %v1007
      %v1018 = vstv %s1012
      %v1019 = vmul.f32 %v1018, %v1017
      %v1020 = vadd.f32 %v67, %v1019
      %s1021 = sadd.f32 %s68, %s72
      %1022 = vst.msk [vmem:[#allocation2] sm:$0x3] %vm59, %v1020
      %v1023 = vstv %s1021
      %1024 = vst.msk [vmem:[#allocation2] sm:$0x3] %vm77, %v1023
      %v1025 = vld [vmem:[#allocation2] sm:$0x3]
      %v1027 = vsel %vm86, %v1025, 0
      %1029 = vmatprep.subr.mxu0 0.0
      %1030 = vmatpush1.msra.mxu0 %v42
      %1031 = vmatprep.subr.mxu0 0.0
      %1032 = vmatpush1.msra.mxu0 %v92
      %1033 = vmatprep.subr.mxu0 0.0
      %1034 = vmatpush1.msra.mxu0 0.0
      %1035 = vmatprep.subr.mxu0 0.0
      %1036 = vmatpush1.msra.mxu0 0.0
      %1037 = vmatprep.subr.mxu0 0.0
      %1038 = vmatpush1.msra.mxu0 0.0
      %1039 = vmatprep.subr.mxu0 0.0
      %1040 = vmatpush1.msra.mxu0 0.0
      %1041 = vmatprep.subr.mxu0 0.0
      %1042 = vmatpush1.msra.mxu0 0.0
      %1043 = vmatprep.subr.mxu0 0.0
      %1044 = vmatpush1.msra.mxu0 0.0
      %1045 = vmatprep.subr.mxu0 0.0
      %1046 = vmatpush1.msra.mxu0 0.0
      %1047 = vmatprep.subr.mxu0 0.0
      %1048 = vmatpush1.msra.mxu0 0.0
      %1049 = vmatprep.subr.mxu0 0.0
      %1050 = vmatpush1.msra.mxu0 0.0
      %1051 = vmatprep.subr.mxu0 0.0
      %1052 = vmatpush1.msra.mxu0 0.0
      %1053 = vmatprep.subr.mxu0 0.0
      %1054 = vmatpush1.msra.mxu0 0.0
      %1055 = vmatprep.subr.mxu0 0.0
      %1056 = vmatpush1.msra.mxu0 0.0
      %1057 = vmatprep.subr.mxu0 0.0
      %1058 = vmatpush1.msra.mxu0 0.0
      %1059 = vmatprep.subr.mxu0 0.0
      %1060 = vmatpush1.msra.mxu0 0.0
      %1061 = vmatprep.subr.mxu0 0.0
      %1062 = vmatpush1.msra.mxu0 0.0
      %1063 = vmatprep.subr.mxu0 0.0
      %1064 = vmatpush1.msra.mxu0 0.0
      %1065 = vmatprep.subr.mxu0 0.0
      %1066 = vmatpush1.msra.mxu0 0.0
      %1067 = vmatprep.subr.mxu0 0.0
      %1068 = vmatpush1.msra.mxu0 0.0
      %1069 = vmatprep.subr.mxu0 0.0
      %1070 = vmatpush1.msra.mxu0 0.0
      %1071 = vmatprep.subr.mxu0 0.0
      %1072 = vmatpush1.msra.mxu0 0.0
      %1073 = vmatprep.subr.mxu0 0.0
      %1074 = vmatpush1.msra.mxu0 0.0
      %1075 = vmatprep.subr.mxu0 0.0
      %1076 = vmatpush1.msra.mxu0 0.0
      %1077 = vmatprep.subr.mxu0 0.0
      %1078 = vmatpush1.msra.mxu0 0.0
      %1079 = vmatprep.subr.mxu0 0.0
      %1080 = vmatpush1.msra.mxu0 0.0
      %1081 = vmatprep.subr.mxu0 0.0
      %1082 = vmatpush1.msra.mxu0 0.0
      %1083 = vmatprep.subr.mxu0 0.0
      %1084 = vmatpush1.msra.mxu0 0.0
      %1085 = vmatprep.subr.mxu0 0.0
      %1086 = vmatpush1.msra.mxu0 0.0
      %1087 = vmatprep.subr.mxu0 0.0
      %1088 = vmatpush1.msra.mxu0 0.0
      %1089 = vmatprep.subr.mxu0 0.0
      %1090 = vmatpush1.msra.mxu0 0.0
      %1091 = vmatprep.subr.mxu0 0.0
      %1092 = vmatpush1.msra.mxu0 0.0
      %1093 = vmatprep.mubr.f32.mxu0 0.0
      %1094 = vmatmul.mubr.f32.gmra.mrb[0].mxu0 %v1027
      %v1095 = vpop.f32.mrb[0].mxu0
      %v1096 = vadd.f32 %v84, %v1095
      %v1097 = vpop.f32.mrb[0].mxu0
      %1098 = vdwg.mxu0
      %v1099 = vtanh.pop %v1096
      %v1101 = vsel %vm171, %v1099, 0
      %1103 = vmatprep.subr.mxu0 0.0
      %1104 = vmatpush1.msra.mxu0 %v45
      %1105 = vmatprep.subr.mxu0 0.0
      %1106 = vmatpush1.msra.mxu0 %v46
      %1107 = vmatprep.subr.mxu0 0.0
      %1108 = vmatpush1.msra.mxu0 %v47
      %1109 = vmatprep.subr.mxu0 0.0
      %1110 = vmatpush1.msra.mxu0 %v48
      %1111 = vmatprep.subr.mxu0 0.0
      %1112 = vmatpush1.msra.mxu0 0.0
      %1113 = vmatprep.subr.mxu0 0.0
      %1114 = vmatpush1.msra.mxu0 0.0
      %1115 = vmatprep.subr.mxu0 0.0
      %1116 = vmatpush1.msra.mxu0 0.0
      %1117 = vmatprep.subr.mxu0 0.0
      %1118 = vmatpush1.msra.mxu0 0.0
      %1119 = vmatprep.subr.mxu0 0.0
      %1120 = vmatpush1.msra.mxu0 0.0
      %1121 = vmatprep.subr.mxu0 0.0
      %1122 = vmatpush1.msra.mxu0 0.0
      %1123 = vmatprep.subr.mxu0 0.0
      %1124 = vmatpush1.msra.mxu0 0.0
      %1125 = vmatprep.subr.mxu0 0.0
      %1126 = vmatpush1.msra.mxu0 0.0
      %1127 = vmatprep.subr.mxu0 0.0
      %1128 = vmatpush1.msra.mxu0 0.0
      %1129 = vmatprep.subr.mxu0 0.0
      %1130 = vmatpush1.msra.mxu0 0.0
      %1131 = vmatprep.subr.mxu0 0.0
      %1132 = vmatpush1.msra.mxu0 0.0
      %1133 = vmatprep.subr.mxu0 0.0
      %1134 = vmatpush1.msra.mxu0 0.0
      %1135 = vmatprep.subr.mxu0 0.0
      %1136 = vmatpush1.msra.mxu0 0.0
      %1137 = vmatprep.subr.mxu0 0.0
      %1138 = vmatpush1.msra.mxu0 0.0
      %1139 = vmatprep.subr.mxu0 0.0
      %1140 = vmatpush1.msra.mxu0 0.0
      %1141 = vmatprep.subr.mxu0 0.0
      %1142 = vmatpush1.msra.mxu0 0.0
      %1143 = vmatprep.subr.mxu0 0.0
      %1144 = vmatpush1.msra.mxu0 0.0
      %1145 = vmatprep.subr.mxu0 0.0
      %1146 = vmatpush1.msra.mxu0 0.0
      %1147 = vmatprep.subr.mxu0 0.0
      %1148 = vmatpush1.msra.mxu0 0.0
      %1149 = vmatprep.subr.mxu0 0.0
      %1150 = vmatpush1.msra.mxu0 0.0
      %1151 = vmatprep.subr.mxu0 0.0
      %1152 = vmatpush1.msra.mxu0 0.0
      %1153 = vmatprep.subr.mxu0 0.0
      %1154 = vmatpush1.msra.mxu0 0.0
      %1155 = vmatprep.subr.mxu0 0.0
      %1156 = vmatpush1.msra.mxu0 0.0
      %1157 = vmatprep.subr.mxu0 0.0
      %1158 = vmatpush1.msra.mxu0 0.0
      %1159 = vmatprep.subr.mxu0 0.0
      %1160 = vmatpush1.msra.mxu0 0.0
      %1161 = vmatprep.subr.mxu0 0.0
      %1162 = vmatpush1.msra.mxu0 0.0
      %1163 = vmatprep.subr.mxu0 0.0
      %1164 = vmatpush1.msra.mxu0 0.0
      %1165 = vmatprep.subr.mxu0 0.0
      %1166 = vmatpush1.msra.mxu0 0.0
      %1167 = vmatprep.mubr.f32.mxu0 0.0
      %1168 = vmatmul.mubr.f32.gmra.mrb[0].mxu0 %v1101
      %v1169 = vpop.f32.mrb[0].mxu0
      %v1170 = vadd.f32 %v169, %v1169
      %v1171 = vpop.f32.mrb[0].mxu0
      %1172 = vdwg.mxu0
      %v1173 = vtanh.pop %v1170
      %v1175 = vsel %vm171, %v1173, 0
      %1177 = vmatprep.subr.mxu0 0.0
      %1178 = vmatpush1.msra.mxu0 %v50
      %1179 = vmatprep.subr.mxu0 0.0
      %1180 = vmatpush1.msra.mxu0 %v51
      %1181 = vmatprep.subr.mxu0 0.0
      %1182 = vmatpush1.msra.mxu0 %v52
      %1183 = vmatprep.subr.mxu0 0.0
      %1184 = vmatpush1.msra.mxu0 %v53
      %1185 = vmatprep.subr.mxu0 0.0
      %1186 = vmatpush1.msra.mxu0 0.0
      %1187 = vmatprep.subr.mxu0 0.0
      %1188 = vmatpush1.msra.mxu0 0.0
      %1189 = vmatprep.subr.mxu0 0.0
      %1190 = vmatpush1.msra.mxu0 0.0
      %1191 = vmatprep.subr.mxu0 0.0
      %1192 = vmatpush1.msra.mxu0 0.0
      %1193 = vmatprep.subr.mxu0 0.0
      %1194 = vmatpush1.msra.mxu0 0.0
      %1195 = vmatprep.subr.mxu0 0.0
      %1196 = vmatpush1.msra.mxu0 0.0
      %1197 = vmatprep.subr.mxu0 0.0
      %1198 = vmatpush1.msra.mxu0 0.0
      %1199 = vmatprep.subr.mxu0 0.0
      %1200 = vmatpush1.msra.mxu0 0.0
      %1201 = vmatprep.subr.mxu0 0.0
      %1202 = vmatpush1.msra.mxu0 0.0
      %1203 = vmatprep.subr.mxu0 0.0
      %1204 = vmatpush1.msra.mxu0 0.0
      %1205 = vmatprep.subr.mxu0 0.0
      %1206 = vmatpush1.msra.mxu0 0.0
      %1207 = vmatprep.subr.mxu0 0.0
      %1208 = vmatpush1.msra.mxu0 0.0
      %1209 = vmatprep.subr.mxu0 0.0
      %1210 = vmatpush1.msra.mxu0 0.0
      %1211 = vmatprep.subr.mxu0 0.0
      %1212 = vmatpush1.msra.mxu0 0.0
      %1213 = vmatprep.subr.mxu0 0.0
      %1214 = vmatpush1.msra.mxu0 0.0
      %1215 = vmatprep.subr.mxu0 0.0
      %1216 = vmatpush1.msra.mxu0 0.0
      %1217 = vmatprep.subr.mxu0 0.0
      %1218 = vmatpush1.msra.mxu0 0.0
      %1219 = vmatprep.subr.mxu0 0.0
      %1220 = vmatpush1.msra.mxu0 0.0
      %1221 = vmatprep.subr.mxu0 0.0
      %1222 = vmatpush1.msra.mxu0 0.0
      %1223 = vmatprep.subr.mxu0 0.0
      %1224 = vmatpush1.msra.mxu0 0.0
      %1225 = vmatprep.subr.mxu0 0.0
      %1226 = vmatpush1.msra.mxu0 0.0
      %1227 = vmatprep.subr.mxu0 0.0
      %1228 = vmatpush1.msra.mxu0 0.0
      %1229 = vmatprep.subr.mxu0 0.0
      %1230 = vmatpush1.msra.mxu0 0.0
      %1231 = vmatprep.subr.mxu0 0.0
      %1232 = vmatpush1.msra.mxu0 0.0
      %1233 = vmatprep.subr.mxu0 0.0
      %1234 = vmatpush1.msra.mxu0 0.0
      %1235 = vmatprep.subr.mxu0 0.0
      %1236 = vmatpush1.msra.mxu0 0.0
      %1237 = vmatprep.subr.mxu0 0.0
      %1238 = vmatpush1.msra.mxu0 0.0
      %1239 = vmatprep.subr.mxu0 0.0
      %1240 = vmatpush1.msra.mxu0 0.0
      %1241 = vmatprep.mubr.f32.mxu0 0.0
      %1242 = vmatmul.mubr.f32.gmra.mrb[0].mxu0 %v1175
      %v1243 = vpop.f32.mrb[0].mxu0
      %v1244 = vadd.f32 %v250, %v1243
      %v1245 = vpop.f32.mrb[0].mxu0
      %1246 = vdwg.mxu0
      %v1247 = vmul.f32 %v326, %v1244
      %v1248 = vadd.f32 %v1020, %v1247
      %s1249 = sadd.f32 %s1021, %s325
      %1250 = vst.msk [vmem:[#allocation2] sm:$0x3] %vm59, %v1248
      %v1251 = vstv %s1249
      %1252 = vst.msk [vmem:[#allocation2] sm:$0x3] %vm77, %v1251
      %v1253 = vld [vmem:[#allocation2] sm:$0x3]
      %v1255 = vsel %vm86, %v1253, 0
      %1257 = vmatprep.subr.mxu0 0.0
      %1258 = vmatpush1.msra.mxu0 %v42
      %1259 = vmatprep.subr.mxu0 0.0
      %1260 = vmatpush1.msra.mxu0 %v92
      %1261 = vmatprep.subr.mxu0 0.0
      %1262 = vmatpush1.msra.mxu0 0.0
      %1263 = vmatprep.subr.mxu0 0.0
      %1264 = vmatpush1.msra.mxu0 0.0
      %1265 = vmatprep.subr.mxu0 0.0
      %1266 = vmatpush1.msra.mxu0 0.0
      %1267 = vmatprep.subr.mxu0 0.0
      %1268 = vmatpush1.msra.mxu0 0.0
      %1269 = vmatprep.subr.mxu0 0.0
      %1270 = vmatpush1.msra.mxu0 0.0
      %1271 = vmatprep.subr.mxu0 0.0
      %1272 = vmatpush1.msra.mxu0 0.0
      %1273 = vmatprep.subr.mxu0 0.0
      %1274 = vmatpush1.msra.mxu0 0.0
      %1275 = vmatprep.subr.mxu0 0.0
      %1276 = vmatpush1.msra.mxu0 0.0
      %1277 = vmatprep.subr.mxu0 0.0
      %1278 = vmatpush1.msra.mxu0 0.0
      %1279 = vmatprep.subr.mxu0 0.0
      %1280 = vmatpush1.msra.mxu0 0.0
      %1281 = vmatprep.subr.mxu0 0.0
      %1282 = vmatpush1.msra.mxu0 0.0
      %1283 = vmatprep.subr.mxu0 0.0
      %1284 = vmatpush1.msra.mxu0 0.0
      %1285 = vmatprep.subr.mxu0 0.0
      %1286 = vmatpush1.msra.mxu0 0.0
      %1287 = vmatprep.subr.mxu0 0.0
      %1288 = vmatpush1.msra.mxu0 0.0
      %1289 = vmatprep.subr.mxu0 0.0
      %1290 = vmatpush1.msra.mxu0 0.0
      %1291 = vmatprep.subr.mxu0 0.0
      %1292 = vmatpush1.msra.mxu0 0.0
      %1293 = vmatprep.subr.mxu0 0.0
      %1294 = vmatpush1.msra.mxu0 0.0
      %1295 = vmatprep.subr.mxu0 0.0
      %1296 = vmatpush1.msra.mxu0 0.0
      %1297 = vmatprep.subr.mxu0 0.0
      %1298 = vmatpush1.msra.mxu0 0.0
      %1299 = vmatprep.subr.mxu0 0.0
      %1300 = vmatpush1.msra.mxu0 0.0
      %1301 = vmatprep.subr.mxu0 0.0
      %1302 = vmatpush1.msra.mxu0 0.0
      %1303 = vmatprep.subr.mxu0 0.0
      %1304 = vmatpush1.msra.mxu0 0.0
      %1305 = vmatprep.subr.mxu0 0.0
      %1306 = vmatpush1.msra.mxu0 0.0
      %1307 = vmatprep.subr.mxu0 0.0
      %1308 = vmatpush1.msra.mxu0 0.0
      %1309 = vmatprep.subr.mxu0 0.0
      %1310 = vmatpush1.msra.mxu0 0.0
      %1311 = vmatprep.subr.mxu0 0.0
      %1312 = vmatpush1.msra.mxu0 0.0
      %1313 = vmatprep.subr.mxu0 0.0
      %1314 = vmatpush1.msra.mxu0 0.0
      %1315 = vmatprep.subr.mxu0 0.0
      %1316 = vmatpush1.msra.mxu0 0.0
      %1317 = vmatprep.subr.mxu0 0.0
      %1318 = vmatpush1.msra.mxu0 0.0
      %1319 = vmatprep.subr.mxu0 0.0
      %1320 = vmatpush1.msra.mxu0 0.0
      %1321 = vmatprep.mubr.f32.mxu0 0.0
      %1322 = vmatmul.mubr.f32.gmra.mrb[0].mxu0 %v1255
      %v1323 = vpop.f32.mrb[0].mxu0
      %v1324 = vadd.f32 %v84, %v1323
      %v1325 = vpop.f32.mrb[0].mxu0
      %1326 = vdwg.mxu0
      %v1327 = vtanh.pop %v1324
      %v1329 = vsel %vm171, %v1327, 0
      %1331 = vmatprep.subr.mxu0 0.0
      %1332 = vmatpush1.msra.mxu0 %v45
      %1333 = vmatprep.subr.mxu0 0.0
      %1334 = vmatpush1.msra.mxu0 %v46
      %1335 = vmatprep.subr.mxu0 0.0
      %1336 = vmatpush1.msra.mxu0 %v47
      %1337 = vmatprep.subr.mxu0 0.0
      %1338 = vmatpush1.msra.mxu0 %v48
      %1339 = vmatprep.subr.mxu0 0.0
      %1340 = vmatpush1.msra.mxu0 0.0
      %1341 = vmatprep.subr.mxu0 0.0
      %1342 = vmatpush1.msra.mxu0 0.0
      %1343 = vmatprep.subr.mxu0 0.0
      %1344 = vmatpush1.msra.mxu0 0.0
      %1345 = vmatprep.subr.mxu0 0.0
      %1346 = vmatpush1.msra.mxu0 0.0
      %1347 = vmatprep.subr.mxu0 0.0
      %1348 = vmatpush1.msra.mxu0 0.0
      %1349 = vmatprep.subr.mxu0 0.0
      %1350 = vmatpush1.msra.mxu0 0.0
      %1351 = vmatprep.subr.mxu0 0.0
      %1352 = vmatpush1.msra.mxu0 0.0
      %1353 = vmatprep.subr.mxu0 0.0
      %1354 = vmatpush1.msra.mxu0 0.0
      %1355 = vmatprep.subr.mxu0 0.0
      %1356 = vmatpush1.msra.mxu0 0.0
      %1357 = vmatprep.subr.mxu0 0.0
      %1358 = vmatpush1.msra.mxu0 0.0
      %1359 = vmatprep.subr.mxu0 0.0
      %1360 = vmatpush1.msra.mxu0 0.0
      %1361 = vmatprep.subr.mxu0 0.0
      %1362 = vmatpush1.msra.mxu0 0.0
      %1363 = vmatprep.subr.mxu0 0.0
      %1364 = vmatpush1.msra.mxu0 0.0
      %1365 = vmatprep.subr.mxu0 0.0
      %1366 = vmatpush1.msra.mxu0 0.0
      %1367 = vmatprep.subr.mxu0 0.0
      %1368 = vmatpush1.msra.mxu0 0.0
      %1369 = vmatprep.subr.mxu0 0.0
      %1370 = vmatpush1.msra.mxu0 0.0
      %1371 = vmatprep.subr.mxu0 0.0
      %1372 = vmatpush1.msra.mxu0 0.0
      %1373 = vmatprep.subr.mxu0 0.0
      %1374 = vmatpush1.msra.mxu0 0.0
      %1375 = vmatprep.subr.mxu0 0.0
      %1376 = vmatpush1.msra.mxu0 0.0
      %1377 = vmatprep.subr.mxu0 0.0
      %1378 = vmatpush1.msra.mxu0 0.0
      %1379 = vmatprep.subr.mxu0 0.0
      %1380 = vmatpush1.msra.mxu0 0.0
      %1381 = vmatprep.subr.mxu0 0.0
      %1382 = vmatpush1.msra.mxu0 0.0
      %1383 = vmatprep.subr.mxu0 0.0
      %1384 = vmatpush1.msra.mxu0 0.0
      %1385 = vmatprep.subr.mxu0 0.0
      %1386 = vmatpush1.msra.mxu0 0.0
      %1387 = vmatprep.subr.mxu0 0.0
      %1388 = vmatpush1.msra.mxu0 0.0
      %1389 = vmatprep.subr.mxu0 0.0
      %1390 = vmatpush1.msra.mxu0 0.0
      %1391 = vmatprep.subr.mxu0 0.0
      %1392 = vmatpush1.msra.mxu0 0.0
      %1393 = vmatprep.subr.mxu0 0.0
      %1394 = vmatpush1.msra.mxu0 0.0
      %1395 = vmatprep.mubr.f32.mxu0 0.0
      %1396 = vmatmul.mubr.f32.gmra.mrb[0].mxu0 %v1329
      %v1397 = vpop.f32.mrb[0].mxu0
      %v1398 = vadd.f32 %v169, %v1397
      %v1399 = vpop.f32.mrb[0].mxu0
      %1400 = vdwg.mxu0
      %v1401 = vtanh.pop %v1398
      %v1403 = vsel %vm171, %v1401, 0
      %1405 = vmatprep.subr.mxu0 0.0
      %1406 = vmatpush1.msra.mxu0 %v50
      %1407 = vmatprep.subr.mxu0 0.0
      %1408 = vmatpush1.msra.mxu0 %v51
      %1409 = vmatprep.subr.mxu0 0.0
      %1410 = vmatpush1.msra.mxu0 %v52
      %1411 = vmatprep.subr.mxu0 0.0
      %1412 = vmatpush1.msra.mxu0 %v53
      %1413 = vmatprep.subr.mxu0 0.0
      %1414 = vmatpush1.msra.mxu0 0.0
      %1415 = vmatprep.subr.mxu0 0.0
      %1416 = vmatpush1.msra.mxu0 0.0
      %1417 = vmatprep.subr.mxu0 0.0
      %1418 = vmatpush1.msra.mxu0 0.0
      %1419 = vmatprep.subr.mxu0 0.0
      %1420 = vmatpush1.msra.mxu0 0.0
      %1421 = vmatprep.subr.mxu0 0.0
      %1422 = vmatpush1.msra.mxu0 0.0
      %1423 = vmatprep.subr.mxu0 0.0
      %1424 = vmatpush1.msra.mxu0 0.0
      %1425 = vmatprep.subr.mxu0 0.0
      %1426 = vmatpush1.msra.mxu0 0.0
      %1427 = vmatprep.subr.mxu0 0.0
      %1428 = vmatpush1.msra.mxu0 0.0
      %1429 = vmatprep.subr.mxu0 0.0
      %1430 = vmatpush1.msra.mxu0 0.0
      %1431 = vmatprep.subr.mxu0 0.0
      %1432 = vmatpush1.msra.mxu0 0.0
      %1433 = vmatprep.subr.mxu0 0.0
      %1434 = vmatpush1.msra.mxu0 0.0
      %1435 = vmatprep.subr.mxu0 0.0
      %1436 = vmatpush1.msra.mxu0 0.0
      %1437 = vmatprep.subr.mxu0 0.0
      %1438 = vmatpush1.msra.mxu0 0.0
      %1439 = vmatprep.subr.mxu0 0.0
      %1440 = vmatpush1.msra.mxu0 0.0
      %1441 = vmatprep.subr.mxu0 0.0
      %1442 = vmatpush1.msra.mxu0 0.0
      %1443 = vmatprep.subr.mxu0 0.0
      %1444 = vmatpush1.msra.mxu0 0.0
      %1445 = vmatprep.subr.mxu0 0.0
      %1446 = vmatpush1.msra.mxu0 0.0
      %1447 = vmatprep.subr.mxu0 0.0
      %1448 = vmatpush1.msra.mxu0 0.0
      %1449 = vmatprep.subr.mxu0 0.0
      %1450 = vmatpush1.msra.mxu0 0.0
      %1451 = vmatprep.subr.mxu0 0.0
      %1452 = vmatpush1.msra.mxu0 0.0
      %1453 = vmatprep.subr.mxu0 0.0
      %1454 = vmatpush1.msra.mxu0 0.0
      %1455 = vmatprep.subr.mxu0 0.0
      %1456 = vmatpush1.msra.mxu0 0.0
      %1457 = vmatprep.subr.mxu0 0.0
      %1458 = vmatpush1.msra.mxu0 0.0
      %1459 = vmatprep.subr.mxu0 0.0
      %1460 = vmatpush1.msra.mxu0 0.0
      %1461 = vmatprep.subr.mxu0 0.0
      %1462 = vmatpush1.msra.mxu0 0.0
      %1463 = vmatprep.subr.mxu0 0.0
      %1464 = vmatpush1.msra.mxu0 0.0
      %1465 = vmatprep.subr.mxu0 0.0
      %1466 = vmatpush1.msra.mxu0 0.0
      %1467 = vmatprep.subr.mxu0 0.0
      %1468 = vmatpush1.msra.mxu0 0.0
      %1469 = vmatprep.mubr.f32.mxu0 0.0
      %1470 = vmatmul.mubr.f32.gmra.mrb[0].mxu0 %v1403
      %v1471 = vpop.f32.mrb[0].mxu0
      %v1472 = vadd.f32 %v250, %v1471
      %v1473 = vpop.f32.mrb[0].mxu0
      %1474 = vdwg.mxu0
      %v1475 = vmul.f32 %v326, %v1472
      %v1476 = vadd.f32 %v1020, %v1475
      %1477 = vst.msk [vmem:[#allocation2] sm:$0x3] %vm59, %v1476
      %1478 = vst.msk [vmem:[#allocation2] sm:$0x3] %vm77, %v1251
      %v1479 = vld [vmem:[#allocation2] sm:$0x3]
      %v1481 = vsel %vm86, %v1479, 0
      %1483 = vmatprep.subr.mxu0 0.0
      %1484 = vmatpush1.msra.mxu0 %v42
      %1485 = vmatprep.subr.mxu0 0.0
      %1486 = vmatpush1.msra.mxu0 %v92
      %1487 = vmatprep.subr.mxu0 0.0
      %1488 = vmatpush1.msra.mxu0 0.0
      %1489 = vmatprep.subr.mxu0 0.0
      %1490 = vmatpush1.msra.mxu0 0.0
      %1491 = vmatprep.subr.mxu0 0.0
      %1492 = vmatpush1.msra.mxu0 0.0
      %1493 = vmatprep.subr.mxu0 0.0
      %1494 = vmatpush1.msra.mxu0 0.0
      %1495 = vmatprep.subr.mxu0 0.0
      %1496 = vmatpush1.msra.mxu0 0.0
      %1497 = vmatprep.subr.mxu0 0.0
      %1498 = vmatpush1.msra.mxu0 0.0
      %1499 = vmatprep.subr.mxu0 0.0
      %1500 = vmatpush1.msra.mxu0 0.0
      %1501 = vmatprep.subr.mxu0 0.0
      %1502 = vmatpush1.msra.mxu0 0.0
      %1503 = vmatprep.subr.mxu0 0.0
      %1504 = vmatpush1.msra.mxu0 0.0
      %1505 = vmatprep.subr.mxu0 0.0
      %1506 = vmatpush1.msra.mxu0 0.0
      %1507 = vmatprep.subr.mxu0 0.0
      %1508 = vmatpush1.msra.mxu0 0.0
      %1509 = vmatprep.subr.mxu0 0.0
      %1510 = vmatpush1.msra.mxu0 0.0
      %1511 = vmatprep.subr.mxu0 0.0
      %1512 = vmatpush1.msra.mxu0 0.0
      %1513 = vmatprep.subr.mxu0 0.0
      %1514 = vmatpush1.msra.mxu0 0.0
      %1515 = vmatprep.subr.mxu0 0.0
      %1516 = vmatpush1.msra.mxu0 0.0
      %1517 = vmatprep.subr.mxu0 0.0
      %1518 = vmatpush1.msra.mxu0 0.0
      %1519 = vmatprep.subr.mxu0 0.0
      %1520 = vmatpush1.msra.mxu0 0.0
      %1521 = vmatprep.subr.mxu0 0.0
      %1522 = vmatpush1.msra.mxu0 0.0
      %1523 = vmatprep.subr.mxu0 0.0
      %1524 = vmatpush1.msra.mxu0 0.0
      %1525 = vmatprep.subr.mxu0 0.0
      %1526 = vmatpush1.msra.mxu0 0.0
      %1527 = vmatprep.subr.mxu0 0.0
      %1528 = vmatpush1.msra.mxu0 0.0
      %1529 = vmatprep.subr.mxu0 0.0
      %1530 = vmatpush1.msra.mxu0 0.0
      %1531 = vmatprep.subr.mxu0 0.0
      %1532 = vmatpush1.msra.mxu0 0.0
      %1533 = vmatprep.subr.mxu0 0.0
      %1534 = vmatpush1.msra.mxu0 0.0
      %1535 = vmatprep.subr.mxu0 0.0
      %1536 = vmatpush1.msra.mxu0 0.0
      %1537 = vmatprep.subr.mxu0 0.0
      %1538 = vmatpush1.msra.mxu0 0.0
      %1539 = vmatprep.subr.mxu0 0.0
      %1540 = vmatpush1.msra.mxu0 0.0
      %1541 = vmatprep.subr.mxu0 0.0
      %1542 = vmatpush1.msra.mxu0 0.0
      %1543 = vmatprep.subr.mxu0 0.0
      %1544 = vmatpush1.msra.mxu0 0.0
      %1545 = vmatprep.subr.mxu0 0.0
      %1546 = vmatpush1.msra.mxu0 0.0
      %1547 = vmatprep.mubr.f32.mxu0 0.0
      %1548 = vmatmul.mubr.f32.gmra.mrb[0].mxu0 %v1481
      %v1549 = vpop.f32.mrb[0].mxu0
      %v1550 = vadd.f32 %v84, %v1549
      %v1551 = vpop.f32.mrb[0].mxu0
      %1552 = vdwg.mxu0
      %v1553 = vtanh.pop %v1550
      %v1555 = vsel %vm171, %v1553, 0
      %1557 = vmatprep.subr.mxu0 0.0
      %1558 = vmatpush1.msra.mxu0 %v45
      %1559 = vmatprep.subr.mxu0 0.0
      %1560 = vmatpush1.msra.mxu0 %v46
      %1561 = vmatprep.subr.mxu0 0.0
      %1562 = vmatpush1.msra.mxu0 %v47
      %1563 = vmatprep.subr.mxu0 0.0
      %1564 = vmatpush1.msra.mxu0 %v48
      %1565 = vmatprep.subr.mxu0 0.0
      %1566 = vmatpush1.msra.mxu0 0.0
      %1567 = vmatprep.subr.mxu0 0.0
      %1568 = vmatpush1.msra.mxu0 0.0
      %1569 = vmatprep.subr.mxu0 0.0
      %1570 = vmatpush1.msra.mxu0 0.0
      %1571 = vmatprep.subr.mxu0 0.0
      %1572 = vmatpush1.msra.mxu0 0.0
      %1573 = vmatprep.subr.mxu0 0.0
      %1574 = vmatpush1.msra.mxu0 0.0
      %1575 = vmatprep.subr.mxu0 0.0
      %1576 = vmatpush1.msra.mxu0 0.0
      %1577 = vmatprep.subr.mxu0 0.0
      %1578 = vmatpush1.msra.mxu0 0.0
      %1579 = vmatprep.subr.mxu0 0.0
      %1580 = vmatpush1.msra.mxu0 0.0
      %1581 = vmatprep.subr.mxu0 0.0
      %1582 = vmatpush1.msra.mxu0 0.0
      %1583 = vmatprep.subr.mxu0 0.0
      %1584 = vmatpush1.msra.mxu0 0.0
      %1585 = vmatprep.subr.mxu0 0.0
      %1586 = vmatpush1.msra.mxu0 0.0
      %1587 = vmatprep.subr.mxu0 0.0
      %1588 = vmatpush1.msra.mxu0 0.0
      %1589 = vmatprep.subr.mxu0 0.0
      %1590 = vmatpush1.msra.mxu0 0.0
      %1591 = vmatprep.subr.mxu0 0.0
      %1592 = vmatpush1.msra.mxu0 0.0
      %1593 = vmatprep.subr.mxu0 0.0
      %1594 = vmatpush1.msra.mxu0 0.0
      %1595 = vmatprep.subr.mxu0 0.0
      %1596 = vmatpush1.msra.mxu0 0.0
      %1597 = vmatprep.subr.mxu0 0.0
      %1598 = vmatpush1.msra.mxu0 0.0
      %1599 = vmatprep.subr.mxu0 0.0
      %1600 = vmatpush1.msra.mxu0 0.0
      %1601 = vmatprep.subr.mxu0 0.0
      %1602 = vmatpush1.msra.mxu0 0.0
      %1603 = vmatprep.subr.mxu0 0.0
      %1604 = vmatpush1.msra.mxu0 0.0
      %1605 = vmatprep.subr.mxu0 0.0
      %1606 = vmatpush1.msra.mxu0 0.0
      %1607 = vmatprep.subr.mxu0 0.0
      %1608 = vmatpush1.msra.mxu0 0.0
      %1609 = vmatprep.subr.mxu0 0.0
      %1610 = vmatpush1.msra.mxu0 0.0
      %1611 = vmatprep.subr.mxu0 0.0
      %1612 = vmatpush1.msra.mxu0 0.0
      %1613 = vmatprep.subr.mxu0 0.0
      %1614 = vmatpush1.msra.mxu0 0.0
      %1615 = vmatprep.subr.mxu0 0.0
      %1616 = vmatpush1.msra.mxu0 0.0
      %1617 = vmatprep.subr.mxu0 0.0
      %1618 = vmatpush1.msra.mxu0 0.0
      %1619 = vmatprep.subr.mxu0 0.0
      %1620 = vmatpush1.msra.mxu0 0.0
      %1621 = vmatprep.mubr.f32.mxu0 0.0
      %1622 = vmatmul.mubr.f32.gmra.mrb[0].mxu0 %v1555
      %v1623 = vpop.f32.mrb[0].mxu0
      %v1624 = vadd.f32 %v169, %v1623
      %v1625 = vpop.f32.mrb[0].mxu0
      %1626 = vdwg.mxu0
      %v1627 = vtanh.pop %v1624
      %v1629 = vsel %vm171, %v1627, 0
      %1631 = vmatprep.subr.mxu0 0.0
      %1632 = vmatpush1.msra.mxu0 %v50
      %1633 = vmatprep.subr.mxu0 0.0
      %1634 = vmatpush1.msra.mxu0 %v51
      %1635 = vmatprep.subr.mxu0 0.0
      %1636 = vmatpush1.msra.mxu0 %v52
      %1637 = vmatprep.subr.mxu0 0.0
      %1638 = vmatpush1.msra.mxu0 %v53
      %1639 = vmatprep.subr.mxu0 0.0
      %1640 = vmatpush1.msra.mxu0 0.0
      %1641 = vmatprep.subr.mxu0 0.0
      %1642 = vmatpush1.msra.mxu0 0.0
      %1643 = vmatprep.subr.mxu0 0.0
      %1644 = vmatpush1.msra.mxu0 0.0
      %1645 = vmatprep.subr.mxu0 0.0
      %1646 = vmatpush1.msra.mxu0 0.0
      %1647 = vmatprep.subr.mxu0 0.0
      %1648 = vmatpush1.msra.mxu0 0.0
      %1649 = vmatprep.subr.mxu0 0.0
      %1650 = vmatpush1.msra.mxu0 0.0
      %1651 = vmatprep.subr.mxu0 0.0
      %1652 = vmatpush1.msra.mxu0 0.0
      %1653 = vmatprep.subr.mxu0 0.0
      %1654 = vmatpush1.msra.mxu0 0.0
      %1655 = vmatprep.subr.mxu0 0.0
      %1656 = vmatpush1.msra.mxu0 0.0
      %1657 = vmatprep.subr.mxu0 0.0
      %1658 = vmatpush1.msra.mxu0 0.0
      %1659 = vmatprep.subr.mxu0 0.0
      %1660 = vmatpush1.msra.mxu0 0.0
      %1661 = vmatprep.subr.mxu0 0.0
      %1662 = vmatpush1.msra.mxu0 0.0
      %1663 = vmatprep.subr.mxu0 0.0
      %1664 = vmatpush1.msra.mxu0 0.0
      %1665 = vmatprep.subr.mxu0 0.0
      %1666 = vmatpush1.msra.mxu0 0.0
      %1667 = vmatprep.subr.mxu0 0.0
      %1668 = vmatpush1.msra.mxu0 0.0
      %1669 = vmatprep.subr.mxu0 0.0
      %1670 = vmatpush1.msra.mxu0 0.0
      %1671 = vmatprep.subr.mxu0 0.0
      %1672 = vmatpush1.msra.mxu0 0.0
      %1673 = vmatprep.subr.mxu0 0.0
      %1674 = vmatpush1.msra.mxu0 0.0
      %1675 = vmatprep.subr.mxu0 0.0
      %1676 = vmatpush1.msra.mxu0 0.0
      %1677 = vmatprep.subr.mxu0 0.0
      %1678 = vmatpush1.msra.mxu0 0.0
      %1679 = vmatprep.subr.mxu0 0.0
      %1680 = vmatpush1.msra.mxu0 0.0
      %1681 = vmatprep.subr.mxu0 0.0
      %1682 = vmatpush1.msra.mxu0 0.0
      %1683 = vmatprep.subr.mxu0 0.0
      %1684 = vmatpush1.msra.mxu0 0.0
      %1685 = vmatprep.subr.mxu0 0.0
      %1686 = vmatpush1.msra.mxu0 0.0
      %1687 = vmatprep.subr.mxu0 0.0
      %1688 = vmatpush1.msra.mxu0 0.0
      %1689 = vmatprep.subr.mxu0 0.0
      %1690 = vmatpush1.msra.mxu0 0.0
      %1691 = vmatprep.subr.mxu0 0.0
      %1692 = vmatpush1.msra.mxu0 0.0
      %1693 = vmatprep.subr.mxu0 0.0
      %1694 = vmatpush1.msra.mxu0 0.0
      %1695 = vmatprep.mubr.f32.mxu0 0.0
      %1696 = vmatmul.mubr.f32.gmra.mrb[0].mxu0 %v1629
      %v1697 = vpop.f32.mrb[0].mxu0
      %v1698 = vadd.f32 %v250, %v1697
      %v1699 = vpop.f32.mrb[0].mxu0
      %1700 = vdwg.mxu0
      %v1701 = vmul.f32 %v781, %v1698
      %v1702 = vadd.f32 %v1020, %v1701
      %s1703 = sadd.f32 %s1021, %s72
      %1704 = vst.msk [vmem:[#allocation2] sm:$0x3] %vm59, %v1702
      %v1705 = vstv %s1703
      %1706 = vst.msk [vmem:[#allocation2] sm:$0x3] %vm77, %v1705
      %v1707 = vld [vmem:[#allocation2] sm:$0x3]
      %v1709 = vsel %vm86, %v1707, 0
      %1711 = vmatprep.subr.mxu0 0.0
      %1712 = vmatpush1.msra.mxu0 %v42
      %1713 = vmatprep.subr.mxu0 0.0
      %1714 = vmatpush1.msra.mxu0 %v92
      %1715 = vmatprep.subr.mxu0 0.0
      %1716 = vmatpush1.msra.mxu0 0.0
      %1717 = vmatprep.subr.mxu0 0.0
      %1718 = vmatpush1.msra.mxu0 0.0
      %1719 = vmatprep.subr.mxu0 0.0
      %1720 = vmatpush1.msra.mxu0 0.0
      %1721 = vmatprep.subr.mxu0 0.0
      %1722 = vmatpush1.msra.mxu0 0.0
      %1723 = vmatprep.subr.mxu0 0.0
      %1724 = vmatpush1.msra.mxu0 0.0
      %1725 = vmatprep.subr.mxu0 0.0
      %1726 = vmatpush1.msra.mxu0 0.0
      %1727 = vmatprep.subr.mxu0 0.0
      %1728 = vmatpush1.msra.mxu0 0.0
      %1729 = vmatprep.subr.mxu0 0.0
      %1730 = vmatpush1.msra.mxu0 0.0
      %1731 = vmatprep.subr.mxu0 0.0
      %1732 = vmatpush1.msra.mxu0 0.0
      %1733 = vmatprep.subr.mxu0 0.0
      %1734 = vmatpush1.msra.mxu0 0.0
      %1735 = vmatprep.subr.mxu0 0.0
      %1736 = vmatpush1.msra.mxu0 0.0
      %1737 = vmatprep.subr.mxu0 0.0
      %1738 = vmatpush1.msra.mxu0 0.0
      %1739 = vmatprep.subr.mxu0 0.0
      %1740 = vmatpush1.msra.mxu0 0.0
      %1741 = vmatprep.subr.mxu0 0.0
      %1742 = vmatpush1.msra.mxu0 0.0
      %1743 = vmatprep.subr.mxu0 0.0
      %1744 = vmatpush1.msra.mxu0 0.0
      %1745 = vmatprep.subr.mxu0 0.0
      %1746 = vmatpush1.msra.mxu0 0.0
      %1747 = vmatprep.subr.mxu0 0.0
      %1748 = vmatpush1.msra.mxu0 0.0
      %1749 = vmatprep.subr.mxu0 0.0
      %1750 = vmatpush1.msra.mxu0 0.0
      %1751 = vmatprep.subr.mxu0 0.0
      %1752 = vmatpush1.msra.mxu0 0.0
      %1753 = vmatprep.subr.mxu0 0.0
      %1754 = vmatpush1.msra.mxu0 0.0
      %1755 = vmatprep.subr.mxu0 0.0
      %1756 = vmatpush1.msra.mxu0 0.0
      %1757 = vmatprep.subr.mxu0 0.0
      %1758 = vmatpush1.msra.mxu0 0.0
      %1759 = vmatprep.subr.mxu0 0.0
      %1760 = vmatpush1.msra.mxu0 0.0
      %1761 = vmatprep.subr.mxu0 0.0
      %1762 = vmatpush1.msra.mxu0 0.0
      %1763 = vmatprep.subr.mxu0 0.0
      %1764 = vmatpush1.msra.mxu0 0.0
      %1765 = vmatprep.subr.mxu0 0.0
      %1766 = vmatpush1.msra.mxu0 0.0
      %1767 = vmatprep.subr.mxu0 0.0
      %1768 = vmatpush1.msra.mxu0 0.0
      %1769 = vmatprep.subr.mxu0 0.0
      %1770 = vmatpush1.msra.mxu0 0.0
      %1771 = vmatprep.subr.mxu0 0.0
      %1772 = vmatpush1.msra.mxu0 0.0
      %1773 = vmatprep.subr.mxu0 0.0
      %1774 = vmatpush1.msra.mxu0 0.0
      %1775 = vmatprep.mubr.f32.mxu0 0.0
      %1776 = vmatmul.mubr.f32.gmra.mrb[0].mxu0 %v1709
      %v1777 = vpop.f32.mrb[0].mxu0
      %v1778 = vadd.f32 %v84, %v1777
      %v1779 = vpop.f32.mrb[0].mxu0
      %1780 = vdwg.mxu0
      %v1781 = vtanh.pop %v1778
      %v1783 = vsel %vm171, %v1781, 0
      %1785 = vmatprep.subr.mxu0 0.0
      %1786 = vmatpush1.msra.mxu0 %v45
      %1787 = vmatprep.subr.mxu0 0.0
      %1788 = vmatpush1.msra.mxu0 %v46
      %1789 = vmatprep.subr.mxu0 0.0
      %1790 = vmatpush1.msra.mxu0 %v47
      %1791 = vmatprep.subr.mxu0 0.0
      %1792 = vmatpush1.msra.mxu0 %v48
      %1793 = vmatprep.subr.mxu0 0.0
      %1794 = vmatpush1.msra.mxu0 0.0
      %1795 = vmatprep.subr.mxu0 0.0
      %1796 = vmatpush1.msra.mxu0 0.0
      %1797 = vmatprep.subr.mxu0 0.0
      %1798 = vmatpush1.msra.mxu0 0.0
      %1799 = vmatprep.subr.mxu0 0.0
      %1800 = vmatpush1.msra.mxu0 0.0
      %1801 = vmatprep.subr.mxu0 0.0
      %1802 = vmatpush1.msra.mxu0 0.0
      %1803 = vmatprep.subr.mxu0 0.0
      %1804 = vmatpush1.msra.mxu0 0.0
      %1805 = vmatprep.subr.mxu0 0.0
      %1806 = vmatpush1.msra.mxu0 0.0
      %1807 = vmatprep.subr.mxu0 0.0
      %1808 = vmatpush1.msra.mxu0 0.0
      %1809 = vmatprep.subr.mxu0 0.0
      %1810 = vmatpush1.msra.mxu0 0.0
      %1811 = vmatprep.subr.mxu0 0.0
      %1812 = vmatpush1.msra.mxu0 0.0
      %1813 = vmatprep.subr.mxu0 0.0
      %1814 = vmatpush1.msra.mxu0 0.0
      %1815 = vmatprep.subr.mxu0 0.0
      %1816 = vmatpush1.msra.mxu0 0.0
      %1817 = vmatprep.subr.mxu0 0.0
      %1818 = vmatpush1.msra.mxu0 0.0
      %1819 = vmatprep.subr.mxu0 0.0
      %1820 = vmatpush1.msra.mxu0 0.0
      %1821 = vmatprep.subr.mxu0 0.0
      %1822 = vmatpush1.msra.mxu0 0.0
      %1823 = vmatprep.subr.mxu0 0.0
      %1824 = vmatpush1.msra.mxu0 0.0
      %1825 = vmatprep.subr.mxu0 0.0
      %1826 = vmatpush1.msra.mxu0 0.0
      %1827 = vmatprep.subr.mxu0 0.0
      %1828 = vmatpush1.msra.mxu0 0.0
      %1829 = vmatprep.subr.mxu0 0.0
      %1830 = vmatpush1.msra.mxu0 0.0
      %1831 = vmatprep.subr.mxu0 0.0
      %1832 = vmatpush1.msra.mxu0 0.0
      %1833 = vmatprep.subr.mxu0 0.0
      %1834 = vmatpush1.msra.mxu0 0.0
      %1835 = vmatprep.subr.mxu0 0.0
      %1836 = vmatpush1.msra.mxu0 0.0
      %1837 = vmatprep.subr.mxu0 0.0
      %1838 = vmatpush1.msra.mxu0 0.0
      %1839 = vmatprep.subr.mxu0 0.0
      %1840 = vmatpush1.msra.mxu0 0.0
      %1841 = vmatprep.subr.mxu0 0.0
      %1842 = vmatpush1.msra.mxu0 0.0
      %1843 = vmatprep.subr.mxu0 0.0
      %1844 = vmatpush1.msra.mxu0 0.0
      %1845 = vmatprep.subr.mxu0 0.0
      %1846 = vmatpush1.msra.mxu0 0.0
      %1847 = vmatprep.subr.mxu0 0.0
      %1848 = vmatpush1.msra.mxu0 0.0
      %1849 = vmatprep.mubr.f32.mxu0 0.0
      %1850 = vmatmul.mubr.f32.gmra.mrb[0].mxu0 %v1783
      %v1851 = vpop.f32.mrb[0].mxu0
      %v1852 = vadd.f32 %v169, %v1851
      %v1853 = vpop.f32.mrb[0].mxu0
      %1854 = vdwg.mxu0
      %v1855 = vtanh.pop %v1852
      %v1857 = vsel %vm171, %v1855, 0
      %1859 = vmatprep.subr.mxu0 0.0
      %1860 = vmatpush1.msra.mxu0 %v50
      %1861 = vmatprep.subr.mxu0 0.0
      %1862 = vmatpush1.msra.mxu0 %v51
      %1863 = vmatprep.subr.mxu0 0.0
      %1864 = vmatpush1.msra.mxu0 %v52
      %1865 = vmatprep.subr.mxu0 0.0
      %1866 = vmatpush1.msra.mxu0 %v53
      %1867 = vmatprep.subr.mxu0 0.0
      %1868 = vmatpush1.msra.mxu0 0.0
      %1869 = vmatprep.subr.mxu0 0.0
      %1870 = vmatpush1.msra.mxu0 0.0
      %1871 = vmatprep.subr.mxu0 0.0
      %1872 = vmatpush1.msra.mxu0 0.0
      %1873 = vmatprep.subr.mxu0 0.0
      %1874 = vmatpush1.msra.mxu0 0.0
      %1875 = vmatprep.subr.mxu0 0.0
      %1876 = vmatpush1.msra.mxu0 0.0
      %1877 = vmatprep.subr.mxu0 0.0
      %1878 = vmatpush1.msra.mxu0 0.0
      %1879 = vmatprep.subr.mxu0 0.0
      %1880 = vmatpush1.msra.mxu0 0.0
      %1881 = vmatprep.subr.mxu0 0.0
      %1882 = vmatpush1.msra.mxu0 0.0
      %1883 = vmatprep.subr.mxu0 0.0
      %1884 = vmatpush1.msra.mxu0 0.0
      %1885 = vmatprep.subr.mxu0 0.0
      %1886 = vmatpush1.msra.mxu0 0.0
      %1887 = vmatprep.subr.mxu0 0.0
      %1888 = vmatpush1.msra.mxu0 0.0
      %1889 = vmatprep.subr.mxu0 0.0
      %1890 = vmatpush1.msra.mxu0 0.0
      %1891 = vmatprep.subr.mxu0 0.0
      %1892 = vmatpush1.msra.mxu0 0.0
      %1893 = vmatprep.subr.mxu0 0.0
      %1894 = vmatpush1.msra.mxu0 0.0
      %1895 = vmatprep.subr.mxu0 0.0
      %1896 = vmatpush1.msra.mxu0 0.0
      %1897 = vmatprep.subr.mxu0 0.0
      %1898 = vmatpush1.msra.mxu0 0.0
      %1899 = vmatprep.subr.mxu0 0.0
      %1900 = vmatpush1.msra.mxu0 0.0
      %1901 = vmatprep.subr.mxu0 0.0
      %1902 = vmatpush1.msra.mxu0 0.0
      %1903 = vmatprep.subr.mxu0 0.0
      %1904 = vmatpush1.msra.mxu0 0.0
      %1905 = vmatprep.subr.mxu0 0.0
      %1906 = vmatpush1.msra.mxu0 0.0
      %1907 = vmatprep.subr.mxu0 0.0
      %1908 = vmatpush1.msra.mxu0 0.0
      %1909 = vmatprep.subr.mxu0 0.0
      %1910 = vmatpush1.msra.mxu0 0.0
      %1911 = vmatprep.subr.mxu0 0.0
      %1912 = vmatpush1.msra.mxu0 0.0
      %1913 = vmatprep.subr.mxu0 0.0
      %1914 = vmatpush1.msra.mxu0 0.0
      %1915 = vmatprep.subr.mxu0 0.0
      %1916 = vmatpush1.msra.mxu0 0.0
      %1917 = vmatprep.subr.mxu0 0.0
      %1918 = vmatpush1.msra.mxu0 0.0
      %1919 = vmatprep.subr.mxu0 0.0
      %1920 = vmatpush1.msra.mxu0 0.0
      %1921 = vmatprep.subr.mxu0 0.0
      %1922 = vmatpush1.msra.mxu0 0.0
      %1923 = vmatprep.mubr.f32.mxu0 0.0
      %1924 = vmatmul.mubr.f32.gmra.mrb[0].mxu0 %v1857
      %v1925 = vpop.f32.mrb[0].mxu0
      %v1926 = vadd.f32 %v250, %v1925
      %v1927 = vpop.f32.mrb[0].mxu0
      %1928 = vdwg.mxu0
      %v1929 = vmul.f32 %v1472, 2.0
      %v1930 = vadd.f32 %v1244, %v1929
      %v1931 = vmul.f32 %v1698, 2.0
      %v1932 = vadd.f32 %v1930, %v1931
      %v1933 = vadd.f32 %v1932, %v1926
      %v1934 = vmul.f32 %v1018, %v1933
      %v1935 = vadd.f32 %v1020, %v1934
      %s1936 = smul.f32 %s72, 2.0
      %s1937 = sadd.f32 %s68, %s1936
      %1938 = vst.msk [vmem:[#allocation2] sm:$0x3] %vm59, %v1935
      %v1939 = vstv %s1937
      %1940 = vst.msk [vmem:[#allocation2] sm:$0x3] %vm77, %v1939
      %v1941 = vld [vmem:[#allocation2] sm:$0x3]
      %v1943 = vsel %vm86, %v1941, 0
      %1945 = vmatprep.subr.mxu0 0.0
      %1946 = vmatpush1.msra.mxu0 %v42
      %1947 = vmatprep.subr.mxu0 0.0
      %1948 = vmatpush1.msra.mxu0 %v92
      %1949 = vmatprep.subr.mxu0 0.0
      %1950 = vmatpush1.msra.mxu0 0.0
      %1951 = vmatprep.subr.mxu0 0.0
      %1952 = vmatpush1.msra.mxu0 0.0
      %1953 = vmatprep.subr.mxu0 0.0
      %1954 = vmatpush1.msra.mxu0 0.0
      %1955 = vmatprep.subr.mxu0 0.0
      %1956 = vmatpush1.msra.mxu0 0.0
      %1957 = vmatprep.subr.mxu0 0.0
      %1958 = vmatpush1.msra.mxu0 0.0
      %1959 = vmatprep.subr.mxu0 0.0
      %1960 = vmatpush1.msra.mxu0 0.0
      %1961 = vmatprep.subr.mxu0 0.0
      %1962 = vmatpush1.msra.mxu0 0.0
      %1963 = vmatprep.subr.mxu0 0.0
      %1964 = vmatpush1.msra.mxu0 0.0
      %1965 = vmatprep.subr.mxu0 0.0
      %1966 = vmatpush1.msra.mxu0 0.0
      %1967 = vmatprep.subr.mxu0 0.0
      %1968 = vmatpush1.msra.mxu0 0.0
      %1969 = vmatprep.subr.mxu0 0.0
      %1970 = vmatpush1.msra.mxu0 0.0
      %1971 = vmatprep.subr.mxu0 0.0
      %1972 = vmatpush1.msra.mxu0 0.0
      %1973 = vmatprep.subr.mxu0 0.0
      %1974 = vmatpush1.msra.mxu0 0.0
      %1975 = vmatprep.subr.mxu0 0.0
      %1976 = vmatpush1.msra.mxu0 0.0
      %1977 = vmatprep.subr.mxu0 0.0
      %1978 = vmatpush1.msra.mxu0 0.0
      %1979 = vmatprep.subr.mxu0 0.0
      %1980 = vmatpush1.msra.mxu0 0.0
      %1981 = vmatprep.subr.mxu0 0.0
      %1982 = vmatpush1.msra.mxu0 0.0
      %1983 = vmatprep.subr.mxu0 0.0
      %1984 = vmatpush1.msra.mxu0 0.0
      %1985 = vmatprep.subr.mxu0 0.0
      %1986 = vmatpush1.msra.mxu0 0.0
      %1987 = vmatprep.subr.mxu0 0.0
      %1988 = vmatpush1.msra.mxu0 0.0
      %1989 = vmatprep.subr.mxu0 0.0
      %1990 = vmatpush1.msra.mxu0 0.0
      %1991 = vmatprep.subr.mxu0 0.0
      %1992 = vmatpush1.msra.mxu0 0.0
      %1993 = vmatprep.subr.mxu0 0.0
      %1994 = vmatpush1.msra.mxu0 0.0
      %1995 = vmatprep.subr.mxu0 0.0
      %1996 = vmatpush1.msra.mxu0 0.0
      %1997 = vmatprep.subr.mxu0 0.0
      %1998 = vmatpush1.msra.mxu0 0.0
      %1999 = vmatprep.subr.mxu0 0.0
      %2000 = vmatpush1.msra.mxu0 0.0
      %2001 = vmatprep.subr.mxu0 0.0
      %2002 = vmatpush1.msra.mxu0 0.0
      %2003 = vmatprep.subr.mxu0 0.0
      %2004 = vmatpush1.msra.mxu0 0.0
      %2005 = vmatprep.subr.mxu0 0.0
      %2006 = vmatpush1.msra.mxu0 0.0
      %2007 = vmatprep.subr.mxu0 0.0
      %2008 = vmatpush1.msra.mxu0 0.0
      %2009 = vmatprep.mubr.f32.mxu0 0.0
      %2010 = vmatmul.mubr.f32.gmra.mrb[0].mxu0 %v1943
      %v2011 = vpop.f32.mrb[0].mxu0
      %v2012 = vadd.f32 %v84, %v2011
      %v2013 = vpop.f32.mrb[0].mxu0
      %2014 = vdwg.mxu0
      %v2015 = vtanh.pop %v2012
      %v2017 = vsel %vm171, %v2015, 0
      %2019 = vmatprep.subr.mxu0 0.0
      %2020 = vmatpush1.msra.mxu0 %v45
      %2021 = vmatprep.subr.mxu0 0.0
      %2022 = vmatpush1.msra.mxu0 %v46
      %2023 = vmatprep.subr.mxu0 0.0
      %2024 = vmatpush1.msra.mxu0 %v47
      %2025 = vmatprep.subr.mxu0 0.0
      %2026 = vmatpush1.msra.mxu0 %v48
      %2027 = vmatprep.subr.mxu0 0.0
      %2028 = vmatpush1.msra.mxu0 0.0
      %2029 = vmatprep.subr.mxu0 0.0
      %2030 = vmatpush1.msra.mxu0 0.0
      %2031 = vmatprep.subr.mxu0 0.0
      %2032 = vmatpush1.msra.mxu0 0.0
      %2033 = vmatprep.subr.mxu0 0.0
      %2034 = vmatpush1.msra.mxu0 0.0
      %2035 = vmatprep.subr.mxu0 0.0
      %2036 = vmatpush1.msra.mxu0 0.0
      %2037 = vmatprep.subr.mxu0 0.0
      %2038 = vmatpush1.msra.mxu0 0.0
      %2039 = vmatprep.subr.mxu0 0.0
      %2040 = vmatpush1.msra.mxu0 0.0
      %2041 = vmatprep.subr.mxu0 0.0
      %2042 = vmatpush1.msra.mxu0 0.0
      %2043 = vmatprep.subr.mxu0 0.0
      %2044 = vmatpush1.msra.mxu0 0.0
      %2045 = vmatprep.subr.mxu0 0.0
      %2046 = vmatpush1.msra.mxu0 0.0
      %2047 = vmatprep.subr.mxu0 0.0
      %2048 = vmatpush1.msra.mxu0 0.0
      %2049 = vmatprep.subr.mxu0 0.0
      %2050 = vmatpush1.msra.mxu0 0.0
      %2051 = vmatprep.subr.mxu0 0.0
      %2052 = vmatpush1.msra.mxu0 0.0
      %2053 = vmatprep.subr.mxu0 0.0
      %2054 = vmatpush1.msra.mxu0 0.0
      %2055 = vmatprep.subr.mxu0 0.0
      %2056 = vmatpush1.msra.mxu0 0.0
      %2057 = vmatprep.subr.mxu0 0.0
      %2058 = vmatpush1.msra.mxu0 0.0
      %2059 = vmatprep.subr.mxu0 0.0
      %2060 = vmatpush1.msra.mxu0 0.0
      %2061 = vmatprep.subr.mxu0 0.0
      %2062 = vmatpush1.msra.mxu0 0.0
      %2063 = vmatprep.subr.mxu0 0.0
      %2064 = vmatpush1.msra.mxu0 0.0
      %2065 = vmatprep.subr.mxu0 0.0
      %2066 = vmatpush1.msra.mxu0 0.0
      %2067 = vmatprep.subr.mxu0 0.0
      %2068 = vmatpush1.msra.mxu0 0.0
      %2069 = vmatprep.subr.mxu0 0.0
      %2070 = vmatpush1.msra.mxu0 0.0
      %2071 = vmatprep.subr.mxu0 0.0
      %2072 = vmatpush1.msra.mxu0 0.0
      %2073 = vmatprep.subr.mxu0 0.0
      %2074 = vmatpush1.msra.mxu0 0.0
      %2075 = vmatprep.subr.mxu0 0.0
      %2076 = vmatpush1.msra.mxu0 0.0
      %2077 = vmatprep.subr.mxu0 0.0
      %2078 = vmatpush1.msra.mxu0 0.0
      %2079 = vmatprep.subr.mxu0 0.0
      %2080 = vmatpush1.msra.mxu0 0.0
      %2081 = vmatprep.subr.mxu0 0.0
      %2082 = vmatpush1.msra.mxu0 0.0
      %2083 = vmatprep.mubr.f32.mxu0 0.0
      %2084 = vmatmul.mubr.f32.gmra.mrb[0].mxu0 %v2017
      %v2085 = vpop.f32.mrb[0].mxu0
      %v2086 = vadd.f32 %v169, %v2085
      %v2087 = vpop.f32.mrb[0].mxu0
      %2088 = vdwg.mxu0
      %v2089 = vtanh.pop %v2086
      %v2091 = vsel %vm171, %v2089, 0
      %2093 = vmatprep.subr.mxu0 0.0
      %2094 = vmatpush1.msra.mxu0 %v50
      %2095 = vmatprep.subr.mxu0 0.0
      %2096 = vmatpush1.msra.mxu0 %v51
      %2097 = vmatprep.subr.mxu0 0.0
      %2098 = vmatpush1.msra.mxu0 %v52
      %2099 = vmatprep.subr.mxu0 0.0
      %2100 = vmatpush1.msra.mxu0 %v53
      %2101 = vmatprep.subr.mxu0 0.0
      %2102 = vmatpush1.msra.mxu0 0.0
      %2103 = vmatprep.subr.mxu0 0.0
      %2104 = vmatpush1.msra.mxu0 0.0
      %2105 = vmatprep.subr.mxu0 0.0
      %2106 = vmatpush1.msra.mxu0 0.0
      %2107 = vmatprep.subr.mxu0 0.0
      %2108 = vmatpush1.msra.mxu0 0.0
      %2109 = vmatprep.subr.mxu0 0.0
      %2110 = vmatpush1.msra.mxu0 0.0
      %2111 = vmatprep.subr.mxu0 0.0
      %2112 = vmatpush1.msra.mxu0 0.0
      %2113 = vmatprep.subr.mxu0 0.0
      %2114 = vmatpush1.msra.mxu0 0.0
      %2115 = vmatprep.subr.mxu0 0.0
      %2116 = vmatpush1.msra.mxu0 0.0
      %2117 = vmatprep.subr.mxu0 0.0
      %2118 = vmatpush1.msra.mxu0 0.0
      %2119 = vmatprep.subr.mxu0 0.0
      %2120 = vmatpush1.msra.mxu0 0.0
      %2121 = vmatprep.subr.mxu0 0.0
      %2122 = vmatpush1.msra.mxu0 0.0
      %2123 = vmatprep.subr.mxu0 0.0
      %2124 = vmatpush1.msra.mxu0 0.0
      %2125 = vmatprep.subr.mxu0 0.0
      %2126 = vmatpush1.msra.mxu0 0.0
      %2127 = vmatprep.subr.mxu0 0.0
      %2128 = vmatpush1.msra.mxu0 0.0
      %2129 = vmatprep.subr.mxu0 0.0
      %2130 = vmatpush1.msra.mxu0 0.0
      %2131 = vmatprep.subr.mxu0 0.0
      %2132 = vmatpush1.msra.mxu0 0.0
      %2133 = vmatprep.subr.mxu0 0.0
      %2134 = vmatpush1.msra.mxu0 0.0
      %2135 = vmatprep.subr.mxu0 0.0
      %2136 = vmatpush1.msra.mxu0 0.0
      %2137 = vmatprep.subr.mxu0 0.0
      %2138 = vmatpush1.msra.mxu0 0.0
      %2139 = vmatprep.subr.mxu0 0.0
      %2140 = vmatpush1.msra.mxu0 0.0
      %2141 = vmatprep.subr.mxu0 0.0
      %2142 = vmatpush1.msra.mxu0 0.0
      %2143 = vmatprep.subr.mxu0 0.0
      %2144 = vmatpush1.msra.mxu0 0.0
      %2145 = vmatprep.subr.mxu0 0.0
      %2146 = vmatpush1.msra.mxu0 0.0
      %2147 = vmatprep.subr.mxu0 0.0
      %2148 = vmatpush1.msra.mxu0 0.0
      %2149 = vmatprep.subr.mxu0 0.0
      %2150 = vmatpush1.msra.mxu0 0.0
      %2151 = vmatprep.subr.mxu0 0.0
      %2152 = vmatpush1.msra.mxu0 0.0
      %2153 = vmatprep.subr.mxu0 0.0
      %2154 = vmatpush1.msra.mxu0 0.0
      %2155 = vmatprep.subr.mxu0 0.0
      %2156 = vmatpush1.msra.mxu0 0.0
      %2157 = vmatprep.mubr.f32.mxu0 0.0
      %2158 = vmatmul.mubr.f32.gmra.mrb[0].mxu0 %v2091
      %v2159 = vpop.f32.mrb[0].mxu0
      %v2160 = vadd.f32 %v250, %v2159
      %v2161 = vpop.f32.mrb[0].mxu0
      %2162 = vdwg.mxu0
      %v2163 = vmul.f32 %v326, %v2160
      %v2164 = vadd.f32 %v1935, %v2163
      %s2165 = sadd.f32 %s1937, %s325
      %2166 = vst.msk [vmem:[#allocation2] sm:$0x3] %vm59, %v2164
      %v2167 = vstv %s2165
      %2168 = vst.msk [vmem:[#allocation2] sm:$0x3] %vm77, %v2167
      %v2169 = vld [vmem:[#allocation2] sm:$0x3]
      %v2171 = vsel %vm86, %v2169, 0
      %2173 = vmatprep.subr.mxu0 0.0
      %2174 = vmatpush1.msra.mxu0 %v42
      %2175 = vmatprep.subr.mxu0 0.0
      %2176 = vmatpush1.msra.mxu0 %v92
      %2177 = vmatprep.subr.mxu0 0.0
      %2178 = vmatpush1.msra.mxu0 0.0
      %2179 = vmatprep.subr.mxu0 0.0
      %2180 = vmatpush1.msra.mxu0 0.0
      %2181 = vmatprep.subr.mxu0 0.0
      %2182 = vmatpush1.msra.mxu0 0.0
      %2183 = vmatprep.subr.mxu0 0.0
      %2184 = vmatpush1.msra.mxu0 0.0
      %2185 = vmatprep.subr.mxu0 0.0
      %2186 = vmatpush1.msra.mxu0 0.0
      %2187 = vmatprep.subr.mxu0 0.0
      %2188 = vmatpush1.msra.mxu0 0.0
      %2189 = vmatprep.subr.mxu0 0.0
      %2190 = vmatpush1.msra.mxu0 0.0
      %2191 = vmatprep.subr.mxu0 0.0
      %2192 = vmatpush1.msra.mxu0 0.0
      %2193 = vmatprep.subr.mxu0 0.0
      %2194 = vmatpush1.msra.mxu0 0.0
      %2195 = vmatprep.subr.mxu0 0.0
      %2196 = vmatpush1.msra.mxu0 0.0
      %2197 = vmatprep.subr.mxu0 0.0
      %2198 = vmatpush1.msra.mxu0 0.0
      %2199 = vmatprep.subr.mxu0 0.0
      %2200 = vmatpush1.msra.mxu0 0.0
      %2201 = vmatprep.subr.mxu0 0.0
      %2202 = vmatpush1.msra.mxu0 0.0
      %2203 = vmatprep.subr.mxu0 0.0
      %2204 = vmatpush1.msra.mxu0 0.0
      %2205 = vmatprep.subr.mxu0 0.0
      %2206 = vmatpush1.msra.mxu0 0.0
      %2207 = vmatprep.subr.mxu0 0.0
      %2208 = vmatpush1.msra.mxu0 0.0
      %2209 = vmatprep.subr.mxu0 0.0
      %2210 = vmatpush1.msra.mxu0 0.0
      %2211 = vmatprep.subr.mxu0 0.0
      %2212 = vmatpush1.msra.mxu0 0.0
      %2213 = vmatprep.subr.mxu0 0.0
      %2214 = vmatpush1.msra.mxu0 0.0
      %2215 = vmatprep.subr.mxu0 0.0
      %2216 = vmatpush1.msra.mxu0 0.0
      %2217 = vmatprep.subr.mxu0 0.0
      %2218 = vmatpush1.msra.mxu0 0.0
      %2219 = vmatprep.subr.mxu0 0.0
      %2220 = vmatpush1.msra.mxu0 0.0
      %2221 = vmatprep.subr.mxu0 0.0
      %2222 = vmatpush1.msra.mxu0 0.0
      %2223 = vmatprep.subr.mxu0 0.0
      %2224 = vmatpush1.msra.mxu0 0.0
      %2225 = vmatprep.subr.mxu0 0.0
      %2226 = vmatpush1.msra.mxu0 0.0
      %2227 = vmatprep.subr.mxu0 0.0
      %2228 = vmatpush1.msra.mxu0 0.0
      %2229 = vmatprep.subr.mxu0 0.0
      %2230 = vmatpush1.msra.mxu0 0.0
      %2231 = vmatprep.subr.mxu0 0.0
      %2232 = vmatpush1.msra.mxu0 0.0
      %2233 = vmatprep.subr.mxu0 0.0
      %2234 = vmatpush1.msra.mxu0 0.0
      %2235 = vmatprep.subr.mxu0 0.0
      %2236 = vmatpush1.msra.mxu0 0.0
      %2237 = vmatprep.mubr.f32.mxu0 0.0
      %2238 = vmatmul.mubr.f32.gmra.mrb[0].mxu0 %v2171
      %v2239 = vpop.f32.mrb[0].mxu0
      %v2240 = vadd.f32 %v84, %v2239
      %v2241 = vpop.f32.mrb[0].mxu0
      %2242 = vdwg.mxu0
      %v2243 = vtanh.pop %v2240
      %v2245 = vsel %vm171, %v2243, 0
      %2247 = vmatprep.subr.mxu0 0.0
      %2248 = vmatpush1.msra.mxu0 %v45
      %2249 = vmatprep.subr.mxu0 0.0
      %2250 = vmatpush1.msra.mxu0 %v46
      %2251 = vmatprep.subr.mxu0 0.0
      %2252 = vmatpush1.msra.mxu0 %v47
      %2253 = vmatprep.subr.mxu0 0.0
      %2254 = vmatpush1.msra.mxu0 %v48
      %2255 = vmatprep.subr.mxu0 0.0
      %2256 = vmatpush1.msra.mxu0 0.0
      %2257 = vmatprep.subr.mxu0 0.0
      %2258 = vmatpush1.msra.mxu0 0.0
      %2259 = vmatprep.subr.mxu0 0.0
      %2260 = vmatpush1.msra.mxu0 0.0
      %2261 = vmatprep.subr.mxu0 0.0
      %2262 = vmatpush1.msra.mxu0 0.0
      %2263 = vmatprep.subr.mxu0 0.0
      %2264 = vmatpush1.msra.mxu0 0.0
      %2265 = vmatprep.subr.mxu0 0.0
      %2266 = vmatpush1.msra.mxu0 0.0
      %2267 = vmatprep.subr.mxu0 0.0
      %2268 = vmatpush1.msra.mxu0 0.0
      %2269 = vmatprep.subr.mxu0 0.0
      %2270 = vmatpush1.msra.mxu0 0.0
      %2271 = vmatprep.subr.mxu0 0.0
      %2272 = vmatpush1.msra.mxu0 0.0
      %2273 = vmatprep.subr.mxu0 0.0
      %2274 = vmatpush1.msra.mxu0 0.0
      %2275 = vmatprep.subr.mxu0 0.0
      %2276 = vmatpush1.msra.mxu0 0.0
      %2277 = vmatprep.subr.mxu0 0.0
      %2278 = vmatpush1.msra.mxu0 0.0
      %2279 = vmatprep.subr.mxu0 0.0
      %2280 = vmatpush1.msra.mxu0 0.0
      %2281 = vmatprep.subr.mxu0 0.0
      %2282 = vmatpush1.msra.mxu0 0.0
      %2283 = vmatprep.subr.mxu0 0.0
      %2284 = vmatpush1.msra.mxu0 0.0
      %2285 = vmatprep.subr.mxu0 0.0
      %2286 = vmatpush1.msra.mxu0 0.0
      %2287 = vmatprep.subr.mxu0 0.0
      %2288 = vmatpush1.msra.mxu0 0.0
      %2289 = vmatprep.subr.mxu0 0.0
      %2290 = vmatpush1.msra.mxu0 0.0
      %2291 = vmatprep.subr.mxu0 0.0
      %2292 = vmatpush1.msra.mxu0 0.0
      %2293 = vmatprep.subr.mxu0 0.0
      %2294 = vmatpush1.msra.mxu0 0.0
      %2295 = vmatprep.subr.mxu0 0.0
      %2296 = vmatpush1.msra.mxu0 0.0
      %2297 = vmatprep.subr.mxu0 0.0
      %2298 = vmatpush1.msra.mxu0 0.0
      %2299 = vmatprep.subr.mxu0 0.0
      %2300 = vmatpush1.msra.mxu0 0.0
      %2301 = vmatprep.subr.mxu0 0.0
      %2302 = vmatpush1.msra.mxu0 0.0
      %2303 = vmatprep.subr.mxu0 0.0
      %2304 = vmatpush1.msra.mxu0 0.0
      %2305 = vmatprep.subr.mxu0 0.0
      %2306 = vmatpush1.msra.mxu0 0.0
      %2307 = vmatprep.subr.mxu0 0.0
      %2308 = vmatpush1.msra.mxu0 0.0
      %2309 = vmatprep.subr.mxu0 0.0
      %2310 = vmatpush1.msra.mxu0 0.0
      %2311 = vmatprep.mubr.f32.mxu0 0.0
      %2312 = vmatmul.mubr.f32.gmra.mrb[0].mxu0 %v2245
      %v2313 = vpop.f32.mrb[0].mxu0
      %v2314 = vadd.f32 %v169, %v2313
      %v2315 = vpop.f32.mrb[0].mxu0
      %2316 = vdwg.mxu0
      %v2317 = vtanh.pop %v2314
      %v2319 = vsel %vm171, %v2317, 0
      %2321 = vmatprep.subr.mxu0 0.0
      %2322 = vmatpush1.msra.mxu0 %v50
      %2323 = vmatprep.subr.mxu0 0.0
      %2324 = vmatpush1.msra.mxu0 %v51
      %2325 = vmatprep.subr.mxu0 0.0
      %2326 = vmatpush1.msra.mxu0 %v52
      %2327 = vmatprep.subr.mxu0 0.0
      %2328 = vmatpush1.msra.mxu0 %v53
      %2329 = vmatprep.subr.mxu0 0.0
      %2330 = vmatpush1.msra.mxu0 0.0
      %2331 = vmatprep.subr.mxu0 0.0
      %2332 = vmatpush1.msra.mxu0 0.0
      %2333 = vmatprep.subr.mxu0 0.0
      %2334 = vmatpush1.msra.mxu0 0.0
      %2335 = vmatprep.subr.mxu0 0.0
      %2336 = vmatpush1.msra.mxu0 0.0
      %2337 = vmatprep.subr.mxu0 0.0
      %2338 = vmatpush1.msra.mxu0 0.0
      %2339 = vmatprep.subr.mxu0 0.0
      %2340 = vmatpush1.msra.mxu0 0.0
      %2341 = vmatprep.subr.mxu0 0.0
      %2342 = vmatpush1.msra.mxu0 0.0
      %2343 = vmatprep.subr.mxu0 0.0
      %2344 = vmatpush1.msra.mxu0 0.0
      %2345 = vmatprep.subr.mxu0 0.0
      %2346 = vmatpush1.msra.mxu0 0.0
      %2347 = vmatprep.subr.mxu0 0.0
      %2348 = vmatpush1.msra.mxu0 0.0
      %2349 = vmatprep.subr.mxu0 0.0
      %2350 = vmatpush1.msra.mxu0 0.0
      %2351 = vmatprep.subr.mxu0 0.0
      %2352 = vmatpush1.msra.mxu0 0.0
      %2353 = vmatprep.subr.mxu0 0.0
      %2354 = vmatpush1.msra.mxu0 0.0
      %2355 = vmatprep.subr.mxu0 0.0
      %2356 = vmatpush1.msra.mxu0 0.0
      %2357 = vmatprep.subr.mxu0 0.0
      %2358 = vmatpush1.msra.mxu0 0.0
      %2359 = vmatprep.subr.mxu0 0.0
      %2360 = vmatpush1.msra.mxu0 0.0
      %2361 = vmatprep.subr.mxu0 0.0
      %2362 = vmatpush1.msra.mxu0 0.0
      %2363 = vmatprep.subr.mxu0 0.0
      %2364 = vmatpush1.msra.mxu0 0.0
      %2365 = vmatprep.subr.mxu0 0.0
      %2366 = vmatpush1.msra.mxu0 0.0
      %2367 = vmatprep.subr.mxu0 0.0
      %2368 = vmatpush1.msra.mxu0 0.0
      %2369 = vmatprep.subr.mxu0 0.0
      %2370 = vmatpush1.msra.mxu0 0.0
      %2371 = vmatprep.subr.mxu0 0.0
      %2372 = vmatpush1.msra.mxu0 0.0
      %2373 = vmatprep.subr.mxu0 0.0
      %2374 = vmatpush1.msra.mxu0 0.0
      %2375 = vmatprep.subr.mxu0 0.0
      %2376 = vmatpush1.msra.mxu0 0.0
      %2377 = vmatprep.subr.mxu0 0.0
      %2378 = vmatpush1.msra.mxu0 0.0
      %2379 = vmatprep.subr.mxu0 0.0
      %2380 = vmatpush1.msra.mxu0 0.0
      %2381 = vmatprep.subr.mxu0 0.0
      %2382 = vmatpush1.msra.mxu0 0.0
      %2383 = vmatprep.subr.mxu0 0.0
      %2384 = vmatpush1.msra.mxu0 0.0
      %2385 = vmatprep.mubr.f32.mxu0 0.0
      %2386 = vmatmul.mubr.f32.gmra.mrb[0].mxu0 %v2319
      %v2387 = vpop.f32.mrb[0].mxu0
      %v2388 = vadd.f32 %v250, %v2387
      %v2389 = vpop.f32.mrb[0].mxu0
      %2390 = vdwg.mxu0
      %v2391 = vmul.f32 %v326, %v2388
      %v2392 = vadd.f32 %v1935, %v2391
      %2393 = vst.msk [vmem:[#allocation2] sm:$0x3] %vm59, %v2392
      %2394 = vst.msk [vmem:[#allocation2] sm:$0x3] %vm77, %v2167
      %v2395 = vld [vmem:[#allocation2] sm:$0x3]
      %v2397 = vsel %vm86, %v2395, 0
      %2399 = vmatprep.subr.mxu0 0.0
      %2400 = vmatpush1.msra.mxu0 %v42
      %2401 = vmatprep.subr.mxu0 0.0
      %2402 = vmatpush1.msra.mxu0 %v92
      %2403 = vmatprep.subr.mxu0 0.0
      %2404 = vmatpush1.msra.mxu0 0.0
      %2405 = vmatprep.subr.mxu0 0.0
      %2406 = vmatpush1.msra.mxu0 0.0
      %2407 = vmatprep.subr.mxu0 0.0
      %2408 = vmatpush1.msra.mxu0 0.0
      %2409 = vmatprep.subr.mxu0 0.0
      %2410 = vmatpush1.msra.mxu0 0.0
      %2411 = vmatprep.subr.mxu0 0.0
      %2412 = vmatpush1.msra.mxu0 0.0
      %2413 = vmatprep.subr.mxu0 0.0
      %2414 = vmatpush1.msra.mxu0 0.0
      %2415 = vmatprep.subr.mxu0 0.0
      %2416 = vmatpush1.msra.mxu0 0.0
      %2417 = vmatprep.subr.mxu0 0.0
      %2418 = vmatpush1.msra.mxu0 0.0
      %2419 = vmatprep.subr.mxu0 0.0
      %2420 = vmatpush1.msra.mxu0 0.0
      %2421 = vmatprep.subr.mxu0 0.0
      %2422 = vmatpush1.msra.mxu0 0.0
      %2423 = vmatprep.subr.mxu0 0.0
      %2424 = vmatpush1.msra.mxu0 0.0
      %2425 = vmatprep.subr.mxu0 0.0
      %2426 = vmatpush1.msra.mxu0 0.0
      %2427 = vmatprep.subr.mxu0 0.0
      %2428 = vmatpush1.msra.mxu0 0.0
      %2429 = vmatprep.subr.mxu0 0.0
      %2430 = vmatpush1.msra.mxu0 0.0
      %2431 = vmatprep.subr.mxu0 0.0
      %2432 = vmatpush1.msra.mxu0 0.0
      %2433 = vmatprep.subr.mxu0 0.0
      %2434 = vmatpush1.msra.mxu0 0.0
      %2435 = vmatprep.subr.mxu0 0.0
      %2436 = vmatpush1.msra.mxu0 0.0
      %2437 = vmatprep.subr.mxu0 0.0
      %2438 = vmatpush1.msra.mxu0 0.0
      %2439 = vmatprep.subr.mxu0 0.0
      %2440 = vmatpush1.msra.mxu0 0.0
      %2441 = vmatprep.subr.mxu0 0.0
      %2442 = vmatpush1.msra.mxu0 0.0
      %2443 = vmatprep.subr.mxu0 0.0
      %2444 = vmatpush1.msra.mxu0 0.0
      %2445 = vmatprep.subr.mxu0 0.0
      %2446 = vmatpush1.msra.mxu0 0.0
      %2447 = vmatprep.subr.mxu0 0.0
      %2448 = vmatpush1.msra.mxu0 0.0
      %2449 = vmatprep.subr.mxu0 0.0
      %2450 = vmatpush1.msra.mxu0 0.0
      %2451 = vmatprep.subr.mxu0 0.0
      %2452 = vmatpush1.msra.mxu0 0.0
      %2453 = vmatprep.subr.mxu0 0.0
      %2454 = vmatpush1.msra.mxu0 0.0
      %2455 = vmatprep.subr.mxu0 0.0
      %2456 = vmatpush1.msra.mxu0 0.0
      %2457 = vmatprep.subr.mxu0 0.0
      %2458 = vmatpush1.msra.mxu0 0.0
      %2459 = vmatprep.subr.mxu0 0.0
      %2460 = vmatpush1.msra.mxu0 0.0
      %2461 = vmatprep.subr.mxu0 0.0
      %2462 = vmatpush1.msra.mxu0 0.0
      %2463 = vmatprep.mubr.f32.mxu0 0.0
      %2464 = vmatmul.mubr.f32.gmra.mrb[0].mxu0 %v2397
      %v2465 = vpop.f32.mrb[0].mxu0
      %v2466 = vadd.f32 %v84, %v2465
      %v2467 = vpop.f32.mrb[0].mxu0
      %2468 = vdwg.mxu0
      %v2469 = vtanh.pop %v2466
      %v2471 = vsel %vm171, %v2469, 0
      %2473 = vmatprep.subr.mxu0 0.0
      %2474 = vmatpush1.msra.mxu0 %v45
      %2475 = vmatprep.subr.mxu0 0.0
      %2476 = vmatpush1.msra.mxu0 %v46
      %2477 = vmatprep.subr.mxu0 0.0
      %2478 = vmatpush1.msra.mxu0 %v47
      %2479 = vmatprep.subr.mxu0 0.0
      %2480 = vmatpush1.msra.mxu0 %v48
      %2481 = vmatprep.subr.mxu0 0.0
      %2482 = vmatpush1.msra.mxu0 0.0
      %2483 = vmatprep.subr.mxu0 0.0
      %2484 = vmatpush1.msra.mxu0 0.0
      %2485 = vmatprep.subr.mxu0 0.0
      %2486 = vmatpush1.msra.mxu0 0.0
      %2487 = vmatprep.subr.mxu0 0.0
      %2488 = vmatpush1.msra.mxu0 0.0
      %2489 = vmatprep.subr.mxu0 0.0
      %2490 = vmatpush1.msra.mxu0 0.0
      %2491 = vmatprep.subr.mxu0 0.0
      %2492 = vmatpush1.msra.mxu0 0.0
      %2493 = vmatprep.subr.mxu0 0.0
      %2494 = vmatpush1.msra.mxu0 0.0
      %2495 = vmatprep.subr.mxu0 0.0
      %2496 = vmatpush1.msra.mxu0 0.0
      %2497 = vmatprep.subr.mxu0 0.0
      %2498 = vmatpush1.msra.mxu0 0.0
      %2499 = vmatprep.subr.mxu0 0.0
      %2500 = vmatpush1.msra.mxu0 0.0
      %2501 = vmatprep.subr.mxu0 0.0
      %2502 = vmatpush1.msra.mxu0 0.0
      %2503 = vmatprep.subr.mxu0 0.0
      %2504 = vmatpush1.msra.mxu0 0.0
      %2505 = vmatprep.subr.mxu0 0.0
      %2506 = vmatpush1.msra.mxu0 0.0
      %2507 = vmatprep.subr.mxu0 0.0
      %2508 = vmatpush1.msra.mxu0 0.0
      %2509 = vmatprep.subr.mxu0 0.0
      %2510 = vmatpush1.msra.mxu0 0.0
      %2511 = vmatprep.subr.mxu0 0.0
      %2512 = vmatpush1.msra.mxu0 0.0
      %2513 = vmatprep.subr.mxu0 0.0
      %2514 = vmatpush1.msra.mxu0 0.0
      %2515 = vmatprep.subr.mxu0 0.0
      %2516 = vmatpush1.msra.mxu0 0.0
      %2517 = vmatprep.subr.mxu0 0.0
      %2518 = vmatpush1.msra.mxu0 0.0
      %2519 = vmatprep.subr.mxu0 0.0
      %2520 = vmatpush1.msra.mxu0 0.0
      %2521 = vmatprep.subr.mxu0 0.0
      %2522 = vmatpush1.msra.mxu0 0.0
      %2523 = vmatprep.subr.mxu0 0.0
      %2524 = vmatpush1.msra.mxu0 0.0
      %2525 = vmatprep.subr.mxu0 0.0
      %2526 = vmatpush1.msra.mxu0 0.0
      %2527 = vmatprep.subr.mxu0 0.0
      %2528 = vmatpush1.msra.mxu0 0.0
      %2529 = vmatprep.subr.mxu0 0.0
      %2530 = vmatpush1.msra.mxu0 0.0
      %2531 = vmatprep.subr.mxu0 0.0
      %2532 = vmatpush1.msra.mxu0 0.0
      %2533 = vmatprep.subr.mxu0 0.0
      %2534 = vmatpush1.msra.mxu0 0.0
      %2535 = vmatprep.subr.mxu0 0.0
      %2536 = vmatpush1.msra.mxu0 0.0
      %2537 = vmatprep.mubr.f32.mxu0 0.0
      %2538 = vmatmul.mubr.f32.gmra.mrb[0].mxu0 %v2471
      %v2539 = vpop.f32.mrb[0].mxu0
      %v2540 = vadd.f32 %v169, %v2539
      %v2541 = vpop.f32.mrb[0].mxu0
      %2542 = vdwg.mxu0
      %v2543 = vtanh.pop %v2540
      %v2545 = vsel %vm171, %v2543, 0
      %2547 = vmatprep.subr.mxu0 0.0
      %2548 = vmatpush1.msra.mxu0 %v50
      %2549 = vmatprep.subr.mxu0 0.0
      %2550 = vmatpush1.msra.mxu0 %v51
      %2551 = vmatprep.subr.mxu0 0.0
      %2552 = vmatpush1.msra.mxu0 %v52
      %2553 = vmatprep.subr.mxu0 0.0
      %2554 = vmatpush1.msra.mxu0 %v53
      %2555 = vmatprep.subr.mxu0 0.0
      %2556 = vmatpush1.msra.mxu0 0.0
      %2557 = vmatprep.subr.mxu0 0.0
      %2558 = vmatpush1.msra.mxu0 0.0
      %2559 = vmatprep.subr.mxu0 0.0
      %2560 = vmatpush1.msra.mxu0 0.0
      %2561 = vmatprep.subr.mxu0 0.0
      %2562 = vmatpush1.msra.mxu0 0.0
      %2563 = vmatprep.subr.mxu0 0.0
      %2564 = vmatpush1.msra.mxu0 0.0
      %2565 = vmatprep.subr.mxu0 0.0
      %2566 = vmatpush1.msra.mxu0 0.0
      %2567 = vmatprep.subr.mxu0 0.0
      %2568 = vmatpush1.msra.mxu0 0.0
      %2569 = vmatprep.subr.mxu0 0.0
      %2570 = vmatpush1.msra.mxu0 0.0
      %2571 = vmatprep.subr.mxu0 0.0
      %2572 = vmatpush1.msra.mxu0 0.0
      %2573 = vmatprep.subr.mxu0 0.0
      %2574 = vmatpush1.msra.mxu0 0.0
      %2575 = vmatprep.subr.mxu0 0.0
      %2576 = vmatpush1.msra.mxu0 0.0
      %2577 = vmatprep.subr.mxu0 0.0
      %2578 = vmatpush1.msra.mxu0 0.0
      %2579 = vmatprep.subr.mxu0 0.0
      %2580 = vmatpush1.msra.mxu0 0.0
      %2581 = vmatprep.subr.mxu0 0.0
      %2582 = vmatpush1.msra.mxu0 0.0
      %2583 = vmatprep.subr.mxu0 0.0
      %2584 = vmatpush1.msra.mxu0 0.0
      %2585 = vmatprep.subr.mxu0 0.0
      %2586 = vmatpush1.msra.mxu0 0.0
      %2587 = vmatprep.subr.mxu0 0.0
      %2588 = vmatpush1.msra.mxu0 0.0
      %2589 = vmatprep.subr.mxu0 0.0
      %2590 = vmatpush1.msra.mxu0 0.0
      %2591 = vmatprep.subr.mxu0 0.0
      %2592 = vmatpush1.msra.mxu0 0.0
      %2593 = vmatprep.subr.mxu0 0.0
      %2594 = vmatpush1.msra.mxu0 0.0
      %2595 = vmatprep.subr.mxu0 0.0
      %2596 = vmatpush1.msra.mxu0 0.0
      %2597 = vmatprep.subr.mxu0 0.0
      %2598 = vmatpush1.msra.mxu0 0.0
      %2599 = vmatprep.subr.mxu0 0.0
      %2600 = vmatpush1.msra.mxu0 0.0
      %2601 = vmatprep.subr.mxu0 0.0
      %2602 = vmatpush1.msra.mxu0 0.0
      %2603 = vmatprep.subr.mxu0 0.0
      %2604 = vmatpush1.msra.mxu0 0.0
      %2605 = vmatprep.subr.mxu0 0.0
      %2606 = vmatpush1.msra.mxu0 0.0
      %2607 = vmatprep.subr.mxu0 0.0
      %2608 = vmatpush1.msra.mxu0 0.0
      %2609 = vmatprep.subr.mxu0 0.0
      %2610 = vmatpush1.msra.mxu0 0.0
      %2611 = vmatprep.mubr.f32.mxu0 0.0
      %2612 = vmatmul.mubr.f32.gmra.mrb[0].mxu0 %v2545
      %v2613 = vpop.f32.mrb[0].mxu0
      %v2614 = vadd.f32 %v250, %v2613
      %v2615 = vpop.f32.mrb[0].mxu0
      %2616 = vdwg.mxu0
      %v2617 = vmul.f32 %v781, %v2614
      %v2618 = vadd.f32 %v1935, %v2617
      %s2619 = sadd.f32 %s1937, %s72
      %2620 = vst.msk [vmem:[#allocation2] sm:$0x3] %vm59, %v2618
      %v2621 = vstv %s2619
      %2622 = vst.msk [vmem:[#allocation2] sm:$0x3] %vm77, %v2621
      %v2623 = vld [vmem:[#allocation2] sm:$0x3]
      %v2625 = vsel %vm86, %v2623, 0
      %2627 = vmatprep.subr.mxu0 0.0
      %2628 = vmatpush1.msra.mxu0 %v42
      %2629 = vmatprep.subr.mxu0 0.0
      %2630 = vmatpush1.msra.mxu0 %v92
      %2631 = vmatprep.subr.mxu0 0.0
      %2632 = vmatpush1.msra.mxu0 0.0
      %2633 = vmatprep.subr.mxu0 0.0
      %2634 = vmatpush1.msra.mxu0 0.0
      %2635 = vmatprep.subr.mxu0 0.0
      %2636 = vmatpush1.msra.mxu0 0.0
      %2637 = vmatprep.subr.mxu0 0.0
      %2638 = vmatpush1.msra.mxu0 0.0
      %2639 = vmatprep.subr.mxu0 0.0
      %2640 = vmatpush1.msra.mxu0 0.0
      %2641 = vmatprep.subr.mxu0 0.0
      %2642 = vmatpush1.msra.mxu0 0.0
      %2643 = vmatprep.subr.mxu0 0.0
      %2644 = vmatpush1.msra.mxu0 0.0
      %2645 = vmatprep.subr.mxu0 0.0
      %2646 = vmatpush1.msra.mxu0 0.0
      %2647 = vmatprep.subr.mxu0 0.0
      %2648 = vmatpush1.msra.mxu0 0.0
      %2649 = vmatprep.subr.mxu0 0.0
      %2650 = vmatpush1.msra.mxu0 0.0
      %2651 = vmatprep.subr.mxu0 0.0
      %2652 = vmatpush1.msra.mxu0 0.0
      %2653 = vmatprep.subr.mxu0 0.0
      %2654 = vmatpush1.msra.mxu0 0.0
      %2655 = vmatprep.subr.mxu0 0.0
      %2656 = vmatpush1.msra.mxu0 0.0
      %2657 = vmatprep.subr.mxu0 0.0
      %2658 = vmatpush1.msra.mxu0 0.0
      %2659 = vmatprep.subr.mxu0 0.0
      %2660 = vmatpush1.msra.mxu0 0.0
      %2661 = vmatprep.subr.mxu0 0.0
      %2662 = vmatpush1.msra.mxu0 0.0
      %2663 = vmatprep.subr.mxu0 0.0
      %2664 = vmatpush1.msra.mxu0 0.0
      %2665 = vmatprep.subr.mxu0 0.0
      %2666 = vmatpush1.msra.mxu0 0.0
      %2667 = vmatprep.subr.mxu0 0.0
      %2668 = vmatpush1.msra.mxu0 0.0
      %2669 = vmatprep.subr.mxu0 0.0
      %2670 = vmatpush1.msra.mxu0 0.0
      %2671 = vmatprep.subr.mxu0 0.0
      %2672 = vmatpush1.msra.mxu0 0.0
      %2673 = vmatprep.subr.mxu0 0.0
      %2674 = vmatpush1.msra.mxu0 0.0
      %2675 = vmatprep.subr.mxu0 0.0
      %2676 = vmatpush1.msra.mxu0 0.0
      %2677 = vmatprep.subr.mxu0 0.0
      %2678 = vmatpush1.msra.mxu0 0.0
      %2679 = vmatprep.subr.mxu0 0.0
      %2680 = vmatpush1.msra.mxu0 0.0
      %2681 = vmatprep.subr.mxu0 0.0
      %2682 = vmatpush1.msra.mxu0 0.0
      %2683 = vmatprep.subr.mxu0 0.0
      %2684 = vmatpush1.msra.mxu0 0.0
      %2685 = vmatprep.subr.mxu0 0.0
      %2686 = vmatpush1.msra.mxu0 0.0
      %2687 = vmatprep.subr.mxu0 0.0
      %2688 = vmatpush1.msra.mxu0 0.0
      %2689 = vmatprep.subr.mxu0 0.0
      %2690 = vmatpush1.msra.mxu0 0.0
      %2691 = vmatprep.mubr.f32.mxu0 0.0
      %2692 = vmatmul.mubr.f32.gmra.mrb[0].mxu0 %v2625
      %v2693 = vpop.f32.mrb[0].mxu0
      %v2694 = vadd.f32 %v84, %v2693
      %v2695 = vpop.f32.mrb[0].mxu0
      %2696 = vdwg.mxu0
      %v2697 = vtanh.pop %v2694
      %v2699 = vsel %vm171, %v2697, 0
      %2701 = vmatprep.subr.mxu0 0.0
      %2702 = vmatpush1.msra.mxu0 %v45
      %2703 = vmatprep.subr.mxu0 0.0
      %2704 = vmatpush1.msra.mxu0 %v46
      %2705 = vmatprep.subr.mxu0 0.0
      %2706 = vmatpush1.msra.mxu0 %v47
      %2707 = vmatprep.subr.mxu0 0.0
      %2708 = vmatpush1.msra.mxu0 %v48
      %2709 = vmatprep.subr.mxu0 0.0
      %2710 = vmatpush1.msra.mxu0 0.0
      %2711 = vmatprep.subr.mxu0 0.0
      %2712 = vmatpush1.msra.mxu0 0.0
      %2713 = vmatprep.subr.mxu0 0.0
      %2714 = vmatpush1.msra.mxu0 0.0
      %2715 = vmatprep.subr.mxu0 0.0
      %2716 = vmatpush1.msra.mxu0 0.0
      %2717 = vmatprep.subr.mxu0 0.0
      %2718 = vmatpush1.msra.mxu0 0.0
      %2719 = vmatprep.subr.mxu0 0.0
      %2720 = vmatpush1.msra.mxu0 0.0
      %2721 = vmatprep.subr.mxu0 0.0
      %2722 = vmatpush1.msra.mxu0 0.0
      %2723 = vmatprep.subr.mxu0 0.0
      %2724 = vmatpush1.msra.mxu0 0.0
      %2725 = vmatprep.subr.mxu0 0.0
      %2726 = vmatpush1.msra.mxu0 0.0
      %2727 = vmatprep.subr.mxu0 0.0
      %2728 = vmatpush1.msra.mxu0 0.0
      %2729 = vmatprep.subr.mxu0 0.0
      %2730 = vmatpush1.msra.mxu0 0.0
      %2731 = vmatprep.subr.mxu0 0.0
      %2732 = vmatpush1.msra.mxu0 0.0
      %2733 = vmatprep.subr.mxu0 0.0
      %2734 = vmatpush1.msra.mxu0 0.0
      %2735 = vmatprep.subr.mxu0 0.0
      %2736 = vmatpush1.msra.mxu0 0.0
      %2737 = vmatprep.subr.mxu0 0.0
      %2738 = vmatpush1.msra.mxu0 0.0
      %2739 = vmatprep.subr.mxu0 0.0
      %2740 = vmatpush1.msra.mxu0 0.0
      %2741 = vmatprep.subr.mxu0 0.0
      %2742 = vmatpush1.msra.mxu0 0.0
      %2743 = vmatprep.subr.mxu0 0.0
      %2744 = vmatpush1.msra.mxu0 0.0
      %2745 = vmatprep.subr.mxu0 0.0
      %2746 = vmatpush1.msra.mxu0 0.0
      %2747 = vmatprep.subr.mxu0 0.0
      %2748 = vmatpush1.msra.mxu0 0.0
      %2749 = vmatprep.subr.mxu0 0.0
      %2750 = vmatpush1.msra.mxu0 0.0
      %2751 = vmatprep.subr.mxu0 0.0
      %2752 = vmatpush1.msra.mxu0 0.0
      %2753 = vmatprep.subr.mxu0 0.0
      %2754 = vmatpush1.msra.mxu0 0.0
      %2755 = vmatprep.subr.mxu0 0.0
      %2756 = vmatpush1.msra.mxu0 0.0
      %2757 = vmatprep.subr.mxu0 0.0
      %2758 = vmatpush1.msra.mxu0 0.0
      %2759 = vmatprep.subr.mxu0 0.0
      %2760 = vmatpush1.msra.mxu0 0.0
      %2761 = vmatprep.subr.mxu0 0.0
      %2762 = vmatpush1.msra.mxu0 0.0
      %2763 = vmatprep.subr.mxu0 0.0
      %2764 = vmatpush1.msra.mxu0 0.0
      %2765 = vmatprep.mubr.f32.mxu0 0.0
      %2766 = vmatmul.mubr.f32.gmra.mrb[0].mxu0 %v2699
      %v2767 = vpop.f32.mrb[0].mxu0
      %v2768 = vadd.f32 %v169, %v2767
      %v2769 = vpop.f32.mrb[0].mxu0
      %2770 = vdwg.mxu0
      %v2771 = vtanh.pop %v2768
      %v2773 = vsel %vm171, %v2771, 0
      %2775 = vmatprep.subr.mxu0 0.0
      %2776 = vmatpush1.msra.mxu0 %v50
      %2777 = vmatprep.subr.mxu0 0.0
      %2778 = vmatpush1.msra.mxu0 %v51
      %2779 = vmatprep.subr.mxu0 0.0
      %2780 = vmatpush1.msra.mxu0 %v52
      %2781 = vmatprep.subr.mxu0 0.0
      %2782 = vmatpush1.msra.mxu0 %v53
      %2783 = vmatprep.subr.mxu0 0.0
      %2784 = vmatpush1.msra.mxu0 0.0
      %2785 = vmatprep.subr.mxu0 0.0
      %2786 = vmatpush1.msra.mxu0 0.0
      %2787 = vmatprep.subr.mxu0 0.0
      %2788 = vmatpush1.msra.mxu0 0.0
      %2789 = vmatprep.subr.mxu0 0.0
      %2790 = vmatpush1.msra.mxu0 0.0
      %2791 = vmatprep.subr.mxu0 0.0
      %2792 = vmatpush1.msra.mxu0 0.0
      %2793 = vmatprep.subr.mxu0 0.0
      %2794 = vmatpush1.msra.mxu0 0.0
      %2795 = vmatprep.subr.mxu0 0.0
      %2796 = vmatpush1.msra.mxu0 0.0
      %2797 = vmatprep.subr.mxu0 0.0
      %2798 = vmatpush1.msra.mxu0 0.0
      %2799 = vmatprep.subr.mxu0 0.0
      %2800 = vmatpush1.msra.mxu0 0.0
      %2801 = vmatprep.subr.mxu0 0.0
      %2802 = vmatpush1.msra.mxu0 0.0
      %2803 = vmatprep.subr.mxu0 0.0
      %2804 = vmatpush1.msra.mxu0 0.0
      %2805 = vmatprep.subr.mxu0 0.0
      %2806 = vmatpush1.msra.mxu0 0.0
      %2807 = vmatprep.subr.mxu0 0.0
      %2808 = vmatpush1.msra.mxu0 0.0
      %2809 = vmatprep.subr.mxu0 0.0
      %2810 = vmatpush1.msra.mxu0 0.0
      %2811 = vmatprep.subr.mxu0 0.0
      %2812 = vmatpush1.msra.mxu0 0.0
      %2813 = vmatprep.subr.mxu0 0.0
      %2814 = vmatpush1.msra.mxu0 0.0
      %2815 = vmatprep.subr.mxu0 0.0
      %2816 = vmatpush1.msra.mxu0 0.0
      %2817 = vmatprep.subr.mxu0 0.0
      %2818 = vmatpush1.msra.mxu0 0.0
      %2819 = vmatprep.subr.mxu0 0.0
      %2820 = vmatpush1.msra.mxu0 0.0
      %2821 = vmatprep.subr.mxu0 0.0
      %2822 = vmatpush1.msra.mxu0 0.0
      %2823 = vmatprep.subr.mxu0 0.0
      %2824 = vmatpush1.msra.mxu0 0.0
      %2825 = vmatprep.subr.mxu0 0.0
      %2826 = vmatpush1.msra.mxu0 0.0
      %2827 = vmatprep.subr.mxu0 0.0
      %2828 = vmatpush1.msra.mxu0 0.0
      %2829 = vmatprep.subr.mxu0 0.0
      %2830 = vmatpush1.msra.mxu0 0.0
      %2831 = vmatprep.subr.mxu0 0.0
      %2832 = vmatpush1.msra.mxu0 0.0
      %2833 = vmatprep.subr.mxu0 0.0
      %2834 = vmatpush1.msra.mxu0 0.0
      %2835 = vmatprep.subr.mxu0 0.0
      %2836 = vmatpush1.msra.mxu0 0.0
      %2837 = vmatprep.subr.mxu0 0.0
      %2838 = vmatpush1.msra.mxu0 0.0
      %2839 = vmatprep.mubr.f32.mxu0 0.0
      %2840 = vmatmul.mubr.f32.gmra.mrb[0].mxu0 %v2773
      %v2841 = vpop.f32.mrb[0].mxu0
      %v2842 = vadd.f32 %v250, %v2841
      %v2843 = vpop.f32.mrb[0].mxu0
      %2844 = vdwg.mxu0
      %v2845 = vmul.f32 %v2388, 2.0
      %v2846 = vadd.f32 %v2160, %v2845
      %v2847 = vmul.f32 %v2614, 2.0
      %v2848 = vadd.f32 %v2846, %v2847
      %v2849 = vadd.f32 %v2848, %v2842
      %v2850 = vmul.f32 %v1018, %v2849
      %v2851 = vadd.f32 %v1935, %v2850
      %s2852 = smul.f32 %s72, 3.0
      %s2853 = sadd.f32 %s68, %s2852
      %2854 = vst.msk [vmem:[#allocation2] sm:$0x3] %vm59, %v2851
      %v2855 = vstv %s2853
      %2856 = vst.msk [vmem:[#allocation2] sm:$0x3] %vm77, %v2855
      %v2857 = vld [vmem:[#allocation2] sm:$0x3]
      %v2859 = vsel %vm86, %v2857, 0
      %2861 = vmatprep.subr.mxu0 0.0
      %2862 = vmatpush1.msra.mxu0 %v42
      %2863 = vmatprep.subr.mxu0 0.0
      %2864 = vmatpush1.msra.mxu0 %v92
      %2865 = vmatprep.subr.mxu0 0.0
      %2866 = vmatpush1.msra.mxu0 0.0
      %2867 = vmatprep.subr.mxu0 0.0
      %2868 = vmatpush1.msra.mxu0 0.0
      %2869 = vmatprep.subr.mxu0 0.0
      %2870 = vmatpush1.msra.mxu0 0.0
      %2871 = vmatprep.subr.mxu0 0.0
      %2872 = vmatpush1.msra.mxu0 0.0
      %2873 = vmatprep.subr.mxu0 0.0
      %2874 = vmatpush1.msra.mxu0 0.0
      %2875 = vmatprep.subr.mxu0 0.0
      %2876 = vmatpush1.msra.mxu0 0.0
      %2877 = vmatprep.subr.mxu0 0.0
      %2878 = vmatpush1.msra.mxu0 0.0
      %2879 = vmatprep.subr.mxu0 0.0
      %2880 = vmatpush1.msra.mxu0 0.0
      %2881 = vmatprep.subr.mxu0 0.0
      %2882 = vmatpush1.msra.mxu0 0.0
      %2883 = vmatprep.subr.mxu0 0.0
      %2884 = vmatpush1.msra.mxu0 0.0
      %2885 = vmatprep.subr.mxu0 0.0
      %2886 = vmatpush1.msra.mxu0 0.0
      %2887 = vmatprep.subr.mxu0 0.0
      %2888 = vmatpush1.msra.mxu0 0.0
      %2889 = vmatprep.subr.mxu0 0.0
      %2890 = vmatpush1.msra.mxu0 0.0
      %2891 = vmatprep.subr.mxu0 0.0
      %2892 = vmatpush1.msra.mxu0 0.0
      %2893 = vmatprep.subr.mxu0 0.0
      %2894 = vmatpush1.msra.mxu0 0.0
      %2895 = vmatprep.subr.mxu0 0.0
      %2896 = vmatpush1.msra.mxu0 0.0
      %2897 = vmatprep.subr.mxu0 0.0
      %2898 = vmatpush1.msra.mxu0 0.0
      %2899 = vmatprep.subr.mxu0 0.0
      %2900 = vmatpush1.msra.mxu0 0.0
      %2901 = vmatprep.subr.mxu0 0.0
      %2902 = vmatpush1.msra.mxu0 0.0
      %2903 = vmatprep.subr.mxu0 0.0
      %2904 = vmatpush1.msra.mxu0 0.0
      %2905 = vmatprep.subr.mxu0 0.0
      %2906 = vmatpush1.msra.mxu0 0.0
      %2907 = vmatprep.subr.mxu0 0.0
      %2908 = vmatpush1.msra.mxu0 0.0
      %2909 = vmatprep.subr.mxu0 0.0
      %2910 = vmatpush1.msra.mxu0 0.0
      %2911 = vmatprep.subr.mxu0 0.0
      %2912 = vmatpush1.msra.mxu0 0.0
      %2913 = vmatprep.subr.mxu0 0.0
      %2914 = vmatpush1.msra.mxu0 0.0
      %2915 = vmatprep.subr.mxu0 0.0
      %2916 = vmatpush1.msra.mxu0 0.0
      %2917 = vmatprep.subr.mxu0 0.0
      %2918 = vmatpush1.msra.mxu0 0.0
      %2919 = vmatprep.subr.mxu0 0.0
      %2920 = vmatpush1.msra.mxu0 0.0
      %2921 = vmatprep.subr.mxu0 0.0
      %2922 = vmatpush1.msra.mxu0 0.0
      %2923 = vmatprep.subr.mxu0 0.0
      %2924 = vmatpush1.msra.mxu0 0.0
      %2925 = vmatprep.mubr.f32.mxu0 0.0
      %2926 = vmatmul.mubr.f32.gmra.mrb[0].mxu0 %v2859
      %v2927 = vpop.f32.mrb[0].mxu0
      %v2928 = vadd.f32 %v84, %v2927
      %v2929 = vpop.f32.mrb[0].mxu0
      %2930 = vdwg.mxu0
      %v2931 = vtanh.pop %v2928
      %v2933 = vsel %vm171, %v2931, 0
      %2935 = vmatprep.subr.mxu0 0.0
      %2936 = vmatpush1.msra.mxu0 %v45
      %2937 = vmatprep.subr.mxu0 0.0
      %2938 = vmatpush1.msra.mxu0 %v46
      %2939 = vmatprep.subr.mxu0 0.0
      %2940 = vmatpush1.msra.mxu0 %v47
      %2941 = vmatprep.subr.mxu0 0.0
      %2942 = vmatpush1.msra.mxu0 %v48
      %2943 = vmatprep.subr.mxu0 0.0
      %2944 = vmatpush1.msra.mxu0 0.0
      %2945 = vmatprep.subr.mxu0 0.0
      %2946 = vmatpush1.msra.mxu0 0.0
      %2947 = vmatprep.subr.mxu0 0.0
      %2948 = vmatpush1.msra.mxu0 0.0
      %2949 = vmatprep.subr.mxu0 0.0
      %2950 = vmatpush1.msra.mxu0 0.0
      %2951 = vmatprep.subr.mxu0 0.0
      %2952 = vmatpush1.msra.mxu0 0.0
      %2953 = vmatprep.subr.mxu0 0.0
      %2954 = vmatpush1.msra.mxu0 0.0
      %2955 = vmatprep.subr.mxu0 0.0
      %2956 = vmatpush1.msra.mxu0 0.0
      %2957 = vmatprep.subr.mxu0 0.0
      %2958 = vmatpush1.msra.mxu0 0.0
      %2959 = vmatprep.subr.mxu0 0.0
      %2960 = vmatpush1.msra.mxu0 0.0
      %2961 = vmatprep.subr.mxu0 0.0
      %2962 = vmatpush1.msra.mxu0 0.0
      %2963 = vmatprep.subr.mxu0 0.0
      %2964 = vmatpush1.msra.mxu0 0.0
      %2965 = vmatprep.subr.mxu0 0.0
      %2966 = vmatpush1.msra.mxu0 0.0
      %2967 = vmatprep.subr.mxu0 0.0
      %2968 = vmatpush1.msra.mxu0 0.0
      %2969 = vmatprep.subr.mxu0 0.0
      %2970 = vmatpush1.msra.mxu0 0.0
      %2971 = vmatprep.subr.mxu0 0.0
      %2972 = vmatpush1.msra.mxu0 0.0
      %2973 = vmatprep.subr.mxu0 0.0
      %2974 = vmatpush1.msra.mxu0 0.0
      %2975 = vmatprep.subr.mxu0 0.0
      %2976 = vmatpush1.msra.mxu0 0.0
      %2977 = vmatprep.subr.mxu0 0.0
      %2978 = vmatpush1.msra.mxu0 0.0
      %2979 = vmatprep.subr.mxu0 0.0
      %2980 = vmatpush1.msra.mxu0 0.0
      %2981 = vmatprep.subr.mxu0 0.0
      %2982 = vmatpush1.msra.mxu0 0.0
      %2983 = vmatprep.subr.mxu0 0.0
      %2984 = vmatpush1.msra.mxu0 0.0
      %2985 = vmatprep.subr.mxu0 0.0
      %2986 = vmatpush1.msra.mxu0 0.0
      %2987 = vmatprep.subr.mxu0 0.0
      %2988 = vmatpush1.msra.mxu0 0.0
      %2989 = vmatprep.subr.mxu0 0.0
      %2990 = vmatpush1.msra.mxu0 0.0
      %2991 = vmatprep.subr.mxu0 0.0
      %2992 = vmatpush1.msra.mxu0 0.0
      %2993 = vmatprep.subr.mxu0 0.0
      %2994 = vmatpush1.msra.mxu0 0.0
      %2995 = vmatprep.subr.mxu0 0.0
      %2996 = vmatpush1.msra.mxu0 0.0
      %2997 = vmatprep.subr.mxu0 0.0
      %2998 = vmatpush1.msra.mxu0 0.0
      %2999 = vmatprep.mubr.f32.mxu0 0.0
      %3000 = vmatmul.mubr.f32.gmra.mrb[0].mxu0 %v2933
      %v3001 = vpop.f32.mrb[0].mxu0
      %v3002 = vadd.f32 %v169, %v3001
      %v3003 = vpop.f32.mrb[0].mxu0
      %3004 = vdwg.mxu0
      %v3005 = vtanh.pop %v3002
      %v3007 = vsel %vm171, %v3005, 0
      %3009 = vmatprep.subr.mxu0 0.0
      %3010 = vmatpush1.msra.mxu0 %v50
      %3011 = vmatprep.subr.mxu0 0.0
      %3012 = vmatpush1.msra.mxu0 %v51
      %3013 = vmatprep.subr.mxu0 0.0
      %3014 = vmatpush1.msra.mxu0 %v52
      %3015 = vmatprep.subr.mxu0 0.0
      %3016 = vmatpush1.msra.mxu0 %v53
      %3017 = vmatprep.subr.mxu0 0.0
      %3018 = vmatpush1.msra.mxu0 0.0
      %3019 = vmatprep.subr.mxu0 0.0
      %3020 = vmatpush1.msra.mxu0 0.0
      %3021 = vmatprep.subr.mxu0 0.0
      %3022 = vmatpush1.msra.mxu0 0.0
      %3023 = vmatprep.subr.mxu0 0.0
      %3024 = vmatpush1.msra.mxu0 0.0
      %3025 = vmatprep.subr.mxu0 0.0
      %3026 = vmatpush1.msra.mxu0 0.0
      %3027 = vmatprep.subr.mxu0 0.0
      %3028 = vmatpush1.msra.mxu0 0.0
      %3029 = vmatprep.subr.mxu0 0.0
      %3030 = vmatpush1.msra.mxu0 0.0
      %3031 = vmatprep.subr.mxu0 0.0
      %3032 = vmatpush1.msra.mxu0 0.0
      %3033 = vmatprep.subr.mxu0 0.0
      %3034 = vmatpush1.msra.mxu0 0.0
      %3035 = vmatprep.subr.mxu0 0.0
      %3036 = vmatpush1.msra.mxu0 0.0
      %3037 = vmatprep.subr.mxu0 0.0
      %3038 = vmatpush1.msra.mxu0 0.0
      %3039 = vmatprep.subr.mxu0 0.0
      %3040 = vmatpush1.msra.mxu0 0.0
      %3041 = vmatprep.subr.mxu0 0.0
      %3042 = vmatpush1.msra.mxu0 0.0
      %3043 = vmatprep.subr.mxu0 0.0
      %3044 = vmatpush1.msra.mxu0 0.0
      %3045 = vmatprep.subr.mxu0 0.0
      %3046 = vmatpush1.msra.mxu0 0.0
      %3047 = vmatprep.subr.mxu0 0.0
      %3048 = vmatpush1.msra.mxu0 0.0
      %3049 = vmatprep.subr.mxu0 0.0
      %3050 = vmatpush1.msra.mxu0 0.0
      %3051 = vmatprep.subr.mxu0 0.0
      %3052 = vmatpush1.msra.mxu0 0.0
      %3053 = vmatprep.subr.mxu0 0.0
      %3054 = vmatpush1.msra.mxu0 0.0
      %3055 = vmatprep.subr.mxu0 0.0
      %3056 = vmatpush1.msra.mxu0 0.0
      %3057 = vmatprep.subr.mxu0 0.0
      %3058 = vmatpush1.msra.mxu0 0.0
      %3059 = vmatprep.subr.mxu0 0.0
      %3060 = vmatpush1.msra.mxu0 0.0
      %3061 = vmatprep.subr.mxu0 0.0
      %3062 = vmatpush1.msra.mxu0 0.0
      %3063 = vmatprep.subr.mxu0 0.0
      %3064 = vmatpush1.msra.mxu0 0.0
      %3065 = vmatprep.subr.mxu0 0.0
      %3066 = vmatpush1.msra.mxu0 0.0
      %3067 = vmatprep.subr.mxu0 0.0
      %3068 = vmatpush1.msra.mxu0 0.0
      %3069 = vmatprep.subr.mxu0 0.0
      %3070 = vmatpush1.msra.mxu0 0.0
      %3071 = vmatprep.subr.mxu0 0.0
      %3072 = vmatpush1.msra.mxu0 0.0
      %3073 = vmatprep.mubr.f32.mxu0 0.0
      %3074 = vmatmul.mubr.f32.gmra.mrb[0].mxu0 %v3007
      %v3075 = vpop.f32.mrb[0].mxu0
      %v3076 = vadd.f32 %v250, %v3075
      %v3077 = vpop.f32.mrb[0].mxu0
      %3078 = vdwg.mxu0
      %v3079 = vmul.f32 %v326, %v3076
      %v3080 = vadd.f32 %v2851, %v3079
      %s3081 = sadd.f32 %s2853, %s325
      %3082 = vst.msk [vmem:[#allocation2] sm:$0x3] %vm59, %v3080
      %v3083 = vstv %s3081
      %3084 = vst.msk [vmem:[#allocation2] sm:$0x3] %vm77, %v3083
      %v3085 = vld [vmem:[#allocation2] sm:$0x3]
      %v3087 = vsel %vm86, %v3085, 0
      %3089 = vmatprep.subr.mxu0 0.0
      %3090 = vmatpush1.msra.mxu0 %v42
      %3091 = vmatprep.subr.mxu0 0.0
      %3092 = vmatpush1.msra.mxu0 %v92
      %3093 = vmatprep.subr.mxu0 0.0
      %3094 = vmatpush1.msra.mxu0 0.0
      %3095 = vmatprep.subr.mxu0 0.0
      %3096 = vmatpush1.msra.mxu0 0.0
      %3097 = vmatprep.subr.mxu0 0.0
      %3098 = vmatpush1.msra.mxu0 0.0
      %3099 = vmatprep.subr.mxu0 0.0
      %3100 = vmatpush1.msra.mxu0 0.0
      %3101 = vmatprep.subr.mxu0 0.0
      %3102 = vmatpush1.msra.mxu0 0.0
      %3103 = vmatprep.subr.mxu0 0.0
      %3104 = vmatpush1.msra.mxu0 0.0
      %3105 = vmatprep.subr.mxu0 0.0
      %3106 = vmatpush1.msra.mxu0 0.0
      %3107 = vmatprep.subr.mxu0 0.0
      %3108 = vmatpush1.msra.mxu0 0.0
      %3109 = vmatprep.subr.mxu0 0.0
      %3110 = vmatpush1.msra.mxu0 0.0
      %3111 = vmatprep.subr.mxu0 0.0
      %3112 = vmatpush1.msra.mxu0 0.0
      %3113 = vmatprep.subr.mxu0 0.0
      %3114 = vmatpush1.msra.mxu0 0.0
      %3115 = vmatprep.subr.mxu0 0.0
      %3116 = vmatpush1.msra.mxu0 0.0
      %3117 = vmatprep.subr.mxu0 0.0
      %3118 = vmatpush1.msra.mxu0 0.0
      %3119 = vmatprep.subr.mxu0 0.0
      %3120 = vmatpush1.msra.mxu0 0.0
      %3121 = vmatprep.subr.mxu0 0.0
      %3122 = vmatpush1.msra.mxu0 0.0
      %3123 = vmatprep.subr.mxu0 0.0
      %3124 = vmatpush1.msra.mxu0 0.0
      %3125 = vmatprep.subr.mxu0 0.0
      %3126 = vmatpush1.msra.mxu0 0.0
      %3127 = vmatprep.subr.mxu0 0.0
      %3128 = vmatpush1.msra.mxu0 0.0
      %3129 = vmatprep.subr.mxu0 0.0
      %3130 = vmatpush1.msra.mxu0 0.0
      %3131 = vmatprep.subr.mxu0 0.0
      %3132 = vmatpush1.msra.mxu0 0.0
      %3133 = vmatprep.subr.mxu0 0.0
      %3134 = vmatpush1.msra.mxu0 0.0
      %3135 = vmatprep.subr.mxu0 0.0
      %3136 = vmatpush1.msra.mxu0 0.0
      %3137 = vmatprep.subr.mxu0 0.0
      %3138 = vmatpush1.msra.mxu0 0.0
      %3139 = vmatprep.subr.mxu0 0.0
      %3140 = vmatpush1.msra.mxu0 0.0
      %3141 = vmatprep.subr.mxu0 0.0
      %3142 = vmatpush1.msra.mxu0 0.0
      %3143 = vmatprep.subr.mxu0 0.0
      %3144 = vmatpush1.msra.mxu0 0.0
      %3145 = vmatprep.subr.mxu0 0.0
      %3146 = vmatpush1.msra.mxu0 0.0
      %3147 = vmatprep.subr.mxu0 0.0
      %3148 = vmatpush1.msra.mxu0 0.0
      %3149 = vmatprep.subr.mxu0 0.0
      %3150 = vmatpush1.msra.mxu0 0.0
      %3151 = vmatprep.subr.mxu0 0.0
      %3152 = vmatpush1.msra.mxu0 0.0
      %3153 = vmatprep.mubr.f32.mxu0 0.0
      %3154 = vmatmul.mubr.f32.gmra.mrb[0].mxu0 %v3087
      %v3155 = vpop.f32.mrb[0].mxu0
      %v3156 = vadd.f32 %v84, %v3155
      %v3157 = vpop.f32.mrb[0].mxu0
      %3158 = vdwg.mxu0
      %v3159 = vtanh.pop %v3156
      %v3161 = vsel %vm171, %v3159, 0
      %3163 = vmatprep.subr.mxu0 0.0
      %3164 = vmatpush1.msra.mxu0 %v45
      %3165 = vmatprep.subr.mxu0 0.0
      %3166 = vmatpush1.msra.mxu0 %v46
      %3167 = vmatprep.subr.mxu0 0.0
      %3168 = vmatpush1.msra.mxu0 %v47
      %3169 = vmatprep.subr.mxu0 0.0
      %3170 = vmatpush1.msra.mxu0 %v48
      %3171 = vmatprep.subr.mxu0 0.0
      %3172 = vmatpush1.msra.mxu0 0.0
      %3173 = vmatprep.subr.mxu0 0.0
      %3174 = vmatpush1.msra.mxu0 0.0
      %3175 = vmatprep.subr.mxu0 0.0
      %3176 = vmatpush1.msra.mxu0 0.0
      %3177 = vmatprep.subr.mxu0 0.0
      %3178 = vmatpush1.msra.mxu0 0.0
      %3179 = vmatprep.subr.mxu0 0.0
      %3180 = vmatpush1.msra.mxu0 0.0
      %3181 = vmatprep.subr.mxu0 0.0
      %3182 = vmatpush1.msra.mxu0 0.0
      %3183 = vmatprep.subr.mxu0 0.0
      %3184 = vmatpush1.msra.mxu0 0.0
      %3185 = vmatprep.subr.mxu0 0.0
      %3186 = vmatpush1.msra.mxu0 0.0
      %3187 = vmatprep.subr.mxu0 0.0
      %3188 = vmatpush1.msra.mxu0 0.0
      %3189 = vmatprep.subr.mxu0 0.0
      %3190 = vmatpush1.msra.mxu0 0.0
      %3191 = vmatprep.subr.mxu0 0.0
      %3192 = vmatpush1.msra.mxu0 0.0
      %3193 = vmatprep.subr.mxu0 0.0
      %3194 = vmatpush1.msra.mxu0 0.0
      %3195 = vmatprep.subr.mxu0 0.0
      %3196 = vmatpush1.msra.mxu0 0.0
      %3197 = vmatprep.subr.mxu0 0.0
      %3198 = vmatpush1.msra.mxu0 0.0
      %3199 = vmatprep.subr.mxu0 0.0
      %3200 = vmatpush1.msra.mxu0 0.0
      %3201 = vmatprep.subr.mxu0 0.0
      %3202 = vmatpush1.msra.mxu0 0.0
      %3203 = vmatprep.subr.mxu0 0.0
      %3204 = vmatpush1.msra.mxu0 0.0
      %3205 = vmatprep.subr.mxu0 0.0
      %3206 = vmatpush1.msra.mxu0 0.0
      %3207 = vmatprep.subr.mxu0 0.0
      %3208 = vmatpush1.msra.mxu0 0.0
      %3209 = vmatprep.subr.mxu0 0.0
      %3210 = vmatpush1.msra.mxu0 0.0
      %3211 = vmatprep.subr.mxu0 0.0
      %3212 = vmatpush1.msra.mxu0 0.0
      %3213 = vmatprep.subr.mxu0 0.0
      %3214 = vmatpush1.msra.mxu0 0.0
      %3215 = vmatprep.subr.mxu0 0.0
      %3216 = vmatpush1.msra.mxu0 0.0
      %3217 = vmatprep.subr.mxu0 0.0
      %3218 = vmatpush1.msra.mxu0 0.0
      %3219 = vmatprep.subr.mxu0 0.0
      %3220 = vmatpush1.msra.mxu0 0.0
      %3221 = vmatprep.subr.mxu0 0.0
      %3222 = vmatpush1.msra.mxu0 0.0
      %3223 = vmatprep.subr.mxu0 0.0
      %3224 = vmatpush1.msra.mxu0 0.0
      %3225 = vmatprep.subr.mxu0 0.0
      %3226 = vmatpush1.msra.mxu0 0.0
      %3227 = vmatprep.mubr.f32.mxu0 0.0
      %3228 = vmatmul.mubr.f32.gmra.mrb[0].mxu0 %v3161
      %v3229 = vpop.f32.mrb[0].mxu0
      %v3230 = vadd.f32 %v169, %v3229
      %v3231 = vpop.f32.mrb[0].mxu0
      %3232 = vdwg.mxu0
      %v3233 = vtanh.pop %v3230
      %v3235 = vsel %vm171, %v3233, 0
      %3237 = vmatprep.subr.mxu0 0.0
      %3238 = vmatpush1.msra.mxu0 %v50
      %3239 = vmatprep.subr.mxu0 0.0
      %3240 = vmatpush1.msra.mxu0 %v51
      %3241 = vmatprep.subr.mxu0 0.0
      %3242 = vmatpush1.msra.mxu0 %v52
      %3243 = vmatprep.subr.mxu0 0.0
      %3244 = vmatpush1.msra.mxu0 %v53
      %3245 = vmatprep.subr.mxu0 0.0
      %3246 = vmatpush1.msra.mxu0 0.0
      %3247 = vmatprep.subr.mxu0 0.0
      %3248 = vmatpush1.msra.mxu0 0.0
      %3249 = vmatprep.subr.mxu0 0.0
      %3250 = vmatpush1.msra.mxu0 0.0
      %3251 = vmatprep.subr.mxu0 0.0
      %3252 = vmatpush1.msra.mxu0 0.0
      %3253 = vmatprep.subr.mxu0 0.0
      %3254 = vmatpush1.msra.mxu0 0.0
      %3255 = vmatprep.subr.mxu0 0.0
      %3256 = vmatpush1.msra.mxu0 0.0
      %3257 = vmatprep.subr.mxu0 0.0
      %3258 = vmatpush1.msra.mxu0 0.0
      %3259 = vmatprep.subr.mxu0 0.0
      %3260 = vmatpush1.msra.mxu0 0.0
      %3261 = vmatprep.subr.mxu0 0.0
      %3262 = vmatpush1.msra.mxu0 0.0
      %3263 = vmatprep.subr.mxu0 0.0
      %3264 = vmatpush1.msra.mxu0 0.0
      %3265 = vmatprep.subr.mxu0 0.0
      %3266 = vmatpush1.msra.mxu0 0.0
      %3267 = vmatprep.subr.mxu0 0.0
      %3268 = vmatpush1.msra.mxu0 0.0
      %3269 = vmatprep.subr.mxu0 0.0
      %3270 = vmatpush1.msra.mxu0 0.0
      %3271 = vmatprep.subr.mxu0 0.0
      %3272 = vmatpush1.msra.mxu0 0.0
      %3273 = vmatprep.subr.mxu0 0.0
      %3274 = vmatpush1.msra.mxu0 0.0
      %3275 = vmatprep.subr.mxu0 0.0
      %3276 = vmatpush1.msra.mxu0 0.0
      %3277 = vmatprep.subr.mxu0 0.0
      %3278 = vmatpush1.msra.mxu0 0.0
      %3279 = vmatprep.subr.mxu0 0.0
      %3280 = vmatpush1.msra.mxu0 0.0
      %3281 = vmatprep.subr.mxu0 0.0
      %3282 = vmatpush1.msra.mxu0 0.0
      %3283 = vmatprep.subr.mxu0 0.0
      %3284 = vmatpush1.msra.mxu0 0.0
      %3285 = vmatprep.subr.mxu0 0.0
      %3286 = vmatpush1.msra.mxu0 0.0
      %3287 = vmatprep.subr.mxu0 0.0
      %3288 = vmatpush1.msra.mxu0 0.0
      %3289 = vmatprep.subr.mxu0 0.0
      %3290 = vmatpush1.msra.mxu0 0.0
      %3291 = vmatprep.subr.mxu0 0.0
      %3292 = vmatpush1.msra.mxu0 0.0
      %3293 = vmatprep.subr.mxu0 0.0
      %3294 = vmatpush1.msra.mxu0 0.0
      %3295 = vmatprep.subr.mxu0 0.0
      %3296 = vmatpush1.msra.mxu0 0.0
      %3297 = vmatprep.subr.mxu0 0.0
      %3298 = vmatpush1.msra.mxu0 0.0
      %3299 = vmatprep.subr.mxu0 0.0
      %3300 = vmatpush1.msra.mxu0 0.0
      %3301 = vmatprep.mubr.f32.mxu0 0.0
      %3302 = vmatmul.mubr.f32.gmra.mrb[0].mxu0 %v3235
      %v3303 = vpop.f32.mrb[0].mxu0
      %v3304 = vadd.f32 %v250, %v3303
      %v3305 = vpop.f32.mrb[0].mxu0
      %3306 = vdwg.mxu0
      %v3307 = vmul.f32 %v326, %v3304
      %v3308 = vadd.f32 %v2851, %v3307
      %3309 = vst.msk [vmem:[#allocation2] sm:$0x3] %vm59, %v3308
      %3310 = vst.msk [vmem:[#allocation2] sm:$0x3] %vm77, %v3083
      %v3311 = vld [vmem:[#allocation2] sm:$0x3]
      %v3313 = vsel %vm86, %v3311, 0
      %3315 = vmatprep.subr.mxu0 0.0
      %3316 = vmatpush1.msra.mxu0 %v42
      %3317 = vmatprep.subr.mxu0 0.0
      %3318 = vmatpush1.msra.mxu0 %v92
      %3319 = vmatprep.subr.mxu0 0.0
      %3320 = vmatpush1.msra.mxu0 0.0
      %3321 = vmatprep.subr.mxu0 0.0
      %3322 = vmatpush1.msra.mxu0 0.0
      %3323 = vmatprep.subr.mxu0 0.0
      %3324 = vmatpush1.msra.mxu0 0.0
      %3325 = vmatprep.subr.mxu0 0.0
      %3326 = vmatpush1.msra.mxu0 0.0
      %3327 = vmatprep.subr.mxu0 0.0
      %3328 = vmatpush1.msra.mxu0 0.0
      %3329 = vmatprep.subr.mxu0 0.0
      %3330 = vmatpush1.msra.mxu0 0.0
      %3331 = vmatprep.subr.mxu0 0.0
      %3332 = vmatpush1.msra.mxu0 0.0
      %3333 = vmatprep.subr.mxu0 0.0
      %3334 = vmatpush1.msra.mxu0 0.0
      %3335 = vmatprep.subr.mxu0 0.0
      %3336 = vmatpush1.msra.mxu0 0.0
      %3337 = vmatprep.subr.mxu0 0.0
      %3338 = vmatpush1.msra.mxu0 0.0
      %3339 = vmatprep.subr.mxu0 0.0
      %3340 = vmatpush1.msra.mxu0 0.0
      %3341 = vmatprep.subr.mxu0 0.0
      %3342 = vmatpush1.msra.mxu0 0.0
      %3343 = vmatprep.subr.mxu0 0.0
      %3344 = vmatpush1.msra.mxu0 0.0
      %3345 = vmatprep.subr.mxu0 0.0
      %3346 = vmatpush1.msra.mxu0 0.0
      %3347 = vmatprep.subr.mxu0 0.0
      %3348 = vmatpush1.msra.mxu0 0.0
      %3349 = vmatprep.subr.mxu0 0.0
      %3350 = vmatpush1.msra.mxu0 0.0
      %3351 = vmatprep.subr.mxu0 0.0
      %3352 = vmatpush1.msra.mxu0 0.0
      %3353 = vmatprep.subr.mxu0 0.0
      %3354 = vmatpush1.msra.mxu0 0.0
      %3355 = vmatprep.subr.mxu0 0.0
      %3356 = vmatpush1.msra.mxu0 0.0
      %3357 = vmatprep.subr.mxu0 0.0
      %3358 = vmatpush1.msra.mxu0 0.0
      %3359 = vmatprep.subr.mxu0 0.0
      %3360 = vmatpush1.msra.mxu0 0.0
      %3361 = vmatprep.subr.mxu0 0.0
      %3362 = vmatpush1.msra.mxu0 0.0
      %3363 = vmatprep.subr.mxu0 0.0
      %3364 = vmatpush1.msra.mxu0 0.0
      %3365 = vmatprep.subr.mxu0 0.0
      %3366 = vmatpush1.msra.mxu0 0.0
      %3367 = vmatprep.subr.mxu0 0.0
      %3368 = vmatpush1.msra.mxu0 0.0
      %3369 = vmatprep.subr.mxu0 0.0
      %3370 = vmatpush1.msra.mxu0 0.0
      %3371 = vmatprep.subr.mxu0 0.0
      %3372 = vmatpush1.msra.mxu0 0.0
      %3373 = vmatprep.subr.mxu0 0.0
      %3374 = vmatpush1.msra.mxu0 0.0
      %3375 = vmatprep.subr.mxu0 0.0
      %3376 = vmatpush1.msra.mxu0 0.0
      %3377 = vmatprep.subr.mxu0 0.0
      %3378 = vmatpush1.msra.mxu0 0.0
      %3379 = vmatprep.mubr.f32.mxu0 0.0
      %3380 = vmatmul.mubr.f32.gmra.mrb[0].mxu0 %v3313
      %v3381 = vpop.f32.mrb[0].mxu0
      %v3382 = vadd.f32 %v84, %v3381
      %v3383 = vpop.f32.mrb[0].mxu0
      %3384 = vdwg.mxu0
      %v3385 = vtanh.pop %v3382
      %v3387 = vsel %vm171, %v3385, 0
      %3389 = vmatprep.subr.mxu0 0.0
      %3390 = vmatpush1.msra.mxu0 %v45
      %3391 = vmatprep.subr.mxu0 0.0
      %3392 = vmatpush1.msra.mxu0 %v46
      %3393 = vmatprep.subr.mxu0 0.0
      %3394 = vmatpush1.msra.mxu0 %v47
      %3395 = vmatprep.subr.mxu0 0.0
      %3396 = vmatpush1.msra.mxu0 %v48
      %3397 = vmatprep.subr.mxu0 0.0
      %3398 = vmatpush1.msra.mxu0 0.0
      %3399 = vmatprep.subr.mxu0 0.0
      %3400 = vmatpush1.msra.mxu0 0.0
      %3401 = vmatprep.subr.mxu0 0.0
      %3402 = vmatpush1.msra.mxu0 0.0
      %3403 = vmatprep.subr.mxu0 0.0
      %3404 = vmatpush1.msra.mxu0 0.0
      %3405 = vmatprep.subr.mxu0 0.0
      %3406 = vmatpush1.msra.mxu0 0.0
      %3407 = vmatprep.subr.mxu0 0.0
      %3408 = vmatpush1.msra.mxu0 0.0
      %3409 = vmatprep.subr.mxu0 0.0
      %3410 = vmatpush1.msra.mxu0 0.0
      %3411 = vmatprep.subr.mxu0 0.0
      %3412 = vmatpush1.msra.mxu0 0.0
      %3413 = vmatprep.subr.mxu0 0.0
      %3414 = vmatpush1.msra.mxu0 0.0
      %3415 = vmatprep.subr.mxu0 0.0
      %3416 = vmatpush1.msra.mxu0 0.0
      %3417 = vmatprep.subr.mxu0 0.0
      %3418 = vmatpush1.msra.mxu0 0.0
      %3419 = vmatprep.subr.mxu0 0.0
      %3420 = vmatpush1.msra.mxu0 0.0
      %3421 = vmatprep.subr.mxu0 0.0
      %3422 = vmatpush1.msra.mxu0 0.0
      %3423 = vmatprep.subr.mxu0 0.0
      %3424 = vmatpush1.msra.mxu0 0.0
      %3425 = vmatprep.subr.mxu0 0.0
      %3426 = vmatpush1.msra.mxu0 0.0
      %3427 = vmatprep.subr.mxu0 0.0
      %3428 = vmatpush1.msra.mxu0 0.0
      %3429 = vmatprep.subr.mxu0 0.0
      %3430 = vmatpush1.msra.mxu0 0.0
      %3431 = vmatprep.subr.mxu0 0.0
      %3432 = vmatpush1.msra.mxu0 0.0
      %3433 = vmatprep.subr.mxu0 0.0
      %3434 = vmatpush1.msra.mxu0 0.0
      %3435 = vmatprep.subr.mxu0 0.0
      %3436 = vmatpush1.msra.mxu0 0.0
      %3437 = vmatprep.subr.mxu0 0.0
      %3438 = vmatpush1.msra.mxu0 0.0
      %3439 = vmatprep.subr.mxu0 0.0
      %3440 = vmatpush1.msra.mxu0 0.0
      %3441 = vmatprep.subr.mxu0 0.0
      %3442 = vmatpush1.msra.mxu0 0.0
      %3443 = vmatprep.subr.mxu0 0.0
      %3444 = vmatpush1.msra.mxu0 0.0
      %3445 = vmatprep.subr.mxu0 0.0
      %3446 = vmatpush1.msra.mxu0 0.0
      %3447 = vmatprep.subr.mxu0 0.0
      %3448 = vmatpush1.msra.mxu0 0.0
      %3449 = vmatprep.subr.mxu0 0.0
      %3450 = vmatpush1.msra.mxu0 0.0
      %3451 = vmatprep.subr.mxu0 0.0
      %3452 = vmatpush1.msra.mxu0 0.0
      %3453 = vmatprep.mubr.f32.mxu0 0.0
      %3454 = vmatmul.mubr.f32.gmra.mrb[0].mxu0 %v3387
      %v3455 = vpop.f32.mrb[0].mxu0
      %v3456 = vadd.f32 %v169, %v3455
      %v3457 = vpop.f32.mrb[0].mxu0
      %3458 = vdwg.mxu0
      %v3459 = vtanh.pop %v3456
      %v3461 = vsel %vm171, %v3459, 0
      %3463 = vmatprep.subr.mxu0 0.0
      %3464 = vmatpush1.msra.mxu0 %v50
      %3465 = vmatprep.subr.mxu0 0.0
      %3466 = vmatpush1.msra.mxu0 %v51
      %3467 = vmatprep.subr.mxu0 0.0
      %3468 = vmatpush1.msra.mxu0 %v52
      %3469 = vmatprep.subr.mxu0 0.0
      %3470 = vmatpush1.msra.mxu0 %v53
      %3471 = vmatprep.subr.mxu0 0.0
      %3472 = vmatpush1.msra.mxu0 0.0
      %3473 = vmatprep.subr.mxu0 0.0
      %3474 = vmatpush1.msra.mxu0 0.0
      %3475 = vmatprep.subr.mxu0 0.0
      %3476 = vmatpush1.msra.mxu0 0.0
      %3477 = vmatprep.subr.mxu0 0.0
      %3478 = vmatpush1.msra.mxu0 0.0
      %3479 = vmatprep.subr.mxu0 0.0
      %3480 = vmatpush1.msra.mxu0 0.0
      %3481 = vmatprep.subr.mxu0 0.0
      %3482 = vmatpush1.msra.mxu0 0.0
      %3483 = vmatprep.subr.mxu0 0.0
      %3484 = vmatpush1.msra.mxu0 0.0
      %3485 = vmatprep.subr.mxu0 0.0
      %3486 = vmatpush1.msra.mxu0 0.0
      %3487 = vmatprep.subr.mxu0 0.0
      %3488 = vmatpush1.msra.mxu0 0.0
      %3489 = vmatprep.subr.mxu0 0.0
      %3490 = vmatpush1.msra.mxu0 0.0
      %3491 = vmatprep.subr.mxu0 0.0
      %3492 = vmatpush1.msra.mxu0 0.0
      %3493 = vmatprep.subr.mxu0 0.0
      %3494 = vmatpush1.msra.mxu0 0.0
      %3495 = vmatprep.subr.mxu0 0.0
      %3496 = vmatpush1.msra.mxu0 0.0
      %3497 = vmatprep.subr.mxu0 0.0
      %3498 = vmatpush1.msra.mxu0 0.0
      %3499 = vmatprep.subr.mxu0 0.0
      %3500 = vmatpush1.msra.mxu0 0.0
      %3501 = vmatprep.subr.mxu0 0.0
      %3502 = vmatpush1.msra.mxu0 0.0
      %3503 = vmatprep.subr.mxu0 0.0
      %3504 = vmatpush1.msra.mxu0 0.0
      %3505 = vmatprep.subr.mxu0 0.0
      %3506 = vmatpush1.msra.mxu0 0.0
      %3507 = vmatprep.subr.mxu0 0.0
      %3508 = vmatpush1.msra.mxu0 0.0
      %3509 = vmatprep.subr.mxu0 0.0
      %3510 = vmatpush1.msra.mxu0 0.0
      %3511 = vmatprep.subr.mxu0 0.0
      %3512 = vmatpush1.msra.mxu0 0.0
      %3513 = vmatprep.subr.mxu0 0.0
      %3514 = vmatpush1.msra.mxu0 0.0
      %3515 = vmatprep.subr.mxu0 0.0
      %3516 = vmatpush1.msra.mxu0 0.0
      %3517 = vmatprep.subr.mxu0 0.0
      %3518 = vmatpush1.msra.mxu0 0.0
      %3519 = vmatprep.subr.mxu0 0.0
      %3520 = vmatpush1.msra.mxu0 0.0
      %3521 = vmatprep.subr.mxu0 0.0
      %3522 = vmatpush1.msra.mxu0 0.0
      %3523 = vmatprep.subr.mxu0 0.0
      %3524 = vmatpush1.msra.mxu0 0.0
      %3525 = vmatprep.subr.mxu0 0.0
      %3526 = vmatpush1.msra.mxu0 0.0
      %3527 = vmatprep.mubr.f32.mxu0 0.0
      %3528 = vmatmul.mubr.f32.gmra.mrb[0].mxu0 %v3461
      %v3529 = vpop.f32.mrb[0].mxu0
      %v3530 = vadd.f32 %v250, %v3529
      %v3531 = vpop.f32.mrb[0].mxu0
      %3532 = vdwg.mxu0
      %v3533 = vmul.f32 %v781, %v3530
      %v3534 = vadd.f32 %v2851, %v3533
      %s3535 = sadd.f32 %s2853, %s72
      %3536 = vst.msk [vmem:[#allocation2] sm:$0x3] %vm59, %v3534
      %v3537 = vstv %s3535
      %3538 = vst.msk [vmem:[#allocation2] sm:$0x3] %vm77, %v3537
      %v3539 = vld [vmem:[#allocation2] sm:$0x3]
      %v3541 = vsel %vm86, %v3539, 0
      %3543 = vmatprep.subr.mxu0 0.0
      %3544 = vmatpush1.msra.mxu0 %v42
      %3545 = vmatprep.subr.mxu0 0.0
      %3546 = vmatpush1.msra.mxu0 %v92
      %3547 = vmatprep.subr.mxu0 0.0
      %3548 = vmatpush1.msra.mxu0 0.0
      %3549 = vmatprep.subr.mxu0 0.0
      %3550 = vmatpush1.msra.mxu0 0.0
      %3551 = vmatprep.subr.mxu0 0.0
      %3552 = vmatpush1.msra.mxu0 0.0
      %3553 = vmatprep.subr.mxu0 0.0
      %3554 = vmatpush1.msra.mxu0 0.0
      %3555 = vmatprep.subr.mxu0 0.0
      %3556 = vmatpush1.msra.mxu0 0.0
      %3557 = vmatprep.subr.mxu0 0.0
      %3558 = vmatpush1.msra.mxu0 0.0
      %3559 = vmatprep.subr.mxu0 0.0
      %3560 = vmatpush1.msra.mxu0 0.0
      %3561 = vmatprep.subr.mxu0 0.0
      %3562 = vmatpush1.msra.mxu0 0.0
      %3563 = vmatprep.subr.mxu0 0.0
      %3564 = vmatpush1.msra.mxu0 0.0
      %3565 = vmatprep.subr.mxu0 0.0
      %3566 = vmatpush1.msra.mxu0 0.0
      %3567 = vmatprep.subr.mxu0 0.0
      %3568 = vmatpush1.msra.mxu0 0.0
      %3569 = vmatprep.subr.mxu0 0.0
      %3570 = vmatpush1.msra.mxu0 0.0
      %3571 = vmatprep.subr.mxu0 0.0
      %3572 = vmatpush1.msra.mxu0 0.0
      %3573 = vmatprep.subr.mxu0 0.0
      %3574 = vmatpush1.msra.mxu0 0.0
      %3575 = vmatprep.subr.mxu0 0.0
      %3576 = vmatpush1.msra.mxu0 0.0
      %3577 = vmatprep.subr.mxu0 0.0
      %3578 = vmatpush1.msra.mxu0 0.0
      %3579 = vmatprep.subr.mxu0 0.0
      %3580 = vmatpush1.msra.mxu0 0.0
      %3581 = vmatprep.subr.mxu0 0.0
      %3582 = vmatpush1.msra.mxu0 0.0
      %3583 = vmatprep.subr.mxu0 0.0
      %3584 = vmatpush1.msra.mxu0 0.0
      %3585 = vmatprep.subr.mxu0 0.0
      %3586 = vmatpush1.msra.mxu0 0.0
      %3587 = vmatprep.subr.mxu0 0.0
      %3588 = vmatpush1.msra.mxu0 0.0
      %3589 = vmatprep.subr.mxu0 0.0
      %3590 = vmatpush1.msra.mxu0 0.0
      %3591 = vmatprep.subr.mxu0 0.0
      %3592 = vmatpush1.msra.mxu0 0.0
      %3593 = vmatprep.subr.mxu0 0.0
      %3594 = vmatpush1.msra.mxu0 0.0
      %3595 = vmatprep.subr.mxu0 0.0
      %3596 = vmatpush1.msra.mxu0 0.0
      %3597 = vmatprep.subr.mxu0 0.0
      %3598 = vmatpush1.msra.mxu0 0.0
      %3599 = vmatprep.subr.mxu0 0.0
      %3600 = vmatpush1.msra.mxu0 0.0
      %3601 = vmatprep.subr.mxu0 0.0
      %3602 = vmatpush1.msra.mxu0 0.0
      %3603 = vmatprep.subr.mxu0 0.0
      %3604 = vmatpush1.msra.mxu0 0.0
      %3605 = vmatprep.subr.mxu0 0.0
      %3606 = vmatpush1.msra.mxu0 0.0
      %3607 = vmatprep.mubr.f32.mxu0 0.0
      %3608 = vmatmul.mubr.f32.gmra.mrb[0].mxu0 %v3541
      %v3609 = vpop.f32.mrb[0].mxu0
      %v3610 = vadd.f32 %v84, %v3609
      %v3611 = vpop.f32.mrb[0].mxu0
      %3612 = vdwg.mxu0
      %v3613 = vtanh.pop %v3610
      %v3615 = vsel %vm171, %v3613, 0
      %3617 = vmatprep.subr.mxu0 0.0
      %3618 = vmatpush1.msra.mxu0 %v45
      %3619 = vmatprep.subr.mxu0 0.0
      %3620 = vmatpush1.msra.mxu0 %v46
      %3621 = vmatprep.subr.mxu0 0.0
      %3622 = vmatpush1.msra.mxu0 %v47
      %3623 = vmatprep.subr.mxu0 0.0
      %3624 = vmatpush1.msra.mxu0 %v48
      %3625 = vmatprep.subr.mxu0 0.0
      %3626 = vmatpush1.msra.mxu0 0.0
      %3627 = vmatprep.subr.mxu0 0.0
      %3628 = vmatpush1.msra.mxu0 0.0
      %3629 = vmatprep.subr.mxu0 0.0
      %3630 = vmatpush1.msra.mxu0 0.0
      %3631 = vmatprep.subr.mxu0 0.0
      %3632 = vmatpush1.msra.mxu0 0.0
      %3633 = vmatprep.subr.mxu0 0.0
      %3634 = vmatpush1.msra.mxu0 0.0
      %3635 = vmatprep.subr.mxu0 0.0
      %3636 = vmatpush1.msra.mxu0 0.0
      %3637 = vmatprep.subr.mxu0 0.0
      %3638 = vmatpush1.msra.mxu0 0.0
      %3639 = vmatprep.subr.mxu0 0.0
      %3640 = vmatpush1.msra.mxu0 0.0
      %3641 = vmatprep.subr.mxu0 0.0
      %3642 = vmatpush1.msra.mxu0 0.0
      %3643 = vmatprep.subr.mxu0 0.0
      %3644 = vmatpush1.msra.mxu0 0.0
      %3645 = vmatprep.subr.mxu0 0.0
      %3646 = vmatpush1.msra.mxu0 0.0
      %3647 = vmatprep.subr.mxu0 0.0
      %3648 = vmatpush1.msra.mxu0 0.0
      %3649 = vmatprep.subr.mxu0 0.0
      %3650 = vmatpush1.msra.mxu0 0.0
      %3651 = vmatprep.subr.mxu0 0.0
      %3652 = vmatpush1.msra.mxu0 0.0
      %3653 = vmatprep.subr.mxu0 0.0
      %3654 = vmatpush1.msra.mxu0 0.0
      %3655 = vmatprep.subr.mxu0 0.0
      %3656 = vmatpush1.msra.mxu0 0.0
      %3657 = vmatprep.subr.mxu0 0.0
      %3658 = vmatpush1.msra.mxu0 0.0
      %3659 = vmatprep.subr.mxu0 0.0
      %3660 = vmatpush1.msra.mxu0 0.0
      %3661 = vmatprep.subr.mxu0 0.0
      %3662 = vmatpush1.msra.mxu0 0.0
      %3663 = vmatprep.subr.mxu0 0.0
      %3664 = vmatpush1.msra.mxu0 0.0
      %3665 = vmatprep.subr.mxu0 0.0
      %3666 = vmatpush1.msra.mxu0 0.0
      %3667 = vmatprep.subr.mxu0 0.0
      %3668 = vmatpush1.msra.mxu0 0.0
      %3669 = vmatprep.subr.mxu0 0.0
      %3670 = vmatpush1.msra.mxu0 0.0
      %3671 = vmatprep.subr.mxu0 0.0
      %3672 = vmatpush1.msra.mxu0 0.0
      %3673 = vmatprep.subr.mxu0 0.0
      %3674 = vmatpush1.msra.mxu0 0.0
      %3675 = vmatprep.subr.mxu0 0.0
      %3676 = vmatpush1.msra.mxu0 0.0
      %3677 = vmatprep.subr.mxu0 0.0
      %3678 = vmatpush1.msra.mxu0 0.0
      %3679 = vmatprep.subr.mxu0 0.0
      %3680 = vmatpush1.msra.mxu0 0.0
      %3681 = vmatprep.mubr.f32.mxu0 0.0
      %3682 = vmatmul.mubr.f32.gmra.mrb[0].mxu0 %v3615
      %v3683 = vpop.f32.mrb[0].mxu0
      %v3684 = vadd.f32 %v169, %v3683
      %v3685 = vpop.f32.mrb[0].mxu0
      %3686 = vdwg.mxu0
      %v3687 = vtanh.pop %v3684
      %v3689 = vsel %vm171, %v3687, 0
      %3691 = vmatprep.subr.mxu0 0.0
      %3692 = vmatpush1.msra.mxu0 %v50
      %3693 = vmatprep.subr.mxu0 0.0
      %3694 = vmatpush1.msra.mxu0 %v51
      %3695 = vmatprep.subr.mxu0 0.0
      %3696 = vmatpush1.msra.mxu0 %v52
      %3697 = vmatprep.subr.mxu0 0.0
      %3698 = vmatpush1.msra.mxu0 %v53
      %3699 = vmatprep.subr.mxu0 0.0
      %3700 = vmatpush1.msra.mxu0 0.0
      %3701 = vmatprep.subr.mxu0 0.0
      %3702 = vmatpush1.msra.mxu0 0.0
      %3703 = vmatprep.subr.mxu0 0.0
      %3704 = vmatpush1.msra.mxu0 0.0
      %3705 = vmatprep.subr.mxu0 0.0
      %3706 = vmatpush1.msra.mxu0 0.0
      %3707 = vmatprep.subr.mxu0 0.0
      %3708 = vmatpush1.msra.mxu0 0.0
      %3709 = vmatprep.subr.mxu0 0.0
      %3710 = vmatpush1.msra.mxu0 0.0
      %3711 = vmatprep.subr.mxu0 0.0
      %3712 = vmatpush1.msra.mxu0 0.0
      %3713 = vmatprep.subr.mxu0 0.0
      %3714 = vmatpush1.msra.mxu0 0.0
      %3715 = vmatprep.subr.mxu0 0.0
      %3716 = vmatpush1.msra.mxu0 0.0
      %3717 = vmatprep.subr.mxu0 0.0
      %3718 = vmatpush1.msra.mxu0 0.0
      %3719 = vmatprep.subr.mxu0 0.0
      %3720 = vmatpush1.msra.mxu0 0.0
      %3721 = vmatprep.subr.mxu0 0.0
      %3722 = vmatpush1.msra.mxu0 0.0
      %3723 = vmatprep.subr.mxu0 0.0
      %3724 = vmatpush1.msra.mxu0 0.0
      %3725 = vmatprep.subr.mxu0 0.0
      %3726 = vmatpush1.msra.mxu0 0.0
      %3727 = vmatprep.subr.mxu0 0.0
      %3728 = vmatpush1.msra.mxu0 0.0
      %3729 = vmatprep.subr.mxu0 0.0
      %3730 = vmatpush1.msra.mxu0 0.0
      %3731 = vmatprep.subr.mxu0 0.0
      %3732 = vmatpush1.msra.mxu0 0.0
      %3733 = vmatprep.subr.mxu0 0.0
      %3734 = vmatpush1.msra.mxu0 0.0
      %3735 = vmatprep.subr.mxu0 0.0
      %3736 = vmatpush1.msra.mxu0 0.0
      %3737 = vmatprep.subr.mxu0 0.0
      %3738 = vmatpush1.msra.mxu0 0.0
      %3739 = vmatprep.subr.mxu0 0.0
      %3740 = vmatpush1.msra.mxu0 0.0
      %3741 = vmatprep.subr.mxu0 0.0
      %3742 = vmatpush1.msra.mxu0 0.0
      %3743 = vmatprep.subr.mxu0 0.0
      %3744 = vmatpush1.msra.mxu0 0.0
      %3745 = vmatprep.subr.mxu0 0.0
      %3746 = vmatpush1.msra.mxu0 0.0
      %3747 = vmatprep.subr.mxu0 0.0
      %3748 = vmatpush1.msra.mxu0 0.0
      %3749 = vmatprep.subr.mxu0 0.0
      %3750 = vmatpush1.msra.mxu0 0.0
      %3751 = vmatprep.subr.mxu0 0.0
      %3752 = vmatpush1.msra.mxu0 0.0
      %3753 = vmatprep.subr.mxu0 0.0
      %3754 = vmatpush1.msra.mxu0 0.0
      %3755 = vmatprep.mubr.f32.mxu0 0.0
      %3756 = vmatmul.mubr.f32.gmra.mrb[0].mxu0 %v3689
      %v3757 = vpop.f32.mrb[0].mxu0
      %v3758 = vadd.f32 %v250, %v3757
      %v3759 = vpop.f32.mrb[0].mxu0
      %3760 = vdwg.mxu0
      %v3761 = vmul.f32 %v3304, 2.0
      %v3762 = vadd.f32 %v3076, %v3761
      %v3763 = vmul.f32 %v3530, 2.0
      %v3764 = vadd.f32 %v3762, %v3763
      %v3765 = vadd.f32 %v3764, %v3758
      %v3766 = vmul.f32 %v1018, %v3765
      %v3767 = vadd.f32 %v2851, %v3766
      %s3768 = smul.u32 %s69, 2
      %s3769 = scalar_lea.vmem %s8, %s3768
      %3770 = vst.msk [vmem:[%s3769] sm:$0x3] %vm59, %v3767
    $region42: #{_forward_train_impl.5} parent=1 // loop_footer
      %s66 = sadd.s32 1, %s62
    $region43: #{_forward_train_impl.5} parent=1 // loop_footer_branch
      %61 = sbr.rel target = $region39
    $region44: #{_forward_train_impl.5} parent=1 // loop_exit
      _
    // Predicated region
    $region45: #{_forward_train_impl.5} parent=1 // pred_check
      _
    $region46: #{_forward_train_impl.5} parent=1 // pred_check_branch
      %3772 = sbr.rel (0) target = $region48
    $region47: #{_forward_train_impl.5} parent=1 // pred_region
      _
    $region48: #{_forward_train_impl.5} parent=1 // pred_fallthru
      _
    // Predicated region
    $region49: #{_forward_train_impl.5} parent=1 // pred_check
      _
    $region50: #{_forward_train_impl.5} parent=1 // pred_check_branch
      %3774 = sbr.rel (0) target = $region52
    $region51: #{_forward_train_impl.5} parent=1 // pred_region
      _
    $region52: #{_forward_train_impl.5} parent=1 // pred_fallthru
      _
    %3775 = vsyncpa [#allocation4], 1

</llo_original>
